<compile_context>
chip_gen: v7x
topology: tpu7x:2x2x1
jax: 0.10.0
libtpu: 0.0.40
codegen_flags: <defaults>
</compile_context>

<pallas_src>
import functools

import jax
import jax.numpy as jnp
from jax.experimental import pallas as pl
from jax.experimental.pallas import tpu as pltpu  # noqa: F401  (memory spaces / params at larger shapes)


# ---------------------------------------------------------------------------
# Fused kernel (single invocation, no grid):
#   x_ref   : (B*N, Cin)  node features, batch-major rows (row b*N + n = node n of graph b)
#   a_ref   : (N, N)      normalized adjacency A_hat (dense)
#   w1,b1   : (Cin, H), (1, H)
#   w2,b2   : (H,   H), (1, H)
#   wfc_ref : (N*H, C)    fc weight, pre-transposed to (in, out)
#   bfc_ref : (1, C)
#   o_ref   : (B, C)
# ---------------------------------------------------------------------------
def stgcn_fused_kernel(x_ref, a_ref, w1_ref, b1_ref, w2_ref, b2_ref,
                       wfc_ref, bfc_ref, o_ref, *, batch, num_nodes):
    f32 = jnp.float32
    B = batch
    N = num_nodes
    H = w2_ref.shape[1]
    C = o_ref.shape[1]

    a = a_ref[...]                                                   # (N, N)

    # ---- GCN layer 1 ------------------------------------------------------
    # Feature transform for all graphs in one matmul: (B*N, Cin) @ (Cin, H).
    h = jnp.dot(x_ref[...], w1_ref[...], preferred_element_type=f32)  # (B*N, H)
    # Propagation per graph on tile-aligned (N, H) row blocks (N multiple of 8),
    # then one tile-aligned concat along sublanes. No kron, no reshape.
    h = jnp.concatenate(
        [jnp.dot(a, h[b * N:(b + 1) * N, :], preferred_element_type=f32)
         for b in range(B)],
        axis=0)                                                       # (B*N, H)
    h = jnp.maximum(h + b1_ref[...], 0.0)

    # ---- GCN layer 2 feature transform (batched) ---------------------------
    h = jnp.dot(h, w2_ref[...], preferred_element_type=f32)           # (B*N, H)

    # ---- Layer-2 propagation + ReLU + accumulated-FC readout, per graph ----
    # out[b, :] = sum_n relu(A_hat @ (h_b @ W2) + b2)[n, :] @ Wfc[n*H:(n+1)*H, :]
    # (equivalent to PyTorch h.view(B, -1) @ fc.weight.T, but without building the
    #  (B, N*H) slab: the flatten is folded into per-node MXU dots accumulated in
    #  registers — no VMEM scratch, no masked partial stores.)
    wfc = wfc_ref[...]                                                # (N*H, C)
    b2v = b2_ref[...]                                                 # (1, H)
    outs = []
    for b in range(B):                                                # static unroll (B=2)
        hb = jnp.dot(a, h[b * N:(b + 1) * N, :], preferred_element_type=f32)  # (N, H)
        hb = jnp.maximum(hb + b2v, 0.0)
        acc = jnp.zeros((1, C), f32)
        for n in range(N):                                            # static unroll (N=16)
            acc = acc + jnp.dot(hb[n:n + 1, :], wfc[n * H:(n + 1) * H, :],
                                preferred_element_type=f32)
        outs.append(acc)

    # One (B, C) store. (C=8 lanes is lane-sparse; pad C to 128 if the real model
    # has a larger readout — low priority per the perf review.)
    o_ref[...] = jnp.concatenate(outs, axis=0) + bfc_ref[...]


def build_normalized_adjacency(edge_index, num_nodes):
    """Dense A_hat = D^-1/2 (A + I) D^-1/2, PyG GCNConv convention (host-side, one-time)."""
    src = edge_index[0]
    dst = edge_index[1]
    loops = jnp.arange(num_nodes, dtype=src.dtype)
    src = jnp.concatenate([src, loops])
    dst = jnp.concatenate([dst, loops])
    w = jnp.ones(src.shape[0], dtype=jnp.float32)
    deg = jnp.zeros((num_nodes,), jnp.float32).at[dst].add(w)
    dinv = jnp.where(deg > 0, 1.0 / jnp.sqrt(deg), 0.0)
    norm = dinv[src] * dinv[dst] * w
    a_hat = jnp.zeros((num_nodes, num_nodes), jnp.float32).at[dst, src].add(norm)
    return a_hat


def stgcn_forward(x, a_hat, w1, b1, w2, b2, wfc_t, bfc):
    B, N, Cin = x.shape
    H = w1.shape[1]
    C = wfc_t.shape[1]

    # Batch-major packing: contiguous reshape only (no transpose), row b*N + n.
    x_p = x.reshape(B * N, Cin)

    kernel = functools.partial(stgcn_fused_kernel, batch=B, num_nodes=N)

    out = pl.pallas_call(
        kernel,
        out_shape=jax.ShapeDtypeStruct((B, C), jnp.float32),
        in_specs=[
            pl.BlockSpec((B * N, Cin), lambda: (0, 0)),
            pl.BlockSpec((N, N), lambda: (0, 0)),
            pl.BlockSpec((Cin, H), lambda: (0, 0)),
            pl.BlockSpec((1, H), lambda: (0, 0)),
            pl.BlockSpec((H, H), lambda: (0, 0)),
            pl.BlockSpec((1, H), lambda: (0, 0)),
            pl.BlockSpec((N * H, C), lambda: (0, 0)),
            pl.BlockSpec((1, C), lambda: (0, 0)),
        ],
        out_specs=pl.BlockSpec((B, C), lambda: (0, 0)),
    )(x_p, a_hat, w1, b1, w2, b2, wfc_t, bfc)
    return out


def reference_forward(x, a_hat, w1, b1, w2, b2, wfc_t, bfc):
    """Pure-JAX reference mirroring the PyTorch forward semantics (per-batch loop)."""
    B = x.shape[0]
    outs = []
    for i in range(B):
        h = x[i]
        h = jax.nn.relu(a_hat @ (h @ w1) + b1[0])
        h = jax.nn.relu(a_hat @ (h @ w2) + b2[0])
        outs.append(h[None])
    h = jnp.concatenate(outs, axis=0)
    h = h.reshape(B, -1)
    return h @ wfc_t + bfc[0]


if __name__ == "__main__":
    # Small shapes consistent with the module's forward signature.
    batch = 2
    num_nodes = 16
    in_channels = 4
    hidden_channels = 32
    num_classes = 8

    key = jax.random.PRNGKey(0)
    k_x, k_w1, k_b1, k_w2, k_b2, k_wfc, k_bfc = jax.random.split(key, 7)

    # input x: (batch, num_nodes, in_channels)
    x = jax.random.normal(k_x, (batch, num_nodes, in_channels), jnp.float32)

    # simple undirected ring graph as edge_index (2, E)
    nodes = jnp.arange(num_nodes, dtype=jnp.int32)
    nxt = (nodes + 1) % num_nodes
    edge_index = jnp.stack(
        [jnp.concatenate([nodes, nxt]), jnp.concatenate([nxt, nodes])], axis=0
    )

    # One-time host-side prep (hoisted out of the per-call path).
    a_hat = build_normalized_adjacency(edge_index, num_nodes)

    # Deterministic parameter init (stored as (in, out); PyTorch stores (out, in)).
    w1 = 0.1 * jax.random.normal(k_w1, (in_channels, hidden_channels), jnp.float32)
    b1 = 0.1 * jax.random.normal(k_b1, (1, hidden_channels), jnp.float32)
    w2 = 0.1 * jax.random.normal(k_w2, (hidden_channels, hidden_channels), jnp.float32)
    b2 = 0.1 * jax.random.normal(k_b2, (1, hidden_channels), jnp.float32)
    wfc = 0.1 * jax.random.normal(
        k_wfc, (num_classes, hidden_channels * num_nodes), jnp.float32
    )
    bfc = 0.1 * jax.random.normal(k_bfc, (1, num_classes), jnp.float32)
    wfc_t = wfc.T  # (N*H, C), one-time

    fwd = jax.jit(stgcn_forward)
    out = fwd(x, a_hat, w1, b1, w2, b2, wfc_t, bfc)
    out = jax.block_until_ready(out)

    ref = reference_forward(x, a_hat, w1, b1, w2, b2, wfc_t, bfc)
    assert out.shape == (batch, num_classes)
    assert jnp.allclose(out, ref, atol=1e-4, rtol=1e-4), "mismatch vs reference"

    print("KERNEL_OK")
</pallas_src>

<mosaic_0001>
module attributes {stable_mosaic.version = 11 : i64} {
  func.func @stgcn_fused_kernel(%arg0: memref<32x4xf32, #tpu.memory_space<vmem>>, %arg1: memref<16x16xf32, #tpu.memory_space<vmem>>, %arg2: memref<4x32xf32, #tpu.memory_space<vmem>>, %arg3: memref<1x32xf32, #tpu.memory_space<vmem>>, %arg4: memref<32x32xf32, #tpu.memory_space<vmem>>, %arg5: memref<1x32xf32, #tpu.memory_space<vmem>>, %arg6: memref<512x8xf32, #tpu.memory_space<vmem>>, %arg7: memref<1x8xf32, #tpu.memory_space<vmem>>, %arg8: memref<2x8xf32, #tpu.memory_space<vmem>>) attributes {dimension_semantics = [], scalar_prefetch = 0 : i64, scratch_operands = 0 : i64, tpu.core_type = #tpu.core_type<tc>} {
    %c0 = arith.constant 0 : index
    %c0_0 = arith.constant 0 : index
    %0 = vector.load %arg1[%c0, %c0_0] : memref<16x16xf32, #tpu.memory_space<vmem>>, vector<16x16xf32>
    %c0_1 = arith.constant 0 : index
    %c0_2 = arith.constant 0 : index
    %1 = vector.load %arg0[%c0_1, %c0_2] : memref<32x4xf32, #tpu.memory_space<vmem>>, vector<32x4xf32>
    %c0_3 = arith.constant 0 : index
    %c0_4 = arith.constant 0 : index
    %2 = vector.load %arg2[%c0_3, %c0_4] : memref<4x32xf32, #tpu.memory_space<vmem>>, vector<4x32xf32>
    %cst = arith.constant dense<0.000000e+00> : vector<32x32xf32>
    %3 = tpu.matmul %1, %2, %cst {dimension_numbers = #tpu.dot_dimension_numbers<[1], [0], [0], [1], [0, 0, 1, 1], [], []>} : vector<32x4xf32>, vector<4x32xf32>, vector<32x32xf32> -> vector<32x32xf32>
    %4 = vector.extract_strided_slice %3 {offsets = [0, 0], sizes = [16, 32], strides = [1, 1]} : vector<32x32xf32> to vector<16x32xf32>
    %cst_5 = arith.constant dense<0.000000e+00> : vector<16x32xf32>
    %5 = tpu.matmul %0, %4, %cst_5 {dimension_numbers = #tpu.dot_dimension_numbers<[1], [0], [0], [1], [0, 0, 1, 1], [], []>} : vector<16x16xf32>, vector<16x32xf32>, vector<16x32xf32> -> vector<16x32xf32>
    %6 = vector.extract_strided_slice %3 {offsets = [16, 0], sizes = [16, 32], strides = [1, 1]} : vector<32x32xf32> to vector<16x32xf32>
    %cst_6 = arith.constant dense<0.000000e+00> : vector<16x32xf32>
    %7 = tpu.matmul %0, %6, %cst_6 {dimension_numbers = #tpu.dot_dimension_numbers<[1], [0], [0], [1], [0, 0, 1, 1], [], []>} : vector<16x16xf32>, vector<16x32xf32>, vector<16x32xf32> -> vector<16x32xf32>
    %8 = tpu.concatenate %5, %7 in 0 : vector<16x32xf32>, vector<16x32xf32> -> vector<32x32xf32>
    %c0_7 = arith.constant 0 : index
    %c0_8 = arith.constant 0 : index
    %9 = vector.load %arg3[%c0_7, %c0_8] : memref<1x32xf32, #tpu.memory_space<vmem>>, vector<1x32xf32>
    %10 = vector.broadcast %9 : vector<1x32xf32> to vector<32x32xf32>
    %11 = arith.addf %8, %10 : vector<32x32xf32>
    %cst_9 = arith.constant 0.000000e+00 : f32
    %12 = vector.broadcast %cst_9 : f32 to vector<32x32xf32>
    %13 = arith.maximumf %11, %12 : vector<32x32xf32>
    %c0_10 = arith.constant 0 : index
    %c0_11 = arith.constant 0 : index
    %14 = vector.load %arg4[%c0_10, %c0_11] : memref<32x32xf32, #tpu.memory_space<vmem>>, vector<32x32xf32>
    %cst_12 = arith.constant dense<0.000000e+00> : vector<32x32xf32>
    %15 = tpu.matmul %13, %14, %cst_12 {dimension_numbers = #tpu.dot_dimension_numbers<[1], [0], [0], [1], [0, 0, 1, 1], [], []>} : vector<32x32xf32>, vector<32x32xf32>, vector<32x32xf32> -> vector<32x32xf32>
    %c0_13 = arith.constant 0 : index
    %c0_14 = arith.constant 0 : index
    %16 = vector.load %arg6[%c0_13, %c0_14] : memref<512x8xf32, #tpu.memory_space<vmem>>, vector<512x8xf32>
    %c0_15 = arith.constant 0 : index
    %c0_16 = arith.constant 0 : index
    %17 = vector.load %arg5[%c0_15, %c0_16] : memref<1x32xf32, #tpu.memory_space<vmem>>, vector<1x32xf32>
    %18 = vector.extract_strided_slice %15 {offsets = [0, 0], sizes = [16, 32], strides = [1, 1]} : vector<32x32xf32> to vector<16x32xf32>
    %cst_17 = arith.constant dense<0.000000e+00> : vector<16x32xf32>
    %19 = tpu.matmul %0, %18, %cst_17 {dimension_numbers = #tpu.dot_dimension_numbers<[1], [0], [0], [1], [0, 0, 1, 1], [], []>} : vector<16x16xf32>, vector<16x32xf32>, vector<16x32xf32> -> vector<16x32xf32>
    %20 = vector.broadcast %17 : vector<1x32xf32> to vector<16x32xf32>
    %21 = arith.addf %19, %20 : vector<16x32xf32>
    %cst_18 = arith.constant 0.000000e+00 : f32
    %22 = vector.broadcast %cst_18 : f32 to vector<16x32xf32>
    %23 = arith.maximumf %21, %22 : vector<16x32xf32>
    %cst_19 = arith.constant 0.000000e+00 : f32
    %24 = vector.broadcast %cst_19 : f32 to vector<1x8xf32>
    %25 = vector.extract_strided_slice %23 {offsets = [0, 0], sizes = [1, 32], strides = [1, 1]} : vector<16x32xf32> to vector<1x32xf32>
    %26 = vector.extract_strided_slice %16 {offsets = [0, 0], sizes = [32, 8], strides = [1, 1]} : vector<512x8xf32> to vector<32x8xf32>
    %cst_20 = arith.constant dense<0.000000e+00> : vector<1x8xf32>
    %27 = tpu.matmul %25, %26, %cst_20 {dimension_numbers = #tpu.dot_dimension_numbers<[1], [0], [0], [1], [0, 0, 1, 1], [], []>} : vector<1x32xf32>, vector<32x8xf32>, vector<1x8xf32> -> vector<1x8xf32>
    %28 = arith.addf %24, %27 : vector<1x8xf32>
    %29 = vector.extract_strided_slice %23 {offsets = [1, 0], sizes = [1, 32], strides = [1, 1]} : vector<16x32xf32> to vector<1x32xf32>
    %30 = vector.extract_strided_slice %16 {offsets = [32, 0], sizes = [32, 8], strides = [1, 1]} : vector<512x8xf32> to vector<32x8xf32>
    %cst_21 = arith.constant dense<0.000000e+00> : vector<1x8xf32>
    %31 = tpu.matmul %29, %30, %cst_21 {dimension_numbers = #tpu.dot_dimension_numbers<[1], [0], [0], [1], [0, 0, 1, 1], [], []>} : vector<1x32xf32>, vector<32x8xf32>, vector<1x8xf32> -> vector<1x8xf32>
    %32 = arith.addf %28, %31 : vector<1x8xf32>
    %33 = vector.extract_strided_slice %23 {offsets = [2, 0], sizes = [1, 32], strides = [1, 1]} : vector<16x32xf32> to vector<1x32xf32>
    %34 = vector.extract_strided_slice %16 {offsets = [64, 0], sizes = [32, 8], strides = [1, 1]} : vector<512x8xf32> to vector<32x8xf32>
    %cst_22 = arith.constant dense<0.000000e+00> : vector<1x8xf32>
    %35 = tpu.matmul %33, %34, %cst_22 {dimension_numbers = #tpu.dot_dimension_numbers<[1], [0], [0], [1], [0, 0, 1, 1], [], []>} : vector<1x32xf32>, vector<32x8xf32>, vector<1x8xf32> -> vector<1x8xf32>
    %36 = arith.addf %32, %35 : vector<1x8xf32>
    %37 = vector.extract_strided_slice %23 {offsets = [3, 0], sizes = [1, 32], strides = [1, 1]} : vector<16x32xf32> to vector<1x32xf32>
    %38 = vector.extract_strided_slice %16 {offsets = [96, 0], sizes = [32, 8], strides = [1, 1]} : vector<512x8xf32> to vector<32x8xf32>
    %cst_23 = arith.constant dense<0.000000e+00> : vector<1x8xf32>
    %39 = tpu.matmul %37, %38, %cst_23 {dimension_numbers = #tpu.dot_dimension_numbers<[1], [0], [0], [1], [0, 0, 1, 1], [], []>} : vector<1x32xf32>, vector<32x8xf32>, vector<1x8xf32> -> vector<1x8xf32>
    %40 = arith.addf %36, %39 : vector<1x8xf32>
    %41 = vector.extract_strided_slice %23 {offsets = [4, 0], sizes = [1, 32], strides = [1, 1]} : vector<16x32xf32> to vector<1x32xf32>
    %42 = vector.extract_strided_slice %16 {offsets = [128, 0], sizes = [32, 8], strides = [1, 1]} : vector<512x8xf32> to vector<32x8xf32>
    %cst_24 = arith.constant dense<0.000000e+00> : vector<1x8xf32>
    %43 = tpu.matmul %41, %42, %cst_24 {dimension_numbers = #tpu.dot_dimension_numbers<[1], [0], [0], [1], [0, 0, 1, 1], [], []>} : vector<1x32xf32>, vector<32x8xf32>, vector<1x8xf32> -> vector<1x8xf32>
    %44 = arith.addf %40, %43 : vector<1x8xf32>
    %45 = vector.extract_strided_slice %23 {offsets = [5, 0], sizes = [1, 32], strides = [1, 1]} : vector<16x32xf32> to vector<1x32xf32>
    %46 = vector.extract_strided_slice %16 {offsets = [160, 0], sizes = [32, 8], strides = [1, 1]} : vector<512x8xf32> to vector<32x8xf32>
    %cst_25 = arith.constant dense<0.000000e+00> : vector<1x8xf32>
    %47 = tpu.matmul %45, %46, %cst_25 {dimension_numbers = #tpu.dot_dimension_numbers<[1], [0], [0], [1], [0, 0, 1, 1], [], []>} : vector<1x32xf32>, vector<32x8xf32>, vector<1x8xf32> -> vector<1x8xf32>
    %48 = arith.addf %44, %47 : vector<1x8xf32>
    %49 = vector.extract_strided_slice %23 {offsets = [6, 0], sizes = [1, 32], strides = [1, 1]} : vector<16x32xf32> to vector<1x32xf32>
    %50 = vector.extract_strided_slice %16 {offsets = [192, 0], sizes = [32, 8], strides = [1, 1]} : vector<512x8xf32> to vector<32x8xf32>
    %cst_26 = arith.constant dense<0.000000e+00> : vector<1x8xf32>
    %51 = tpu.matmul %49, %50, %cst_26 {dimension_numbers = #tpu.dot_dimension_numbers<[1], [0], [0], [1], [0, 0, 1, 1], [], []>} : vector<1x32xf32>, vector<32x8xf32>, vector<1x8xf32> -> vector<1x8xf32>
    %52 = arith.addf %48, %51 : vector<1x8xf32>
    %53 = vector.extract_strided_slice %23 {offsets = [7, 0], sizes = [1, 32], strides = [1, 1]} : vector<16x32xf32> to vector<1x32xf32>
    %54 = vector.extract_strided_slice %16 {offsets = [224, 0], sizes = [32, 8], strides = [1, 1]} : vector<512x8xf32> to vector<32x8xf32>
    %cst_27 = arith.constant dense<0.000000e+00> : vector<1x8xf32>
    %55 = tpu.matmul %53, %54, %cst_27 {dimension_numbers = #tpu.dot_dimension_numbers<[1], [0], [0], [1], [0, 0, 1, 1], [], []>} : vector<1x32xf32>, vector<32x8xf32>, vector<1x8xf32> -> vector<1x8xf32>
    %56 = arith.addf %52, %55 : vector<1x8xf32>
    %57 = vector.extract_strided_slice %23 {offsets = [8, 0], sizes = [1, 32], strides = [1, 1]} : vector<16x32xf32> to vector<1x32xf32>
    %58 = vector.extract_strided_slice %16 {offsets = [256, 0], sizes = [32, 8], strides = [1, 1]} : vector<512x8xf32> to vector<32x8xf32>
    %cst_28 = arith.constant dense<0.000000e+00> : vector<1x8xf32>
    %59 = tpu.matmul %57, %58, %cst_28 {dimension_numbers = #tpu.dot_dimension_numbers<[1], [0], [0], [1], [0, 0, 1, 1], [], []>} : vector<1x32xf32>, vector<32x8xf32>, vector<1x8xf32> -> vector<1x8xf32>
    %60 = arith.addf %56, %59 : vector<1x8xf32>
    %61 = vector.extract_strided_slice %23 {offsets = [9, 0], sizes = [1, 32], strides = [1, 1]} : vector<16x32xf32> to vector<1x32xf32>
    %62 = vector.extract_strided_slice %16 {offsets = [288, 0], sizes = [32, 8], strides = [1, 1]} : vector<512x8xf32> to vector<32x8xf32>
    %cst_29 = arith.constant dense<0.000000e+00> : vector<1x8xf32>
    %63 = tpu.matmul %61, %62, %cst_29 {dimension_numbers = #tpu.dot_dimension_numbers<[1], [0], [0], [1], [0, 0, 1, 1], [], []>} : vector<1x32xf32>, vector<32x8xf32>, vector<1x8xf32> -> vector<1x8xf32>
    %64 = arith.addf %60, %63 : vector<1x8xf32>
    %65 = vector.extract_strided_slice %23 {offsets = [10, 0], sizes = [1, 32], strides = [1, 1]} : vector<16x32xf32> to vector<1x32xf32>
    %66 = vector.extract_strided_slice %16 {offsets = [320, 0], sizes = [32, 8], strides = [1, 1]} : vector<512x8xf32> to vector<32x8xf32>
    %cst_30 = arith.constant dense<0.000000e+00> : vector<1x8xf32>
    %67 = tpu.matmul %65, %66, %cst_30 {dimension_numbers = #tpu.dot_dimension_numbers<[1], [0], [0], [1], [0, 0, 1, 1], [], []>} : vector<1x32xf32>, vector<32x8xf32>, vector<1x8xf32> -> vector<1x8xf32>
    %68 = arith.addf %64, %67 : vector<1x8xf32>
    %69 = vector.extract_strided_slice %23 {offsets = [11, 0], sizes = [1, 32], strides = [1, 1]} : vector<16x32xf32> to vector<1x32xf32>
    %70 = vector.extract_strided_slice %16 {offsets = [352, 0], sizes = [32, 8], strides = [1, 1]} : vector<512x8xf32> to vector<32x8xf32>
    %cst_31 = arith.constant dense<0.000000e+00> : vector<1x8xf32>
    %71 = tpu.matmul %69, %70, %cst_31 {dimension_numbers = #tpu.dot_dimension_numbers<[1], [0], [0], [1], [0, 0, 1, 1], [], []>} : vector<1x32xf32>, vector<32x8xf32>, vector<1x8xf32> -> vector<1x8xf32>
    %72 = arith.addf %68, %71 : vector<1x8xf32>
    %73 = vector.extract_strided_slice %23 {offsets = [12, 0], sizes = [1, 32], strides = [1, 1]} : vector<16x32xf32> to vector<1x32xf32>
    %74 = vector.extract_strided_slice %16 {offsets = [384, 0], sizes = [32, 8], strides = [1, 1]} : vector<512x8xf32> to vector<32x8xf32>
    %cst_32 = arith.constant dense<0.000000e+00> : vector<1x8xf32>
    %75 = tpu.matmul %73, %74, %cst_32 {dimension_numbers = #tpu.dot_dimension_numbers<[1], [0], [0], [1], [0, 0, 1, 1], [], []>} : vector<1x32xf32>, vector<32x8xf32>, vector<1x8xf32> -> vector<1x8xf32>
    %76 = arith.addf %72, %75 : vector<1x8xf32>
    %77 = vector.extract_strided_slice %23 {offsets = [13, 0], sizes = [1, 32], strides = [1, 1]} : vector<16x32xf32> to vector<1x32xf32>
    %78 = vector.extract_strided_slice %16 {offsets = [416, 0], sizes = [32, 8], strides = [1, 1]} : vector<512x8xf32> to vector<32x8xf32>
    %cst_33 = arith.constant dense<0.000000e+00> : vector<1x8xf32>
    %79 = tpu.matmul %77, %78, %cst_33 {dimension_numbers = #tpu.dot_dimension_numbers<[1], [0], [0], [1], [0, 0, 1, 1], [], []>} : vector<1x32xf32>, vector<32x8xf32>, vector<1x8xf32> -> vector<1x8xf32>
    %80 = arith.addf %76, %79 : vector<1x8xf32>
    %81 = vector.extract_strided_slice %23 {offsets = [14, 0], sizes = [1, 32], strides = [1, 1]} : vector<16x32xf32> to vector<1x32xf32>
    %82 = vector.extract_strided_slice %16 {offsets = [448, 0], sizes = [32, 8], strides = [1, 1]} : vector<512x8xf32> to vector<32x8xf32>
    %cst_34 = arith.constant dense<0.000000e+00> : vector<1x8xf32>
    %83 = tpu.matmul %81, %82, %cst_34 {dimension_numbers = #tpu.dot_dimension_numbers<[1], [0], [0], [1], [0, 0, 1, 1], [], []>} : vector<1x32xf32>, vector<32x8xf32>, vector<1x8xf32> -> vector<1x8xf32>
    %84 = arith.addf %80, %83 : vector<1x8xf32>
    %85 = vector.extract_strided_slice %23 {offsets = [15, 0], sizes = [1, 32], strides = [1, 1]} : vector<16x32xf32> to vector<1x32xf32>
    %86 = vector.extract_strided_slice %16 {offsets = [480, 0], sizes = [32, 8], strides = [1, 1]} : vector<512x8xf32> to vector<32x8xf32>
    %cst_35 = arith.constant dense<0.000000e+00> : vector<1x8xf32>
    %87 = tpu.matmul %85, %86, %cst_35 {dimension_numbers = #tpu.dot_dimension_numbers<[1], [0], [0], [1], [0, 0, 1, 1], [], []>} : vector<1x32xf32>, vector<32x8xf32>, vector<1x8xf32> -> vector<1x8xf32>
    %88 = arith.addf %84, %87 : vector<1x8xf32>
    %89 = vector.extract_strided_slice %15 {offsets = [16, 0], sizes = [16, 32], strides = [1, 1]} : vector<32x32xf32> to vector<16x32xf32>
    %cst_36 = arith.constant dense<0.000000e+00> : vector<16x32xf32>
    %90 = tpu.matmul %0, %89, %cst_36 {dimension_numbers = #tpu.dot_dimension_numbers<[1], [0], [0], [1], [0, 0, 1, 1], [], []>} : vector<16x16xf32>, vector<16x32xf32>, vector<16x32xf32> -> vector<16x32xf32>
    %91 = vector.broadcast %17 : vector<1x32xf32> to vector<16x32xf32>
    %92 = arith.addf %90, %91 : vector<16x32xf32>
    %cst_37 = arith.constant 0.000000e+00 : f32
    %93 = vector.broadcast %cst_37 : f32 to vector<16x32xf32>
    %94 = arith.maximumf %92, %93 : vector<16x32xf32>
    %cst_38 = arith.constant 0.000000e+00 : f32
    %95 = vector.broadcast %cst_38 : f32 to vector<1x8xf32>
    %96 = vector.extract_strided_slice %94 {offsets = [0, 0], sizes = [1, 32], strides = [1, 1]} : vector<16x32xf32> to vector<1x32xf32>
    %97 = vector.extract_strided_slice %16 {offsets = [0, 0], sizes = [32, 8], strides = [1, 1]} : vector<512x8xf32> to vector<32x8xf32>
    %cst_39 = arith.constant dense<0.000000e+00> : vector<1x8xf32>
    %98 = tpu.matmul %96, %97, %cst_39 {dimension_numbers = #tpu.dot_dimension_numbers<[1], [0], [0], [1], [0, 0, 1, 1], [], []>} : vector<1x32xf32>, vector<32x8xf32>, vector<1x8xf32> -> vector<1x8xf32>
    %99 = arith.addf %95, %98 : vector<1x8xf32>
    %100 = vector.extract_strided_slice %94 {offsets = [1, 0], sizes = [1, 32], strides = [1, 1]} : vector<16x32xf32> to vector<1x32xf32>
    %101 = vector.extract_strided_slice %16 {offsets = [32, 0], sizes = [32, 8], strides = [1, 1]} : vector<512x8xf32> to vector<32x8xf32>
    %cst_40 = arith.constant dense<0.000000e+00> : vector<1x8xf32>
    %102 = tpu.matmul %100, %101, %cst_40 {dimension_numbers = #tpu.dot_dimension_numbers<[1], [0], [0], [1], [0, 0, 1, 1], [], []>} : vector<1x32xf32>, vector<32x8xf32>, vector<1x8xf32> -> vector<1x8xf32>
    %103 = arith.addf %99, %102 : vector<1x8xf32>
    %104 = vector.extract_strided_slice %94 {offsets = [2, 0], sizes = [1, 32], strides = [1, 1]} : vector<16x32xf32> to vector<1x32xf32>
    %105 = vector.extract_strided_slice %16 {offsets = [64, 0], sizes = [32, 8], strides = [1, 1]} : vector<512x8xf32> to vector<32x8xf32>
    %cst_41 = arith.constant dense<0.000000e+00> : vector<1x8xf32>
    %106 = tpu.matmul %104, %105, %cst_41 {dimension_numbers = #tpu.dot_dimension_numbers<[1], [0], [0], [1], [0, 0, 1, 1], [], []>} : vector<1x32xf32>, vector<32x8xf32>, vector<1x8xf32> -> vector<1x8xf32>
    %107 = arith.addf %103, %106 : vector<1x8xf32>
    %108 = vector.extract_strided_slice %94 {offsets = [3, 0], sizes = [1, 32], strides = [1, 1]} : vector<16x32xf32> to vector<1x32xf32>
    %109 = vector.extract_strided_slice %16 {offsets = [96, 0], sizes = [32, 8], strides = [1, 1]} : vector<512x8xf32> to vector<32x8xf32>
    %cst_42 = arith.constant dense<0.000000e+00> : vector<1x8xf32>
    %110 = tpu.matmul %108, %109, %cst_42 {dimension_numbers = #tpu.dot_dimension_numbers<[1], [0], [0], [1], [0, 0, 1, 1], [], []>} : vector<1x32xf32>, vector<32x8xf32>, vector<1x8xf32> -> vector<1x8xf32>
    %111 = arith.addf %107, %110 : vector<1x8xf32>
    %112 = vector.extract_strided_slice %94 {offsets = [4, 0], sizes = [1, 32], strides = [1, 1]} : vector<16x32xf32> to vector<1x32xf32>
    %113 = vector.extract_strided_slice %16 {offsets = [128, 0], sizes = [32, 8], strides = [1, 1]} : vector<512x8xf32> to vector<32x8xf32>
    %cst_43 = arith.constant dense<0.000000e+00> : vector<1x8xf32>
    %114 = tpu.matmul %112, %113, %cst_43 {dimension_numbers = #tpu.dot_dimension_numbers<[1], [0], [0], [1], [0, 0, 1, 1], [], []>} : vector<1x32xf32>, vector<32x8xf32>, vector<1x8xf32> -> vector<1x8xf32>
    %115 = arith.addf %111, %114 : vector<1x8xf32>
    %116 = vector.extract_strided_slice %94 {offsets = [5, 0], sizes = [1, 32], strides = [1, 1]} : vector<16x32xf32> to vector<1x32xf32>
    %117 = vector.extract_strided_slice %16 {offsets = [160, 0], sizes = [32, 8], strides = [1, 1]} : vector<512x8xf32> to vector<32x8xf32>
    %cst_44 = arith.constant dense<0.000000e+00> : vector<1x8xf32>
    %118 = tpu.matmul %116, %117, %cst_44 {dimension_numbers = #tpu.dot_dimension_numbers<[1], [0], [0], [1], [0, 0, 1, 1], [], []>} : vector<1x32xf32>, vector<32x8xf32>, vector<1x8xf32> -> vector<1x8xf32>
    %119 = arith.addf %115, %118 : vector<1x8xf32>
    %120 = vector.extract_strided_slice %94 {offsets = [6, 0], sizes = [1, 32], strides = [1, 1]} : vector<16x32xf32> to vector<1x32xf32>
    %121 = vector.extract_strided_slice %16 {offsets = [192, 0], sizes = [32, 8], strides = [1, 1]} : vector<512x8xf32> to vector<32x8xf32>
    %cst_45 = arith.constant dense<0.000000e+00> : vector<1x8xf32>
    %122 = tpu.matmul %120, %121, %cst_45 {dimension_numbers = #tpu.dot_dimension_numbers<[1], [0], [0], [1], [0, 0, 1, 1], [], []>} : vector<1x32xf32>, vector<32x8xf32>, vector<1x8xf32> -> vector<1x8xf32>
    %123 = arith.addf %119, %122 : vector<1x8xf32>
    %124 = vector.extract_strided_slice %94 {offsets = [7, 0], sizes = [1, 32], strides = [1, 1]} : vector<16x32xf32> to vector<1x32xf32>
    %125 = vector.extract_strided_slice %16 {offsets = [224, 0], sizes = [32, 8], strides = [1, 1]} : vector<512x8xf32> to vector<32x8xf32>
    %cst_46 = arith.constant dense<0.000000e+00> : vector<1x8xf32>
    %126 = tpu.matmul %124, %125, %cst_46 {dimension_numbers = #tpu.dot_dimension_numbers<[1], [0], [0], [1], [0, 0, 1, 1], [], []>} : vector<1x32xf32>, vector<32x8xf32>, vector<1x8xf32> -> vector<1x8xf32>
    %127 = arith.addf %123, %126 : vector<1x8xf32>
    %128 = vector.extract_strided_slice %94 {offsets = [8, 0], sizes = [1, 32], strides = [1, 1]} : vector<16x32xf32> to vector<1x32xf32>
    %129 = vector.extract_strided_slice %16 {offsets = [256, 0], sizes = [32, 8], strides = [1, 1]} : vector<512x8xf32> to vector<32x8xf32>
    %cst_47 = arith.constant dense<0.000000e+00> : vector<1x8xf32>
    %130 = tpu.matmul %128, %129, %cst_47 {dimension_numbers = #tpu.dot_dimension_numbers<[1], [0], [0], [1], [0, 0, 1, 1], [], []>} : vector<1x32xf32>, vector<32x8xf32>, vector<1x8xf32> -> vector<1x8xf32>
    %131 = arith.addf %127, %130 : vector<1x8xf32>
    %132 = vector.extract_strided_slice %94 {offsets = [9, 0], sizes = [1, 32], strides = [1, 1]} : vector<16x32xf32> to vector<1x32xf32>
    %133 = vector.extract_strided_slice %16 {offsets = [288, 0], sizes = [32, 8], strides = [1, 1]} : vector<512x8xf32> to vector<32x8xf32>
    %cst_48 = arith.constant dense<0.000000e+00> : vector<1x8xf32>
    %134 = tpu.matmul %132, %133, %cst_48 {dimension_numbers = #tpu.dot_dimension_numbers<[1], [0], [0], [1], [0, 0, 1, 1], [], []>} : vector<1x32xf32>, vector<32x8xf32>, vector<1x8xf32> -> vector<1x8xf32>
    %135 = arith.addf %131, %134 : vector<1x8xf32>
    %136 = vector.extract_strided_slice %94 {offsets = [10, 0], sizes = [1, 32], strides = [1, 1]} : vector<16x32xf32> to vector<1x32xf32>
    %137 = vector.extract_strided_slice %16 {offsets = [320, 0], sizes = [32, 8], strides = [1, 1]} : vector<512x8xf32> to vector<32x8xf32>
    %cst_49 = arith.constant dense<0.000000e+00> : vector<1x8xf32>
    %138 = tpu.matmul %136, %137, %cst_49 {dimension_numbers = #tpu.dot_dimension_numbers<[1], [0], [0], [1], [0, 0, 1, 1], [], []>} : vector<1x32xf32>, vector<32x8xf32>, vector<1x8xf32> -> vector<1x8xf32>
    %139 = arith.addf %135, %138 : vector<1x8xf32>
    %140 = vector.extract_strided_slice %94 {offsets = [11, 0], sizes = [1, 32], strides = [1, 1]} : vector<16x32xf32> to vector<1x32xf32>
    %141 = vector.extract_strided_slice %16 {offsets = [352, 0], sizes = [32, 8], strides = [1, 1]} : vector<512x8xf32> to vector<32x8xf32>
    %cst_50 = arith.constant dense<0.000000e+00> : vector<1x8xf32>
    %142 = tpu.matmul %140, %141, %cst_50 {dimension_numbers = #tpu.dot_dimension_numbers<[1], [0], [0], [1], [0, 0, 1, 1], [], []>} : vector<1x32xf32>, vector<32x8xf32>, vector<1x8xf32> -> vector<1x8xf32>
    %143 = arith.addf %139, %142 : vector<1x8xf32>
    %144 = vector.extract_strided_slice %94 {offsets = [12, 0], sizes = [1, 32], strides = [1, 1]} : vector<16x32xf32> to vector<1x32xf32>
    %145 = vector.extract_strided_slice %16 {offsets = [384, 0], sizes = [32, 8], strides = [1, 1]} : vector<512x8xf32> to vector<32x8xf32>
    %cst_51 = arith.constant dense<0.000000e+00> : vector<1x8xf32>
    %146 = tpu.matmul %144, %145, %cst_51 {dimension_numbers = #tpu.dot_dimension_numbers<[1], [0], [0], [1], [0, 0, 1, 1], [], []>} : vector<1x32xf32>, vector<32x8xf32>, vector<1x8xf32> -> vector<1x8xf32>
    %147 = arith.addf %143, %146 : vector<1x8xf32>
    %148 = vector.extract_strided_slice %94 {offsets = [13, 0], sizes = [1, 32], strides = [1, 1]} : vector<16x32xf32> to vector<1x32xf32>
    %149 = vector.extract_strided_slice %16 {offsets = [416, 0], sizes = [32, 8], strides = [1, 1]} : vector<512x8xf32> to vector<32x8xf32>
    %cst_52 = arith.constant dense<0.000000e+00> : vector<1x8xf32>
    %150 = tpu.matmul %148, %149, %cst_52 {dimension_numbers = #tpu.dot_dimension_numbers<[1], [0], [0], [1], [0, 0, 1, 1], [], []>} : vector<1x32xf32>, vector<32x8xf32>, vector<1x8xf32> -> vector<1x8xf32>
    %151 = arith.addf %147, %150 : vector<1x8xf32>
    %152 = vector.extract_strided_slice %94 {offsets = [14, 0], sizes = [1, 32], strides = [1, 1]} : vector<16x32xf32> to vector<1x32xf32>
    %153 = vector.extract_strided_slice %16 {offsets = [448, 0], sizes = [32, 8], strides = [1, 1]} : vector<512x8xf32> to vector<32x8xf32>
    %cst_53 = arith.constant dense<0.000000e+00> : vector<1x8xf32>
    %154 = tpu.matmul %152, %153, %cst_53 {dimension_numbers = #tpu.dot_dimension_numbers<[1], [0], [0], [1], [0, 0, 1, 1], [], []>} : vector<1x32xf32>, vector<32x8xf32>, vector<1x8xf32> -> vector<1x8xf32>
    %155 = arith.addf %151, %154 : vector<1x8xf32>
    %156 = vector.extract_strided_slice %94 {offsets = [15, 0], sizes = [1, 32], strides = [1, 1]} : vector<16x32xf32> to vector<1x32xf32>
    %157 = vector.extract_strided_slice %16 {offsets = [480, 0], sizes = [32, 8], strides = [1, 1]} : vector<512x8xf32> to vector<32x8xf32>
    %cst_54 = arith.constant dense<0.000000e+00> : vector<1x8xf32>
    %158 = tpu.matmul %156, %157, %cst_54 {dimension_numbers = #tpu.dot_dimension_numbers<[1], [0], [0], [1], [0, 0, 1, 1], [], []>} : vector<1x32xf32>, vector<32x8xf32>, vector<1x8xf32> -> vector<1x8xf32>
    %159 = arith.addf %155, %158 : vector<1x8xf32>
    %160 = tpu.concatenate %88, %159 in 0 : vector<1x8xf32>, vector<1x8xf32> -> vector<2x8xf32>
    %c0_55 = arith.constant 0 : index
    %c0_56 = arith.constant 0 : index
    %161 = vector.load %arg7[%c0_55, %c0_56] : memref<1x8xf32, #tpu.memory_space<vmem>>, vector<1x8xf32>
    %162 = vector.broadcast %161 : vector<1x8xf32> to vector<2x8xf32>
    %163 = arith.addf %160, %162 : vector<2x8xf32>
    %c0_57 = arith.constant 0 : index
    %c0_58 = arith.constant 0 : index
    %164 = vector.load %arg8[%c0_57, %c0_58] : memref<2x8xf32, #tpu.memory_space<vmem>>, vector<2x8xf32>
    tpu.vector_store %arg8[%c0_57, %c0_58], %163 {strides = array<i32>} : memref<2x8xf32, #tpu.memory_space<vmem>>, vector<2x8xf32>,
    return
  }
}

</mosaic_0001>

<llo_original>
// kernel: stgcn_forward.1
$region0: #{stgcn_forward.1}
  #allocation0 [shape = 'u32[]', space=smem, size = 0x4, offset = 0x4, fixed_abs, tag = 'smem constant byte address 0x4 - core index']
  #allocation1 [shape = 'u32[144,128]{1,0:T(1,128)}', space=vmem, size = 0x12000, scoped, tag = 'internal scratch']
  %s0 = inlined_call_operand.vmem [shape: f32[32,4], index: 0, kind: input, shape index: {}]
  %s1 = inlined_call_operand.vmem [shape: f32[16,16], index: 1, kind: input, shape index: {}]
  %s2 = inlined_call_operand.vmem [shape: f32[4,32], index: 2, kind: input, shape index: {}]
  %s3 = inlined_call_operand.vmem [shape: f32[1,32], index: 3, kind: input, shape index: {}]
  %s4 = inlined_call_operand.vmem [shape: f32[32,32], index: 4, kind: input, shape index: {}]
  %s5 = inlined_call_operand.vmem [shape: f32[1,32], index: 5, kind: input, shape index: {}]
  %s6 = inlined_call_operand.vmem [shape: f32[512,8], index: 6, kind: input, shape index: {}]
  %s7 = inlined_call_operand.vmem [shape: f32[1,8], index: 7, kind: input, shape index: {}]
  %s8 = inlined_call_operand.hbm [shape: f32[2,8], index: 8, kind: output, shape index: {}]
  %s9 = sld [smem:[#allocation0]]
  $region42: #{stgcn_forward.1} parent=0
    _
  %s11 = ssub.s32 1, %s9
  %s12 = scalar_select 0, %s11, %s9
  $region1: #{stgcn_forward.1} parent=0
    #allocation2 [shape = 'u8[1024]{0}', space=vmem, size = 0x400, scoped, tag = 'output window, operand 0, single buffered']
    #allocation3 [shape = 's32[1]{0}', space=sflag, size = 0x4, scoped, tag = 'scoped memory for stgcn_forward.1']
    %13 = vsyncpa [#allocation3], 0
    // Predicated region
    $region2: #{stgcn_forward.1} parent=1 // pred_check
      _
    $region3: #{stgcn_forward.1} parent=1 // pred_check_branch
      %15 = sbr.rel (0) target = $region5
    $region4: #{stgcn_forward.1} parent=1 // pred_region
      _
    $region5: #{stgcn_forward.1} parent=1 // pred_fallthru
      _
    // Predicated region
    $region6: #{stgcn_forward.1} parent=1 // pred_check
      _
    $region7: #{stgcn_forward.1} parent=1 // pred_check_branch
      %17 = sbr.rel (0) target = $region9
    $region8: #{stgcn_forward.1} parent=1 // pred_region
      _
    $region9: #{stgcn_forward.1} parent=1 // pred_fallthru
      _
    // Predicated region
    $region10: #{stgcn_forward.1} parent=1 // pred_check
      _
    $region11: #{stgcn_forward.1} parent=1 // pred_check_branch
      %19 = sbr.rel (0) target = $region13
    $region12: #{stgcn_forward.1} parent=1 // pred_region
      _
    $region13: #{stgcn_forward.1} parent=1 // pred_fallthru
      _
    // Predicated region
    $region14: #{stgcn_forward.1} parent=1 // pred_check
      _
    $region15: #{stgcn_forward.1} parent=1 // pred_check_branch
      %21 = sbr.rel (0) target = $region17
    $region16: #{stgcn_forward.1} parent=1 // pred_region
      _
    $region17: #{stgcn_forward.1} parent=1 // pred_fallthru
      _
    // Predicated region
    $region18: #{stgcn_forward.1} parent=1 // pred_check
      _
    $region19: #{stgcn_forward.1} parent=1 // pred_check_branch
      %23 = sbr.rel (0) target = $region21
    $region20: #{stgcn_forward.1} parent=1 // pred_region
      _
    $region21: #{stgcn_forward.1} parent=1 // pred_fallthru
      _
    // Predicated region
    $region22: #{stgcn_forward.1} parent=1 // pred_check
      _
    $region23: #{stgcn_forward.1} parent=1 // pred_check_branch
      %25 = sbr.rel (0) target = $region25
    $region24: #{stgcn_forward.1} parent=1 // pred_region
      _
    $region25: #{stgcn_forward.1} parent=1 // pred_fallthru
      _
    // Predicated region
    $region26: #{stgcn_forward.1} parent=1 // pred_check
      _
    $region27: #{stgcn_forward.1} parent=1 // pred_check_branch
      %27 = sbr.rel (0) target = $region29
    $region28: #{stgcn_forward.1} parent=1 // pred_region
      _
    $region29: #{stgcn_forward.1} parent=1 // pred_fallthru
      _
    // Predicated region
    $region30: #{stgcn_forward.1} parent=1 // pred_check
      _
    $region31: #{stgcn_forward.1} parent=1 // pred_check_branch
      %29 = sbr.rel (0) target = $region33
    $region32: #{stgcn_forward.1} parent=1 // pred_region
      _
    $region33: #{stgcn_forward.1} parent=1 // pred_fallthru
      _
    %v30 = vld [vmem:[%s1] sm:$0xff]
    %v31 = vld [vmem:[%s1 + $0x8] sm:$0xff]
    %v32 = vld [vmem:[%s0] sm:$0xff]
    %v33 = vld [vmem:[%s0 + $0x8] sm:$0xff]
    %v34 = vld [vmem:[%s0 + $0x10] sm:$0xff]
    %v35 = vld [vmem:[%s0 + $0x18] sm:$0xff]
    %v36 = vld [vmem:[%s2] sm:$0xf]
    %vm37 = vcmask 31744
    %v39 = vsel %vm37, %v32, 0
    %v42 = vsel %vm37, %v33, 0
    %v45 = vsel %vm37, %v34, 0
    %v48 = vsel %vm37, %v35, 0
    %vm50 = vcmask 1043456
    %v52 = vsel %vm50, %v36, 0
    %54 = vmatprep.subr.mxu0 0.0
    %55 = vmatpush1.msra.mxu0 %v52
    %56 = vmatprep.subr.mxu0 0.0
    %57 = vmatpush1.msra.mxu0 0.0
    %58 = vmatprep.subr.mxu0 0.0
    %59 = vmatpush1.msra.mxu0 0.0
    %60 = vmatprep.subr.mxu0 0.0
    %61 = vmatpush1.msra.mxu0 0.0
    %62 = vmatprep.subr.mxu0 0.0
    %63 = vmatpush1.msra.mxu0 0.0
    %64 = vmatprep.subr.mxu0 0.0
    %65 = vmatpush1.msra.mxu0 0.0
    %66 = vmatprep.subr.mxu0 0.0
    %67 = vmatpush1.msra.mxu0 0.0
    %68 = vmatprep.subr.mxu0 0.0
    %69 = vmatpush1.msra.mxu0 0.0
    %70 = vmatprep.subr.mxu0 0.0
    %71 = vmatpush1.msra.mxu0 0.0
    %72 = vmatprep.subr.mxu0 0.0
    %73 = vmatpush1.msra.mxu0 0.0
    %74 = vmatprep.subr.mxu0 0.0
    %75 = vmatpush1.msra.mxu0 0.0
    %76 = vmatprep.subr.mxu0 0.0
    %77 = vmatpush1.msra.mxu0 0.0
    %78 = vmatprep.subr.mxu0 0.0
    %79 = vmatpush1.msra.mxu0 0.0
    %80 = vmatprep.subr.mxu0 0.0
    %81 = vmatpush1.msra.mxu0 0.0
    %82 = vmatprep.subr.mxu0 0.0
    %83 = vmatpush1.msra.mxu0 0.0
    %84 = vmatprep.subr.mxu0 0.0
    %85 = vmatpush1.msra.mxu0 0.0
    %86 = vmatprep.subr.mxu0 0.0
    %87 = vmatpush1.msra.mxu0 0.0
    %88 = vmatprep.subr.mxu0 0.0
    %89 = vmatpush1.msra.mxu0 0.0
    %90 = vmatprep.subr.mxu0 0.0
    %91 = vmatpush1.msra.mxu0 0.0
    %92 = vmatprep.subr.mxu0 0.0
    %93 = vmatpush1.msra.mxu0 0.0
    %94 = vmatprep.subr.mxu0 0.0
    %95 = vmatpush1.msra.mxu0 0.0
    %96 = vmatprep.subr.mxu0 0.0
    %97 = vmatpush1.msra.mxu0 0.0
    %98 = vmatprep.subr.mxu0 0.0
    %99 = vmatpush1.msra.mxu0 0.0
    %100 = vmatprep.subr.mxu0 0.0
    %101 = vmatpush1.msra.mxu0 0.0
    %102 = vmatprep.subr.mxu0 0.0
    %103 = vmatpush1.msra.mxu0 0.0
    %104 = vmatprep.subr.mxu0 0.0
    %105 = vmatpush1.msra.mxu0 0.0
    %106 = vmatprep.subr.mxu0 0.0
    %107 = vmatpush1.msra.mxu0 0.0
    %108 = vmatprep.subr.mxu0 0.0
    %109 = vmatpush1.msra.mxu0 0.0
    %110 = vmatprep.subr.mxu0 0.0
    %111 = vmatpush1.msra.mxu0 0.0
    %112 = vmatprep.subr.mxu0 0.0
    %113 = vmatpush1.msra.mxu0 0.0
    %114 = vmatprep.subr.mxu0 0.0
    %115 = vmatpush1.msra.mxu0 0.0
    %116 = vmatprep.subr.mxu0 0.0
    %117 = vmatpush1.msra.mxu0 0.0
    %118 = vmatprep.mubr.f32.mxu0 0.0
    %119 = vmatmul.mubr.f32.gmra.mrb[0].mxu0 %v39
    %v120 = vpop.f32.mrb[0].mxu0
    %v121 = vadd.f32 0.0, %v120
    %v122 = vpop.f32.mrb[0].mxu0
    %123 = vmatprep.mubr.f32.mxu0 0.0
    %124 = vmatmul.mubr.f32.gmra.mrb[0].mxu0 %v42
    %v125 = vpop.f32.mrb[0].mxu0
    %v126 = vadd.f32 0.0, %v125
    %v127 = vpop.f32.mrb[0].mxu0
    %128 = vmatprep.mubr.f32.mxu0 0.0
    %129 = vmatmul.mubr.f32.gmra.mrb[0].mxu0 %v45
    %v130 = vpop.f32.mrb[0].mxu0
    %v131 = vadd.f32 0.0, %v130
    %v132 = vpop.f32.mrb[0].mxu0
    %133 = vmatprep.mubr.f32.mxu0 0.0
    %134 = vmatmul.mubr.f32.gmra.mrb[0].mxu0 %v48
    %v135 = vpop.f32.mrb[0].mxu0
    %v136 = vadd.f32 0.0, %v135
    %v137 = vpop.f32.mrb[0].mxu0
    %138 = vdwg.mxu0
    %vm139 = vcmask 130048
    %v141 = vsel %vm139, %v30, 0
    %v144 = vsel %vm139, %v31, 0
    %146 = vmatprep.subr.mxu0 0.0
    %147 = vmatpush1.msra.mxu0 %v121
    %148 = vmatprep.subr.mxu0 0.0
    %149 = vmatpush1.msra.mxu0 %v126
    %150 = vmatprep.subr.mxu0 0.0
    %151 = vmatpush1.msra.mxu0 0.0
    %152 = vmatprep.subr.mxu0 0.0
    %153 = vmatpush1.msra.mxu0 0.0
    %154 = vmatprep.subr.mxu0 0.0
    %155 = vmatpush1.msra.mxu0 0.0
    %156 = vmatprep.subr.mxu0 0.0
    %157 = vmatpush1.msra.mxu0 0.0
    %158 = vmatprep.subr.mxu0 0.0
    %159 = vmatpush1.msra.mxu0 0.0
    %160 = vmatprep.subr.mxu0 0.0
    %161 = vmatpush1.msra.mxu0 0.0
    %162 = vmatprep.subr.mxu0 0.0
    %163 = vmatpush1.msra.mxu0 0.0
    %164 = vmatprep.subr.mxu0 0.0
    %165 = vmatpush1.msra.mxu0 0.0
    %166 = vmatprep.subr.mxu0 0.0
    %167 = vmatpush1.msra.mxu0 0.0
    %168 = vmatprep.subr.mxu0 0.0
    %169 = vmatpush1.msra.mxu0 0.0
    %170 = vmatprep.subr.mxu0 0.0
    %171 = vmatpush1.msra.mxu0 0.0
    %172 = vmatprep.subr.mxu0 0.0
    %173 = vmatpush1.msra.mxu0 0.0
    %174 = vmatprep.subr.mxu0 0.0
    %175 = vmatpush1.msra.mxu0 0.0
    %176 = vmatprep.subr.mxu0 0.0
    %177 = vmatpush1.msra.mxu0 0.0
    %178 = vmatprep.subr.mxu0 0.0
    %179 = vmatpush1.msra.mxu0 0.0
    %180 = vmatprep.subr.mxu0 0.0
    %181 = vmatpush1.msra.mxu0 0.0
    %182 = vmatprep.subr.mxu0 0.0
    %183 = vmatpush1.msra.mxu0 0.0
    %184 = vmatprep.subr.mxu0 0.0
    %185 = vmatpush1.msra.mxu0 0.0
    %186 = vmatprep.subr.mxu0 0.0
    %187 = vmatpush1.msra.mxu0 0.0
    %188 = vmatprep.subr.mxu0 0.0
    %189 = vmatpush1.msra.mxu0 0.0
    %190 = vmatprep.subr.mxu0 0.0
    %191 = vmatpush1.msra.mxu0 0.0
    %192 = vmatprep.subr.mxu0 0.0
    %193 = vmatpush1.msra.mxu0 0.0
    %194 = vmatprep.subr.mxu0 0.0
    %195 = vmatpush1.msra.mxu0 0.0
    %196 = vmatprep.subr.mxu0 0.0
    %197 = vmatpush1.msra.mxu0 0.0
    %198 = vmatprep.subr.mxu0 0.0
    %199 = vmatpush1.msra.mxu0 0.0
    %200 = vmatprep.subr.mxu0 0.0
    %201 = vmatpush1.msra.mxu0 0.0
    %202 = vmatprep.subr.mxu0 0.0
    %203 = vmatpush1.msra.mxu0 0.0
    %204 = vmatprep.subr.mxu0 0.0
    %205 = vmatpush1.msra.mxu0 0.0
    %206 = vmatprep.subr.mxu0 0.0
    %207 = vmatpush1.msra.mxu0 0.0
    %208 = vmatprep.subr.mxu0 0.0
    %209 = vmatpush1.msra.mxu0 0.0
    %210 = vmatprep.mubr.f32.mxu0 0.0
    %211 = vmatmul.mubr.f32.gmra.mrb[0].mxu0 %v141
    %v212 = vpop.f32.mrb[0].mxu0
    %v213 = vadd.f32 0.0, %v212
    %v214 = vpop.f32.mrb[0].mxu0
    %215 = vmatprep.mubr.f32.mxu0 0.0
    %216 = vmatmul.mubr.f32.gmra.mrb[0].mxu0 %v144
    %v217 = vpop.f32.mrb[0].mxu0
    %v218 = vadd.f32 0.0, %v217
    %v219 = vpop.f32.mrb[0].mxu0
    %220 = vdwg.mxu0
    %221 = vmatprep.subr.mxu0 0.0
    %222 = vmatpush1.msra.mxu0 %v131
    %223 = vmatprep.subr.mxu0 0.0
    %224 = vmatpush1.msra.mxu0 %v136
    %225 = vmatprep.subr.mxu0 0.0
    %226 = vmatpush1.msra.mxu0 0.0
    %227 = vmatprep.subr.mxu0 0.0
    %228 = vmatpush1.msra.mxu0 0.0
    %229 = vmatprep.subr.mxu0 0.0
    %230 = vmatpush1.msra.mxu0 0.0
    %231 = vmatprep.subr.mxu0 0.0
    %232 = vmatpush1.msra.mxu0 0.0
    %233 = vmatprep.subr.mxu0 0.0
    %234 = vmatpush1.msra.mxu0 0.0
    %235 = vmatprep.subr.mxu0 0.0
    %236 = vmatpush1.msra.mxu0 0.0
    %237 = vmatprep.subr.mxu0 0.0
    %238 = vmatpush1.msra.mxu0 0.0
    %239 = vmatprep.subr.mxu0 0.0
    %240 = vmatpush1.msra.mxu0 0.0
    %241 = vmatprep.subr.mxu0 0.0
    %242 = vmatpush1.msra.mxu0 0.0
    %243 = vmatprep.subr.mxu0 0.0
    %244 = vmatpush1.msra.mxu0 0.0
    %245 = vmatprep.subr.mxu0 0.0
    %246 = vmatpush1.msra.mxu0 0.0
    %247 = vmatprep.subr.mxu0 0.0
    %248 = vmatpush1.msra.mxu0 0.0
    %249 = vmatprep.subr.mxu0 0.0
    %250 = vmatpush1.msra.mxu0 0.0
    %251 = vmatprep.subr.mxu0 0.0
    %252 = vmatpush1.msra.mxu0 0.0
    %253 = vmatprep.subr.mxu0 0.0
    %254 = vmatpush1.msra.mxu0 0.0
    %255 = vmatprep.subr.mxu0 0.0
    %256 = vmatpush1.msra.mxu0 0.0
    %257 = vmatprep.subr.mxu0 0.0
    %258 = vmatpush1.msra.mxu0 0.0
    %259 = vmatprep.subr.mxu0 0.0
    %260 = vmatpush1.msra.mxu0 0.0
    %261 = vmatprep.subr.mxu0 0.0
    %262 = vmatpush1.msra.mxu0 0.0
    %263 = vmatprep.subr.mxu0 0.0
    %264 = vmatpush1.msra.mxu0 0.0
    %265 = vmatprep.subr.mxu0 0.0
    %266 = vmatpush1.msra.mxu0 0.0
    %267 = vmatprep.subr.mxu0 0.0
    %268 = vmatpush1.msra.mxu0 0.0
    %269 = vmatprep.subr.mxu0 0.0
    %270 = vmatpush1.msra.mxu0 0.0
    %271 = vmatprep.subr.mxu0 0.0
    %272 = vmatpush1.msra.mxu0 0.0
    %273 = vmatprep.subr.mxu0 0.0
    %274 = vmatpush1.msra.mxu0 0.0
    %275 = vmatprep.subr.mxu0 0.0
    %276 = vmatpush1.msra.mxu0 0.0
    %277 = vmatprep.subr.mxu0 0.0
    %278 = vmatpush1.msra.mxu0 0.0
    %279 = vmatprep.subr.mxu0 0.0
    %280 = vmatpush1.msra.mxu0 0.0
    %281 = vmatprep.subr.mxu0 0.0
    %282 = vmatpush1.msra.mxu0 0.0
    %283 = vmatprep.subr.mxu0 0.0
    %284 = vmatpush1.msra.mxu0 0.0
    %285 = vmatprep.mubr.f32.mxu0 0.0
    %286 = vmatmul.mubr.f32.gmra.mrb[0].mxu0 %v141
    %v287 = vpop.f32.mrb[0].mxu0
    %v288 = vadd.f32 0.0, %v287
    %v289 = vpop.f32.mrb[0].mxu0
    %290 = vmatprep.mubr.f32.mxu0 0.0
    %291 = vmatmul.mubr.f32.gmra.mrb[0].mxu0 %v144
    %v292 = vpop.f32.mrb[0].mxu0
    %v293 = vadd.f32 0.0, %v292
    %v294 = vpop.f32.mrb[0].mxu0
    %295 = vdwg.mxu0
    %v296 = vld [vmem:[%s3] sm:$0x1]
    %v298 = vlaneseq
    %v299 = vshrl.u32 %v298, 7
    %v300 = vsub.s32 0, %v299
    %v301 = vrot.slane %v296, %v300
    %v303 = vadd.f32 %v213, %v301
    %v304 = vadd.f32 %v218, %v301
    %v305 = vadd.f32 %v288, %v301
    %v306 = vadd.f32 %v293, %v301
    %v307 = vmax.f32 %v303, 0.0
    %v308 = vmax.f32 %v304, 0.0
    %v309 = vmax.f32 %v305, 0.0
    %v310 = vmax.f32 %v306, 0.0
    %v311 = vld [vmem:[%s4] sm:$0xff]
    %v312 = vld [vmem:[%s4 + $0x8] sm:$0xff]
    %v313 = vld [vmem:[%s4 + $0x10] sm:$0xff]
    %v314 = vld [vmem:[%s4 + $0x18] sm:$0xff]
    %vm315 = vcmask 261120
    %v317 = vsel %vm315, %v307, 0
    %v320 = vsel %vm315, %v308, 0
    %v323 = vsel %vm315, %v309, 0
    %v326 = vsel %vm315, %v310, 0
    %328 = vmatprep.subr.mxu0 0.0
    %329 = vmatpush1.msra.mxu0 %v311
    %330 = vmatprep.subr.mxu0 0.0
    %331 = vmatpush1.msra.mxu0 %v312
    %332 = vmatprep.subr.mxu0 0.0
    %333 = vmatpush1.msra.mxu0 %v313
    %334 = vmatprep.subr.mxu0 0.0
    %335 = vmatpush1.msra.mxu0 %v314
    %336 = vmatprep.subr.mxu0 0.0
    %337 = vmatpush1.msra.mxu0 0.0
    %338 = vmatprep.subr.mxu0 0.0
    %339 = vmatpush1.msra.mxu0 0.0
    %340 = vmatprep.subr.mxu0 0.0
    %341 = vmatpush1.msra.mxu0 0.0
    %342 = vmatprep.subr.mxu0 0.0
    %343 = vmatpush1.msra.mxu0 0.0
    %344 = vmatprep.subr.mxu0 0.0
    %345 = vmatpush1.msra.mxu0 0.0
    %346 = vmatprep.subr.mxu0 0.0
    %347 = vmatpush1.msra.mxu0 0.0
    %348 = vmatprep.subr.mxu0 0.0
    %349 = vmatpush1.msra.mxu0 0.0
    %350 = vmatprep.subr.mxu0 0.0
    %351 = vmatpush1.msra.mxu0 0.0
    %352 = vmatprep.subr.mxu0 0.0
    %353 = vmatpush1.msra.mxu0 0.0
    %354 = vmatprep.subr.mxu0 0.0
    %355 = vmatpush1.msra.mxu0 0.0
    %356 = vmatprep.subr.mxu0 0.0
    %357 = vmatpush1.msra.mxu0 0.0
    %358 = vmatprep.subr.mxu0 0.0
    %359 = vmatpush1.msra.mxu0 0.0
    %360 = vmatprep.subr.mxu0 0.0
    %361 = vmatpush1.msra.mxu0 0.0
    %362 = vmatprep.subr.mxu0 0.0
    %363 = vmatpush1.msra.mxu0 0.0
    %364 = vmatprep.subr.mxu0 0.0
    %365 = vmatpush1.msra.mxu0 0.0
    %366 = vmatprep.subr.mxu0 0.0
    %367 = vmatpush1.msra.mxu0 0.0
    %368 = vmatprep.subr.mxu0 0.0
    %369 = vmatpush1.msra.mxu0 0.0
    %370 = vmatprep.subr.mxu0 0.0
    %371 = vmatpush1.msra.mxu0 0.0
    %372 = vmatprep.subr.mxu0 0.0
    %373 = vmatpush1.msra.mxu0 0.0
    %374 = vmatprep.subr.mxu0 0.0
    %375 = vmatpush1.msra.mxu0 0.0
    %376 = vmatprep.subr.mxu0 0.0
    %377 = vmatpush1.msra.mxu0 0.0
    %378 = vmatprep.subr.mxu0 0.0
    %379 = vmatpush1.msra.mxu0 0.0
    %380 = vmatprep.subr.mxu0 0.0
    %381 = vmatpush1.msra.mxu0 0.0
    %382 = vmatprep.subr.mxu0 0.0
    %383 = vmatpush1.msra.mxu0 0.0
    %384 = vmatprep.subr.mxu0 0.0
    %385 = vmatpush1.msra.mxu0 0.0
    %386 = vmatprep.subr.mxu0 0.0
    %387 = vmatpush1.msra.mxu0 0.0
    %388 = vmatprep.subr.mxu0 0.0
    %389 = vmatpush1.msra.mxu0 0.0
    %390 = vmatprep.subr.mxu0 0.0
    %391 = vmatpush1.msra.mxu0 0.0
    %392 = vmatprep.mubr.f32.mxu0 0.0
    %393 = vmatmul.mubr.f32.gmra.mrb[0].mxu0 %v317
    %v394 = vpop.f32.mrb[0].mxu0
    %v395 = vadd.f32 0.0, %v394
    %v396 = vpop.f32.mrb[0].mxu0
    %397 = vmatprep.mubr.f32.mxu0 0.0
    %398 = vmatmul.mubr.f32.gmra.mrb[0].mxu0 %v320
    %v399 = vpop.f32.mrb[0].mxu0
    %v400 = vadd.f32 0.0, %v399
    %v401 = vpop.f32.mrb[0].mxu0
    %402 = vmatprep.mubr.f32.mxu0 0.0
    %403 = vmatmul.mubr.f32.gmra.mrb[0].mxu0 %v323
    %v404 = vpop.f32.mrb[0].mxu0
    %v405 = vadd.f32 0.0, %v404
    %v406 = vpop.f32.mrb[0].mxu0
    %407 = vmatprep.mubr.f32.mxu0 0.0
    %408 = vmatmul.mubr.f32.gmra.mrb[0].mxu0 %v326
    %v409 = vpop.f32.mrb[0].mxu0
    %v410 = vadd.f32 0.0, %v409
    %v411 = vpop.f32.mrb[0].mxu0
    %412 = vdwg.mxu0
    %v413 = vld [vmem:[%s6] sm:$0xff]
    %v414 = vld [vmem:[%s6 + $0x8] sm:$0xff]
    %v415 = vld [vmem:[%s6 + $0x10] sm:$0xff]
    %v416 = vld [vmem:[%s6 + $0x18] sm:$0xff]
    %v417 = vld [vmem:[%s6 + $0x20] sm:$0xff]
    %v418 = vld [vmem:[%s6 + $0x28] sm:$0xff]
    %v419 = vld [vmem:[%s6 + $0x30] sm:$0xff]
    %v420 = vld [vmem:[%s6 + $0x38] sm:$0xff]
    %v421 = vld [vmem:[%s6 + $0x40] sm:$0xff]
    %v422 = vld [vmem:[%s6 + $0x48] sm:$0xff]
    %v423 = vld [vmem:[%s6 + $0x50] sm:$0xff]
    %v424 = vld [vmem:[%s6 + $0x58] sm:$0xff]
    %v425 = vld [vmem:[%s6 + $0x60] sm:$0xff]
    %v426 = vld [vmem:[%s6 + $0x68] sm:$0xff]
    %v427 = vld [vmem:[%s6 + $0x70] sm:$0xff]
    %v428 = vld [vmem:[%s6 + $0x78] sm:$0xff]
    %v429 = vld [vmem:[%s6 + $0x80] sm:$0xff]
    %v430 = vld [vmem:[%s6 + $0x88] sm:$0xff]
    %v431 = vld [vmem:[%s6 + $0x90] sm:$0xff]
    %v432 = vld [vmem:[%s6 + $0x98] sm:$0xff]
    %v433 = vld [vmem:[%s6 + $0xa0] sm:$0xff]
    %v434 = vld [vmem:[%s6 + $0xa8] sm:$0xff]
    %v435 = vld [vmem:[%s6 + $0xb0] sm:$0xff]
    %v436 = vld [vmem:[%s6 + $0xb8] sm:$0xff]
    %v437 = vld [vmem:[%s6 + $0xc0] sm:$0xff]
    %v438 = vld [vmem:[%s6 + $0xc8] sm:$0xff]
    %v439 = vld [vmem:[%s6 + $0xd0] sm:$0xff]
    %v440 = vld [vmem:[%s6 + $0xd8] sm:$0xff]
    %v441 = vld [vmem:[%s6 + $0xe0] sm:$0xff]
    %v442 = vld [vmem:[%s6 + $0xe8] sm:$0xff]
    %v443 = vld [vmem:[%s6 + $0xf0] sm:$0xff]
    %v444 = vld [vmem:[%s6 + $0xf8] sm:$0xff]
    %v445 = vld [vmem:[%s6 + $0x100] sm:$0xff]
    %v446 = vld [vmem:[%s6 + $0x108] sm:$0xff]
    %v447 = vld [vmem:[%s6 + $0x110] sm:$0xff]
    %v448 = vld [vmem:[%s6 + $0x118] sm:$0xff]
    %v449 = vld [vmem:[%s6 + $0x120] sm:$0xff]
    %v450 = vld [vmem:[%s6 + $0x128] sm:$0xff]
    %v451 = vld [vmem:[%s6 + $0x130] sm:$0xff]
    %v452 = vld [vmem:[%s6 + $0x138] sm:$0xff]
    %v453 = vld [vmem:[%s6 + $0x140] sm:$0xff]
    %v454 = vld [vmem:[%s6 + $0x148] sm:$0xff]
    %v455 = vld [vmem:[%s6 + $0x150] sm:$0xff]
    %v456 = vld [vmem:[%s6 + $0x158] sm:$0xff]
    %v457 = vld [vmem:[%s6 + $0x160] sm:$0xff]
    %v458 = vld [vmem:[%s6 + $0x168] sm:$0xff]
    %v459 = vld [vmem:[%s6 + $0x170] sm:$0xff]
    %v460 = vld [vmem:[%s6 + $0x178] sm:$0xff]
    %v461 = vld [vmem:[%s6 + $0x180] sm:$0xff]
    %v462 = vld [vmem:[%s6 + $0x188] sm:$0xff]
    %v463 = vld [vmem:[%s6 + $0x190] sm:$0xff]
    %v464 = vld [vmem:[%s6 + $0x198] sm:$0xff]
    %v465 = vld [vmem:[%s6 + $0x1a0] sm:$0xff]
    %v466 = vld [vmem:[%s6 + $0x1a8] sm:$0xff]
    %v467 = vld [vmem:[%s6 + $0x1b0] sm:$0xff]
    %v468 = vld [vmem:[%s6 + $0x1b8] sm:$0xff]
    %v469 = vld [vmem:[%s6 + $0x1c0] sm:$0xff]
    %v470 = vld [vmem:[%s6 + $0x1c8] sm:$0xff]
    %v471 = vld [vmem:[%s6 + $0x1d0] sm:$0xff]
    %v472 = vld [vmem:[%s6 + $0x1d8] sm:$0xff]
    %v473 = vld [vmem:[%s6 + $0x1e0] sm:$0xff]
    %v474 = vld [vmem:[%s6 + $0x1e8] sm:$0xff]
    %v475 = vld [vmem:[%s6 + $0x1f0] sm:$0xff]
    %v476 = vld [vmem:[%s6 + $0x1f8] sm:$0xff]
    %v477 = vld [vmem:[%s5] sm:$0x1]
    %v479 = vlaneseq
    %v480 = vshrl.u32 %v479, 7
    %v481 = vsub.s32 0, %v480
    %v482 = vrot.slane %v477, %v481
    %484 = vmatprep.subr.mxu0 0.0
    %485 = vmatpush1.msra.mxu0 %v395
    %486 = vmatprep.subr.mxu0 0.0
    %487 = vmatpush1.msra.mxu0 %v400
    %488 = vmatprep.subr.mxu0 0.0
    %489 = vmatpush1.msra.mxu0 0.0
    %490 = vmatprep.subr.mxu0 0.0
    %491 = vmatpush1.msra.mxu0 0.0
    %492 = vmatprep.subr.mxu0 0.0
    %493 = vmatpush1.msra.mxu0 0.0
    %494 = vmatprep.subr.mxu0 0.0
    %495 = vmatpush1.msra.mxu0 0.0
    %496 = vmatprep.subr.mxu0 0.0
    %497 = vmatpush1.msra.mxu0 0.0
    %498 = vmatprep.subr.mxu0 0.0
    %499 = vmatpush1.msra.mxu0 0.0
    %500 = vmatprep.subr.mxu0 0.0
    %501 = vmatpush1.msra.mxu0 0.0
    %502 = vmatprep.subr.mxu0 0.0
    %503 = vmatpush1.msra.mxu0 0.0
    %504 = vmatprep.subr.mxu0 0.0
    %505 = vmatpush1.msra.mxu0 0.0
    %506 = vmatprep.subr.mxu0 0.0
    %507 = vmatpush1.msra.mxu0 0.0
    %508 = vmatprep.subr.mxu0 0.0
    %509 = vmatpush1.msra.mxu0 0.0
    %510 = vmatprep.subr.mxu0 0.0
    %511 = vmatpush1.msra.mxu0 0.0
    %512 = vmatprep.subr.mxu0 0.0
    %513 = vmatpush1.msra.mxu0 0.0
    %514 = vmatprep.subr.mxu0 0.0
    %515 = vmatpush1.msra.mxu0 0.0
    %516 = vmatprep.subr.mxu0 0.0
    %517 = vmatpush1.msra.mxu0 0.0
    %518 = vmatprep.subr.mxu0 0.0
    %519 = vmatpush1.msra.mxu0 0.0
    %520 = vmatprep.subr.mxu0 0.0
    %521 = vmatpush1.msra.mxu0 0.0
    %522 = vmatprep.subr.mxu0 0.0
    %523 = vmatpush1.msra.mxu0 0.0
    %524 = vmatprep.subr.mxu0 0.0
    %525 = vmatpush1.msra.mxu0 0.0
    %526 = vmatprep.subr.mxu0 0.0
    %527 = vmatpush1.msra.mxu0 0.0
    %528 = vmatprep.subr.mxu0 0.0
    %529 = vmatpush1.msra.mxu0 0.0
    %530 = vmatprep.subr.mxu0 0.0
    %531 = vmatpush1.msra.mxu0 0.0
    %532 = vmatprep.subr.mxu0 0.0
    %533 = vmatpush1.msra.mxu0 0.0
    %534 = vmatprep.subr.mxu0 0.0
    %535 = vmatpush1.msra.mxu0 0.0
    %536 = vmatprep.subr.mxu0 0.0
    %537 = vmatpush1.msra.mxu0 0.0
    %538 = vmatprep.subr.mxu0 0.0
    %539 = vmatpush1.msra.mxu0 0.0
    %540 = vmatprep.subr.mxu0 0.0
    %541 = vmatpush1.msra.mxu0 0.0
    %542 = vmatprep.subr.mxu0 0.0
    %543 = vmatpush1.msra.mxu0 0.0
    %544 = vmatprep.subr.mxu0 0.0
    %545 = vmatpush1.msra.mxu0 0.0
    %546 = vmatprep.subr.mxu0 0.0
    %547 = vmatpush1.msra.mxu0 0.0
    %548 = vmatprep.mubr.f32.mxu0 0.0
    %549 = vmatmul.mubr.f32.gmra.mrb[0].mxu0 %v141
    %v550 = vpop.f32.mrb[0].mxu0
    %v551 = vadd.f32 %v482, %v550
    %v552 = vpop.f32.mrb[0].mxu0
    %553 = vmatprep.mubr.f32.mxu0 0.0
    %554 = vmatmul.mubr.f32.gmra.mrb[0].mxu0 %v144
    %v555 = vpop.f32.mrb[0].mxu0
    %v556 = vadd.f32 %v482, %v555
    %v557 = vpop.f32.mrb[0].mxu0
    %558 = vdwg.mxu0
    %v559 = vmax.f32 %v551, 0.0
    %v560 = vmax.f32 %v556, 0.0
    %v562 = vrot.slane %v559, 1
    %v563 = vsel %vm315, %v562, 0
    %565 = vmatprep.subr.mxu0 0.0
    %566 = vmatpush1.msra.mxu0 %v417
    %567 = vmatprep.subr.mxu0 0.0
    %568 = vmatpush1.msra.mxu0 %v418
    %569 = vmatprep.subr.mxu0 0.0
    %570 = vmatpush1.msra.mxu0 %v419
    %571 = vmatprep.subr.mxu0 0.0
    %572 = vmatpush1.msra.mxu0 %v420
    %573 = vmatprep.subr.mxu0 0.0
    %574 = vmatpush1.msra.mxu0 0.0
    %575 = vmatprep.subr.mxu0 0.0
    %576 = vmatpush1.msra.mxu0 0.0
    %577 = vmatprep.subr.mxu0 0.0
    %578 = vmatpush1.msra.mxu0 0.0
    %579 = vmatprep.subr.mxu0 0.0
    %580 = vmatpush1.msra.mxu0 0.0
    %581 = vmatprep.subr.mxu0 0.0
    %582 = vmatpush1.msra.mxu0 0.0
    %583 = vmatprep.subr.mxu0 0.0
    %584 = vmatpush1.msra.mxu0 0.0
    %585 = vmatprep.subr.mxu0 0.0
    %586 = vmatpush1.msra.mxu0 0.0
    %587 = vmatprep.subr.mxu0 0.0
    %588 = vmatpush1.msra.mxu0 0.0
    %589 = vmatprep.subr.mxu0 0.0
    %590 = vmatpush1.msra.mxu0 0.0
    %591 = vmatprep.subr.mxu0 0.0
    %592 = vmatpush1.msra.mxu0 0.0
    %593 = vmatprep.subr.mxu0 0.0
    %594 = vmatpush1.msra.mxu0 0.0
    %595 = vmatprep.subr.mxu0 0.0
    %596 = vmatpush1.msra.mxu0 0.0
    %597 = vmatprep.subr.mxu0 0.0
    %598 = vmatpush1.msra.mxu0 0.0
    %599 = vmatprep.subr.mxu0 0.0
    %600 = vmatpush1.msra.mxu0 0.0
    %601 = vmatprep.subr.mxu0 0.0
    %602 = vmatpush1.msra.mxu0 0.0
    %603 = vmatprep.subr.mxu0 0.0
    %604 = vmatpush1.msra.mxu0 0.0
    %605 = vmatprep.subr.mxu0 0.0
    %606 = vmatpush1.msra.mxu0 0.0
    %607 = vmatprep.subr.mxu0 0.0
    %608 = vmatpush1.msra.mxu0 0.0
    %609 = vmatprep.subr.mxu0 0.0
    %610 = vmatpush1.msra.mxu0 0.0
    %611 = vmatprep.subr.mxu0 0.0
    %612 = vmatpush1.msra.mxu0 0.0
    %613 = vmatprep.subr.mxu0 0.0
    %614 = vmatpush1.msra.mxu0 0.0
    %615 = vmatprep.subr.mxu0 0.0
    %616 = vmatpush1.msra.mxu0 0.0
    %617 = vmatprep.subr.mxu0 0.0
    %618 = vmatpush1.msra.mxu0 0.0
    %619 = vmatprep.subr.mxu0 0.0
    %620 = vmatpush1.msra.mxu0 0.0
    %621 = vmatprep.subr.mxu0 0.0
    %622 = vmatpush1.msra.mxu0 0.0
    %623 = vmatprep.subr.mxu0 0.0
    %624 = vmatpush1.msra.mxu0 0.0
    %625 = vmatprep.subr.mxu0 0.0
    %626 = vmatpush1.msra.mxu0 0.0
    %627 = vmatprep.subr.mxu0 0.0
    %628 = vmatpush1.msra.mxu0 0.0
    %629 = vmatprep.mubr.f32.mxu0 0.0
    %630 = vmatmul.mubr.f32.gmra.mrb[0].mxu0 %v563
    %v631 = vpop.f32.mrb[0].mxu0
    %v632 = vadd.f32 0.0, %v631
    %v633 = vpop.f32.mrb[0].mxu0
    %634 = vdwg.mxu0
    %v635 = vsel %vm315, %v559, 0
    %637 = vmatprep.subr.mxu0 0.0
    %638 = vmatpush1.msra.mxu0 %v413
    %639 = vmatprep.subr.mxu0 0.0
    %640 = vmatpush1.msra.mxu0 %v414
    %641 = vmatprep.subr.mxu0 0.0
    %642 = vmatpush1.msra.mxu0 %v415
    %643 = vmatprep.subr.mxu0 0.0
    %644 = vmatpush1.msra.mxu0 %v416
    %645 = vmatprep.subr.mxu0 0.0
    %646 = vmatpush1.msra.mxu0 0.0
    %647 = vmatprep.subr.mxu0 0.0
    %648 = vmatpush1.msra.mxu0 0.0
    %649 = vmatprep.subr.mxu0 0.0
    %650 = vmatpush1.msra.mxu0 0.0
    %651 = vmatprep.subr.mxu0 0.0
    %652 = vmatpush1.msra.mxu0 0.0
    %653 = vmatprep.subr.mxu0 0.0
    %654 = vmatpush1.msra.mxu0 0.0
    %655 = vmatprep.subr.mxu0 0.0
    %656 = vmatpush1.msra.mxu0 0.0
    %657 = vmatprep.subr.mxu0 0.0
    %658 = vmatpush1.msra.mxu0 0.0
    %659 = vmatprep.subr.mxu0 0.0
    %660 = vmatpush1.msra.mxu0 0.0
    %661 = vmatprep.subr.mxu0 0.0
    %662 = vmatpush1.msra.mxu0 0.0
    %663 = vmatprep.subr.mxu0 0.0
    %664 = vmatpush1.msra.mxu0 0.0
    %665 = vmatprep.subr.mxu0 0.0
    %666 = vmatpush1.msra.mxu0 0.0
    %667 = vmatprep.subr.mxu0 0.0
    %668 = vmatpush1.msra.mxu0 0.0
    %669 = vmatprep.subr.mxu0 0.0
    %670 = vmatpush1.msra.mxu0 0.0
    %671 = vmatprep.subr.mxu0 0.0
    %672 = vmatpush1.msra.mxu0 0.0
    %673 = vmatprep.subr.mxu0 0.0
    %674 = vmatpush1.msra.mxu0 0.0
    %675 = vmatprep.subr.mxu0 0.0
    %676 = vmatpush1.msra.mxu0 0.0
    %677 = vmatprep.subr.mxu0 0.0
    %678 = vmatpush1.msra.mxu0 0.0
    %679 = vmatprep.subr.mxu0 0.0
    %680 = vmatpush1.msra.mxu0 0.0
    %681 = vmatprep.subr.mxu0 0.0
    %682 = vmatpush1.msra.mxu0 0.0
    %683 = vmatprep.subr.mxu0 0.0
    %684 = vmatpush1.msra.mxu0 0.0
    %685 = vmatprep.subr.mxu0 0.0
    %686 = vmatpush1.msra.mxu0 0.0
    %687 = vmatprep.subr.mxu0 0.0
    %688 = vmatpush1.msra.mxu0 0.0
    %689 = vmatprep.subr.mxu0 0.0
    %690 = vmatpush1.msra.mxu0 0.0
    %691 = vmatprep.subr.mxu0 0.0
    %692 = vmatpush1.msra.mxu0 0.0
    %693 = vmatprep.subr.mxu0 0.0
    %694 = vmatpush1.msra.mxu0 0.0
    %695 = vmatprep.subr.mxu0 0.0
    %696 = vmatpush1.msra.mxu0 0.0
    %697 = vmatprep.subr.mxu0 0.0
    %698 = vmatpush1.msra.mxu0 0.0
    %699 = vmatprep.subr.mxu0 0.0
    %700 = vmatpush1.msra.mxu0 0.0
    %701 = vmatprep.mubr.f32.mxu0 0.0
    %702 = vmatmul.mubr.f32.gmra.mrb[0].mxu0 %v635
    %v703 = vpop.f32.mrb[0].mxu0
    %v704 = vadd.f32 %v632, %v703
    %v705 = vpop.f32.mrb[0].mxu0
    %706 = vdwg.mxu0
    %v707 = vrot.slane %v559, 2
    %v708 = vsel %vm315, %v707, 0
    %710 = vmatprep.subr.mxu0 0.0
    %711 = vmatpush1.msra.mxu0 %v421
    %712 = vmatprep.subr.mxu0 0.0
    %713 = vmatpush1.msra.mxu0 %v422
    %714 = vmatprep.subr.mxu0 0.0
    %715 = vmatpush1.msra.mxu0 %v423
    %716 = vmatprep.subr.mxu0 0.0
    %717 = vmatpush1.msra.mxu0 %v424
    %718 = vmatprep.subr.mxu0 0.0
    %719 = vmatpush1.msra.mxu0 0.0
    %720 = vmatprep.subr.mxu0 0.0
    %721 = vmatpush1.msra.mxu0 0.0
    %722 = vmatprep.subr.mxu0 0.0
    %723 = vmatpush1.msra.mxu0 0.0
    %724 = vmatprep.subr.mxu0 0.0
    %725 = vmatpush1.msra.mxu0 0.0
    %726 = vmatprep.subr.mxu0 0.0
    %727 = vmatpush1.msra.mxu0 0.0
    %728 = vmatprep.subr.mxu0 0.0
    %729 = vmatpush1.msra.mxu0 0.0
    %730 = vmatprep.subr.mxu0 0.0
    %731 = vmatpush1.msra.mxu0 0.0
    %732 = vmatprep.subr.mxu0 0.0
    %733 = vmatpush1.msra.mxu0 0.0
    %734 = vmatprep.subr.mxu0 0.0
    %735 = vmatpush1.msra.mxu0 0.0
    %736 = vmatprep.subr.mxu0 0.0
    %737 = vmatpush1.msra.mxu0 0.0
    %738 = vmatprep.subr.mxu0 0.0
    %739 = vmatpush1.msra.mxu0 0.0
    %740 = vmatprep.subr.mxu0 0.0
    %741 = vmatpush1.msra.mxu0 0.0
    %742 = vmatprep.subr.mxu0 0.0
    %743 = vmatpush1.msra.mxu0 0.0
    %744 = vmatprep.subr.mxu0 0.0
    %745 = vmatpush1.msra.mxu0 0.0
    %746 = vmatprep.subr.mxu0 0.0
    %747 = vmatpush1.msra.mxu0 0.0
    %748 = vmatprep.subr.mxu0 0.0
    %749 = vmatpush1.msra.mxu0 0.0
    %750 = vmatprep.subr.mxu0 0.0
    %751 = vmatpush1.msra.mxu0 0.0
    %752 = vmatprep.subr.mxu0 0.0
    %753 = vmatpush1.msra.mxu0 0.0
    %754 = vmatprep.subr.mxu0 0.0
    %755 = vmatpush1.msra.mxu0 0.0
    %756 = vmatprep.subr.mxu0 0.0
    %757 = vmatpush1.msra.mxu0 0.0
    %758 = vmatprep.subr.mxu0 0.0
    %759 = vmatpush1.msra.mxu0 0.0
    %760 = vmatprep.subr.mxu0 0.0
    %761 = vmatpush1.msra.mxu0 0.0
    %762 = vmatprep.subr.mxu0 0.0
    %763 = vmatpush1.msra.mxu0 0.0
    %764 = vmatprep.subr.mxu0 0.0
    %765 = vmatpush1.msra.mxu0 0.0
    %766 = vmatprep.subr.mxu0 0.0
    %767 = vmatpush1.msra.mxu0 0.0
    %768 = vmatprep.subr.mxu0 0.0
    %769 = vmatpush1.msra.mxu0 0.0
    %770 = vmatprep.subr.mxu0 0.0
    %771 = vmatpush1.msra.mxu0 0.0
    %772 = vmatprep.subr.mxu0 0.0
    %773 = vmatpush1.msra.mxu0 0.0
    %774 = vmatprep.mubr.f32.mxu0 0.0
    %775 = vmatmul.mubr.f32.gmra.mrb[0].mxu0 %v708
    %v776 = vpop.f32.mrb[0].mxu0
    %v777 = vadd.f32 0.0, %v776
    %v778 = vpop.f32.mrb[0].mxu0
    %779 = vdwg.mxu0
    %v780 = vadd.f32 %v704, %v777
    %v781 = vrot.slane %v559, 3
    %v782 = vsel %vm315, %v781, 0
    %784 = vmatprep.subr.mxu0 0.0
    %785 = vmatpush1.msra.mxu0 %v425
    %786 = vmatprep.subr.mxu0 0.0
    %787 = vmatpush1.msra.mxu0 %v426
    %788 = vmatprep.subr.mxu0 0.0
    %789 = vmatpush1.msra.mxu0 %v427
    %790 = vmatprep.subr.mxu0 0.0
    %791 = vmatpush1.msra.mxu0 %v428
    %792 = vmatprep.subr.mxu0 0.0
    %793 = vmatpush1.msra.mxu0 0.0
    %794 = vmatprep.subr.mxu0 0.0
    %795 = vmatpush1.msra.mxu0 0.0
    %796 = vmatprep.subr.mxu0 0.0
    %797 = vmatpush1.msra.mxu0 0.0
    %798 = vmatprep.subr.mxu0 0.0
    %799 = vmatpush1.msra.mxu0 0.0
    %800 = vmatprep.subr.mxu0 0.0
    %801 = vmatpush1.msra.mxu0 0.0
    %802 = vmatprep.subr.mxu0 0.0
    %803 = vmatpush1.msra.mxu0 0.0
    %804 = vmatprep.subr.mxu0 0.0
    %805 = vmatpush1.msra.mxu0 0.0
    %806 = vmatprep.subr.mxu0 0.0
    %807 = vmatpush1.msra.mxu0 0.0
    %808 = vmatprep.subr.mxu0 0.0
    %809 = vmatpush1.msra.mxu0 0.0
    %810 = vmatprep.subr.mxu0 0.0
    %811 = vmatpush1.msra.mxu0 0.0
    %812 = vmatprep.subr.mxu0 0.0
    %813 = vmatpush1.msra.mxu0 0.0
    %814 = vmatprep.subr.mxu0 0.0
    %815 = vmatpush1.msra.mxu0 0.0
    %816 = vmatprep.subr.mxu0 0.0
    %817 = vmatpush1.msra.mxu0 0.0
    %818 = vmatprep.subr.mxu0 0.0
    %819 = vmatpush1.msra.mxu0 0.0
    %820 = vmatprep.subr.mxu0 0.0
    %821 = vmatpush1.msra.mxu0 0.0
    %822 = vmatprep.subr.mxu0 0.0
    %823 = vmatpush1.msra.mxu0 0.0
    %824 = vmatprep.subr.mxu0 0.0
    %825 = vmatpush1.msra.mxu0 0.0
    %826 = vmatprep.subr.mxu0 0.0
    %827 = vmatpush1.msra.mxu0 0.0
    %828 = vmatprep.subr.mxu0 0.0
    %829 = vmatpush1.msra.mxu0 0.0
    %830 = vmatprep.subr.mxu0 0.0
    %831 = vmatpush1.msra.mxu0 0.0
    %832 = vmatprep.subr.mxu0 0.0
    %833 = vmatpush1.msra.mxu0 0.0
    %834 = vmatprep.subr.mxu0 0.0
    %835 = vmatpush1.msra.mxu0 0.0
    %836 = vmatprep.subr.mxu0 0.0
    %837 = vmatpush1.msra.mxu0 0.0
    %838 = vmatprep.subr.mxu0 0.0
    %839 = vmatpush1.msra.mxu0 0.0
    %840 = vmatprep.subr.mxu0 0.0
    %841 = vmatpush1.msra.mxu0 0.0
    %842 = vmatprep.subr.mxu0 0.0
    %843 = vmatpush1.msra.mxu0 0.0
    %844 = vmatprep.subr.mxu0 0.0
    %845 = vmatpush1.msra.mxu0 0.0
    %846 = vmatprep.subr.mxu0 0.0
    %847 = vmatpush1.msra.mxu0 0.0
    %848 = vmatprep.mubr.f32.mxu0 0.0
    %849 = vmatmul.mubr.f32.gmra.mrb[0].mxu0 %v782
    %v850 = vpop.f32.mrb[0].mxu0
    %v851 = vadd.f32 0.0, %v850
    %v852 = vpop.f32.mrb[0].mxu0
    %853 = vdwg.mxu0
    %v854 = vadd.f32 %v780, %v851
    %v855 = vrot.slane %v559, 4
    %v856 = vsel %vm315, %v855, 0
    %858 = vmatprep.subr.mxu0 0.0
    %859 = vmatpush1.msra.mxu0 %v429
    %860 = vmatprep.subr.mxu0 0.0
    %861 = vmatpush1.msra.mxu0 %v430
    %862 = vmatprep.subr.mxu0 0.0
    %863 = vmatpush1.msra.mxu0 %v431
    %864 = vmatprep.subr.mxu0 0.0
    %865 = vmatpush1.msra.mxu0 %v432
    %866 = vmatprep.subr.mxu0 0.0
    %867 = vmatpush1.msra.mxu0 0.0
    %868 = vmatprep.subr.mxu0 0.0
    %869 = vmatpush1.msra.mxu0 0.0
    %870 = vmatprep.subr.mxu0 0.0
    %871 = vmatpush1.msra.mxu0 0.0
    %872 = vmatprep.subr.mxu0 0.0
    %873 = vmatpush1.msra.mxu0 0.0
    %874 = vmatprep.subr.mxu0 0.0
    %875 = vmatpush1.msra.mxu0 0.0
    %876 = vmatprep.subr.mxu0 0.0
    %877 = vmatpush1.msra.mxu0 0.0
    %878 = vmatprep.subr.mxu0 0.0
    %879 = vmatpush1.msra.mxu0 0.0
    %880 = vmatprep.subr.mxu0 0.0
    %881 = vmatpush1.msra.mxu0 0.0
    %882 = vmatprep.subr.mxu0 0.0
    %883 = vmatpush1.msra.mxu0 0.0
    %884 = vmatprep.subr.mxu0 0.0
    %885 = vmatpush1.msra.mxu0 0.0
    %886 = vmatprep.subr.mxu0 0.0
    %887 = vmatpush1.msra.mxu0 0.0
    %888 = vmatprep.subr.mxu0 0.0
    %889 = vmatpush1.msra.mxu0 0.0
    %890 = vmatprep.subr.mxu0 0.0
    %891 = vmatpush1.msra.mxu0 0.0
    %892 = vmatprep.subr.mxu0 0.0
    %893 = vmatpush1.msra.mxu0 0.0
    %894 = vmatprep.subr.mxu0 0.0
    %895 = vmatpush1.msra.mxu0 0.0
    %896 = vmatprep.subr.mxu0 0.0
    %897 = vmatpush1.msra.mxu0 0.0
    %898 = vmatprep.subr.mxu0 0.0
    %899 = vmatpush1.msra.mxu0 0.0
    %900 = vmatprep.subr.mxu0 0.0
    %901 = vmatpush1.msra.mxu0 0.0
    %902 = vmatprep.subr.mxu0 0.0
    %903 = vmatpush1.msra.mxu0 0.0
    %904 = vmatprep.subr.mxu0 0.0
    %905 = vmatpush1.msra.mxu0 0.0
    %906 = vmatprep.subr.mxu0 0.0
    %907 = vmatpush1.msra.mxu0 0.0
    %908 = vmatprep.subr.mxu0 0.0
    %909 = vmatpush1.msra.mxu0 0.0
    %910 = vmatprep.subr.mxu0 0.0
    %911 = vmatpush1.msra.mxu0 0.0
    %912 = vmatprep.subr.mxu0 0.0
    %913 = vmatpush1.msra.mxu0 0.0
    %914 = vmatprep.subr.mxu0 0.0
    %915 = vmatpush1.msra.mxu0 0.0
    %916 = vmatprep.subr.mxu0 0.0
    %917 = vmatpush1.msra.mxu0 0.0
    %918 = vmatprep.subr.mxu0 0.0
    %919 = vmatpush1.msra.mxu0 0.0
    %920 = vmatprep.subr.mxu0 0.0
    %921 = vmatpush1.msra.mxu0 0.0
    %922 = vmatprep.mubr.f32.mxu0 0.0
    %923 = vmatmul.mubr.f32.gmra.mrb[0].mxu0 %v856
    %v924 = vpop.f32.mrb[0].mxu0
    %v925 = vadd.f32 0.0, %v924
    %v926 = vpop.f32.mrb[0].mxu0
    %927 = vdwg.mxu0
    %v928 = vadd.f32 %v854, %v925
    %v929 = vrot.slane %v559, 5
    %v930 = vsel %vm315, %v929, 0
    %932 = vmatprep.subr.mxu0 0.0
    %933 = vmatpush1.msra.mxu0 %v433
    %934 = vmatprep.subr.mxu0 0.0
    %935 = vmatpush1.msra.mxu0 %v434
    %936 = vmatprep.subr.mxu0 0.0
    %937 = vmatpush1.msra.mxu0 %v435
    %938 = vmatprep.subr.mxu0 0.0
    %939 = vmatpush1.msra.mxu0 %v436
    %940 = vmatprep.subr.mxu0 0.0
    %941 = vmatpush1.msra.mxu0 0.0
    %942 = vmatprep.subr.mxu0 0.0
    %943 = vmatpush1.msra.mxu0 0.0
    %944 = vmatprep.subr.mxu0 0.0
    %945 = vmatpush1.msra.mxu0 0.0
    %946 = vmatprep.subr.mxu0 0.0
    %947 = vmatpush1.msra.mxu0 0.0
    %948 = vmatprep.subr.mxu0 0.0
    %949 = vmatpush1.msra.mxu0 0.0
    %950 = vmatprep.subr.mxu0 0.0
    %951 = vmatpush1.msra.mxu0 0.0
    %952 = vmatprep.subr.mxu0 0.0
    %953 = vmatpush1.msra.mxu0 0.0
    %954 = vmatprep.subr.mxu0 0.0
    %955 = vmatpush1.msra.mxu0 0.0
    %956 = vmatprep.subr.mxu0 0.0
    %957 = vmatpush1.msra.mxu0 0.0
    %958 = vmatprep.subr.mxu0 0.0
    %959 = vmatpush1.msra.mxu0 0.0
    %960 = vmatprep.subr.mxu0 0.0
    %961 = vmatpush1.msra.mxu0 0.0
    %962 = vmatprep.subr.mxu0 0.0
    %963 = vmatpush1.msra.mxu0 0.0
    %964 = vmatprep.subr.mxu0 0.0
    %965 = vmatpush1.msra.mxu0 0.0
    %966 = vmatprep.subr.mxu0 0.0
    %967 = vmatpush1.msra.mxu0 0.0
    %968 = vmatprep.subr.mxu0 0.0
    %969 = vmatpush1.msra.mxu0 0.0
    %970 = vmatprep.subr.mxu0 0.0
    %971 = vmatpush1.msra.mxu0 0.0
    %972 = vmatprep.subr.mxu0 0.0
    %973 = vmatpush1.msra.mxu0 0.0
    %974 = vmatprep.subr.mxu0 0.0
    %975 = vmatpush1.msra.mxu0 0.0
    %976 = vmatprep.subr.mxu0 0.0
    %977 = vmatpush1.msra.mxu0 0.0
    %978 = vmatprep.subr.mxu0 0.0
    %979 = vmatpush1.msra.mxu0 0.0
    %980 = vmatprep.subr.mxu0 0.0
    %981 = vmatpush1.msra.mxu0 0.0
    %982 = vmatprep.subr.mxu0 0.0
    %983 = vmatpush1.msra.mxu0 0.0
    %984 = vmatprep.subr.mxu0 0.0
    %985 = vmatpush1.msra.mxu0 0.0
    %986 = vmatprep.subr.mxu0 0.0
    %987 = vmatpush1.msra.mxu0 0.0
    %988 = vmatprep.subr.mxu0 0.0
    %989 = vmatpush1.msra.mxu0 0.0
    %990 = vmatprep.subr.mxu0 0.0
    %991 = vmatpush1.msra.mxu0 0.0
    %992 = vmatprep.subr.mxu0 0.0
    %993 = vmatpush1.msra.mxu0 0.0
    %994 = vmatprep.subr.mxu0 0.0
    %995 = vmatpush1.msra.mxu0 0.0
    %996 = vmatprep.mubr.f32.mxu0 0.0
    %997 = vmatmul.mubr.f32.gmra.mrb[0].mxu0 %v930
    %v998 = vpop.f32.mrb[0].mxu0
    %v999 = vadd.f32 0.0, %v998
    %v1000 = vpop.f32.mrb[0].mxu0
    %1001 = vdwg.mxu0
    %v1002 = vadd.f32 %v928, %v999
    %v1003 = vrot.slane %v559, 6
    %v1004 = vsel %vm315, %v1003, 0
    %1006 = vmatprep.subr.mxu0 0.0
    %1007 = vmatpush1.msra.mxu0 %v437
    %1008 = vmatprep.subr.mxu0 0.0
    %1009 = vmatpush1.msra.mxu0 %v438
    %1010 = vmatprep.subr.mxu0 0.0
    %1011 = vmatpush1.msra.mxu0 %v439
    %1012 = vmatprep.subr.mxu0 0.0
    %1013 = vmatpush1.msra.mxu0 %v440
    %1014 = vmatprep.subr.mxu0 0.0
    %1015 = vmatpush1.msra.mxu0 0.0
    %1016 = vmatprep.subr.mxu0 0.0
    %1017 = vmatpush1.msra.mxu0 0.0
    %1018 = vmatprep.subr.mxu0 0.0
    %1019 = vmatpush1.msra.mxu0 0.0
    %1020 = vmatprep.subr.mxu0 0.0
    %1021 = vmatpush1.msra.mxu0 0.0
    %1022 = vmatprep.subr.mxu0 0.0
    %1023 = vmatpush1.msra.mxu0 0.0
    %1024 = vmatprep.subr.mxu0 0.0
    %1025 = vmatpush1.msra.mxu0 0.0
    %1026 = vmatprep.subr.mxu0 0.0
    %1027 = vmatpush1.msra.mxu0 0.0
    %1028 = vmatprep.subr.mxu0 0.0
    %1029 = vmatpush1.msra.mxu0 0.0
    %1030 = vmatprep.subr.mxu0 0.0
    %1031 = vmatpush1.msra.mxu0 0.0
    %1032 = vmatprep.subr.mxu0 0.0
    %1033 = vmatpush1.msra.mxu0 0.0
    %1034 = vmatprep.subr.mxu0 0.0
    %1035 = vmatpush1.msra.mxu0 0.0
    %1036 = vmatprep.subr.mxu0 0.0
    %1037 = vmatpush1.msra.mxu0 0.0
    %1038 = vmatprep.subr.mxu0 0.0
    %1039 = vmatpush1.msra.mxu0 0.0
    %1040 = vmatprep.subr.mxu0 0.0
    %1041 = vmatpush1.msra.mxu0 0.0
    %1042 = vmatprep.subr.mxu0 0.0
    %1043 = vmatpush1.msra.mxu0 0.0
    %1044 = vmatprep.subr.mxu0 0.0
    %1045 = vmatpush1.msra.mxu0 0.0
    %1046 = vmatprep.subr.mxu0 0.0
    %1047 = vmatpush1.msra.mxu0 0.0
    %1048 = vmatprep.subr.mxu0 0.0
    %1049 = vmatpush1.msra.mxu0 0.0
    %1050 = vmatprep.subr.mxu0 0.0
    %1051 = vmatpush1.msra.mxu0 0.0
    %1052 = vmatprep.subr.mxu0 0.0
    %1053 = vmatpush1.msra.mxu0 0.0
    %1054 = vmatprep.subr.mxu0 0.0
    %1055 = vmatpush1.msra.mxu0 0.0
    %1056 = vmatprep.subr.mxu0 0.0
    %1057 = vmatpush1.msra.mxu0 0.0
    %1058 = vmatprep.subr.mxu0 0.0
    %1059 = vmatpush1.msra.mxu0 0.0
    %1060 = vmatprep.subr.mxu0 0.0
    %1061 = vmatpush1.msra.mxu0 0.0
    %1062 = vmatprep.subr.mxu0 0.0
    %1063 = vmatpush1.msra.mxu0 0.0
    %1064 = vmatprep.subr.mxu0 0.0
    %1065 = vmatpush1.msra.mxu0 0.0
    %1066 = vmatprep.subr.mxu0 0.0
    %1067 = vmatpush1.msra.mxu0 0.0
    %1068 = vmatprep.subr.mxu0 0.0
    %1069 = vmatpush1.msra.mxu0 0.0
    %1070 = vmatprep.mubr.f32.mxu0 0.0
    %1071 = vmatmul.mubr.f32.gmra.mrb[0].mxu0 %v1004
    %v1072 = vpop.f32.mrb[0].mxu0
    %v1073 = vadd.f32 0.0, %v1072
    %v1074 = vpop.f32.mrb[0].mxu0
    %1075 = vdwg.mxu0
    %v1076 = vadd.f32 %v1002, %v1073
    %v1077 = vrot.slane %v559, 7
    %v1078 = vsel %vm315, %v1077, 0
    %1080 = vmatprep.subr.mxu0 0.0
    %1081 = vmatpush1.msra.mxu0 %v441
    %1082 = vmatprep.subr.mxu0 0.0
    %1083 = vmatpush1.msra.mxu0 %v442
    %1084 = vmatprep.subr.mxu0 0.0
    %1085 = vmatpush1.msra.mxu0 %v443
    %1086 = vmatprep.subr.mxu0 0.0
    %1087 = vmatpush1.msra.mxu0 %v444
    %1088 = vmatprep.subr.mxu0 0.0
    %1089 = vmatpush1.msra.mxu0 0.0
    %1090 = vmatprep.subr.mxu0 0.0
    %1091 = vmatpush1.msra.mxu0 0.0
    %1092 = vmatprep.subr.mxu0 0.0
    %1093 = vmatpush1.msra.mxu0 0.0
    %1094 = vmatprep.subr.mxu0 0.0
    %1095 = vmatpush1.msra.mxu0 0.0
    %1096 = vmatprep.subr.mxu0 0.0
    %1097 = vmatpush1.msra.mxu0 0.0
    %1098 = vmatprep.subr.mxu0 0.0
    %1099 = vmatpush1.msra.mxu0 0.0
    %1100 = vmatprep.subr.mxu0 0.0
    %1101 = vmatpush1.msra.mxu0 0.0
    %1102 = vmatprep.subr.mxu0 0.0
    %1103 = vmatpush1.msra.mxu0 0.0
    %1104 = vmatprep.subr.mxu0 0.0
    %1105 = vmatpush1.msra.mxu0 0.0
    %1106 = vmatprep.subr.mxu0 0.0
    %1107 = vmatpush1.msra.mxu0 0.0
    %1108 = vmatprep.subr.mxu0 0.0
    %1109 = vmatpush1.msra.mxu0 0.0
    %1110 = vmatprep.subr.mxu0 0.0
    %1111 = vmatpush1.msra.mxu0 0.0
    %1112 = vmatprep.subr.mxu0 0.0
    %1113 = vmatpush1.msra.mxu0 0.0
    %1114 = vmatprep.subr.mxu0 0.0
    %1115 = vmatpush1.msra.mxu0 0.0
    %1116 = vmatprep.subr.mxu0 0.0
    %1117 = vmatpush1.msra.mxu0 0.0
    %1118 = vmatprep.subr.mxu0 0.0
    %1119 = vmatpush1.msra.mxu0 0.0
    %1120 = vmatprep.subr.mxu0 0.0
    %1121 = vmatpush1.msra.mxu0 0.0
    %1122 = vmatprep.subr.mxu0 0.0
    %1123 = vmatpush1.msra.mxu0 0.0
    %1124 = vmatprep.subr.mxu0 0.0
    %1125 = vmatpush1.msra.mxu0 0.0
    %1126 = vmatprep.subr.mxu0 0.0
    %1127 = vmatpush1.msra.mxu0 0.0
    %1128 = vmatprep.subr.mxu0 0.0
    %1129 = vmatpush1.msra.mxu0 0.0
    %1130 = vmatprep.subr.mxu0 0.0
    %1131 = vmatpush1.msra.mxu0 0.0
    %1132 = vmatprep.subr.mxu0 0.0
    %1133 = vmatpush1.msra.mxu0 0.0
    %1134 = vmatprep.subr.mxu0 0.0
    %1135 = vmatpush1.msra.mxu0 0.0
    %1136 = vmatprep.subr.mxu0 0.0
    %1137 = vmatpush1.msra.mxu0 0.0
    %1138 = vmatprep.subr.mxu0 0.0
    %1139 = vmatpush1.msra.mxu0 0.0
    %1140 = vmatprep.subr.mxu0 0.0
    %1141 = vmatpush1.msra.mxu0 0.0
    %1142 = vmatprep.subr.mxu0 0.0
    %1143 = vmatpush1.msra.mxu0 0.0
    %1144 = vmatprep.mubr.f32.mxu0 0.0
    %1145 = vmatmul.mubr.f32.gmra.mrb[0].mxu0 %v1078
    %v1146 = vpop.f32.mrb[0].mxu0
    %v1147 = vadd.f32 0.0, %v1146
    %v1148 = vpop.f32.mrb[0].mxu0
    %1149 = vdwg.mxu0
    %v1150 = vadd.f32 %v1076, %v1147
    %v1152 = vsel %vm315, %v560, 0
    %1154 = vmatprep.subr.mxu0 0.0
    %1155 = vmatpush1.msra.mxu0 %v445
    %1156 = vmatprep.subr.mxu0 0.0
    %1157 = vmatpush1.msra.mxu0 %v446
    %1158 = vmatprep.subr.mxu0 0.0
    %1159 = vmatpush1.msra.mxu0 %v447
    %1160 = vmatprep.subr.mxu0 0.0
    %1161 = vmatpush1.msra.mxu0 %v448
    %1162 = vmatprep.subr.mxu0 0.0
    %1163 = vmatpush1.msra.mxu0 0.0
    %1164 = vmatprep.subr.mxu0 0.0
    %1165 = vmatpush1.msra.mxu0 0.0
    %1166 = vmatprep.subr.mxu0 0.0
    %1167 = vmatpush1.msra.mxu0 0.0
    %1168 = vmatprep.subr.mxu0 0.0
    %1169 = vmatpush1.msra.mxu0 0.0
    %1170 = vmatprep.subr.mxu0 0.0
    %1171 = vmatpush1.msra.mxu0 0.0
    %1172 = vmatprep.subr.mxu0 0.0
    %1173 = vmatpush1.msra.mxu0 0.0
    %1174 = vmatprep.subr.mxu0 0.0
    %1175 = vmatpush1.msra.mxu0 0.0
    %1176 = vmatprep.subr.mxu0 0.0
    %1177 = vmatpush1.msra.mxu0 0.0
    %1178 = vmatprep.subr.mxu0 0.0
    %1179 = vmatpush1.msra.mxu0 0.0
    %1180 = vmatprep.subr.mxu0 0.0
    %1181 = vmatpush1.msra.mxu0 0.0
    %1182 = vmatprep.subr.mxu0 0.0
    %1183 = vmatpush1.msra.mxu0 0.0
    %1184 = vmatprep.subr.mxu0 0.0
    %1185 = vmatpush1.msra.mxu0 0.0
    %1186 = vmatprep.subr.mxu0 0.0
    %1187 = vmatpush1.msra.mxu0 0.0
    %1188 = vmatprep.subr.mxu0 0.0
    %1189 = vmatpush1.msra.mxu0 0.0
    %1190 = vmatprep.subr.mxu0 0.0
    %1191 = vmatpush1.msra.mxu0 0.0
    %1192 = vmatprep.subr.mxu0 0.0
    %1193 = vmatpush1.msra.mxu0 0.0
    %1194 = vmatprep.subr.mxu0 0.0
    %1195 = vmatpush1.msra.mxu0 0.0
    %1196 = vmatprep.subr.mxu0 0.0
    %1197 = vmatpush1.msra.mxu0 0.0
    %1198 = vmatprep.subr.mxu0 0.0
    %1199 = vmatpush1.msra.mxu0 0.0
    %1200 = vmatprep.subr.mxu0 0.0
    %1201 = vmatpush1.msra.mxu0 0.0
    %1202 = vmatprep.subr.mxu0 0.0
    %1203 = vmatpush1.msra.mxu0 0.0
    %1204 = vmatprep.subr.mxu0 0.0
    %1205 = vmatpush1.msra.mxu0 0.0
    %1206 = vmatprep.subr.mxu0 0.0
    %1207 = vmatpush1.msra.mxu0 0.0
    %1208 = vmatprep.subr.mxu0 0.0
    %1209 = vmatpush1.msra.mxu0 0.0
    %1210 = vmatprep.subr.mxu0 0.0
    %1211 = vmatpush1.msra.mxu0 0.0
    %1212 = vmatprep.subr.mxu0 0.0
    %1213 = vmatpush1.msra.mxu0 0.0
    %1214 = vmatprep.subr.mxu0 0.0
    %1215 = vmatpush1.msra.mxu0 0.0
    %1216 = vmatprep.subr.mxu0 0.0
    %1217 = vmatpush1.msra.mxu0 0.0
    %1218 = vmatprep.mubr.f32.mxu0 0.0
    %1219 = vmatmul.mubr.f32.gmra.mrb[0].mxu0 %v1152
    %v1220 = vpop.f32.mrb[0].mxu0
    %v1221 = vadd.f32 0.0, %v1220
    %v1222 = vpop.f32.mrb[0].mxu0
    %1223 = vdwg.mxu0
    %v1224 = vadd.f32 %v1150, %v1221
    %v1225 = vrot.slane %v560, 1
    %v1226 = vsel %vm315, %v1225, 0
    %1228 = vmatprep.subr.mxu0 0.0
    %1229 = vmatpush1.msra.mxu0 %v449
    %1230 = vmatprep.subr.mxu0 0.0
    %1231 = vmatpush1.msra.mxu0 %v450
    %1232 = vmatprep.subr.mxu0 0.0
    %1233 = vmatpush1.msra.mxu0 %v451
    %1234 = vmatprep.subr.mxu0 0.0
    %1235 = vmatpush1.msra.mxu0 %v452
    %1236 = vmatprep.subr.mxu0 0.0
    %1237 = vmatpush1.msra.mxu0 0.0
    %1238 = vmatprep.subr.mxu0 0.0
    %1239 = vmatpush1.msra.mxu0 0.0
    %1240 = vmatprep.subr.mxu0 0.0
    %1241 = vmatpush1.msra.mxu0 0.0
    %1242 = vmatprep.subr.mxu0 0.0
    %1243 = vmatpush1.msra.mxu0 0.0
    %1244 = vmatprep.subr.mxu0 0.0
    %1245 = vmatpush1.msra.mxu0 0.0
    %1246 = vmatprep.subr.mxu0 0.0
    %1247 = vmatpush1.msra.mxu0 0.0
    %1248 = vmatprep.subr.mxu0 0.0
    %1249 = vmatpush1.msra.mxu0 0.0
    %1250 = vmatprep.subr.mxu0 0.0
    %1251 = vmatpush1.msra.mxu0 0.0
    %1252 = vmatprep.subr.mxu0 0.0
    %1253 = vmatpush1.msra.mxu0 0.0
    %1254 = vmatprep.subr.mxu0 0.0
    %1255 = vmatpush1.msra.mxu0 0.0
    %1256 = vmatprep.subr.mxu0 0.0
    %1257 = vmatpush1.msra.mxu0 0.0
    %1258 = vmatprep.subr.mxu0 0.0
    %1259 = vmatpush1.msra.mxu0 0.0
    %1260 = vmatprep.subr.mxu0 0.0
    %1261 = vmatpush1.msra.mxu0 0.0
    %1262 = vmatprep.subr.mxu0 0.0
    %1263 = vmatpush1.msra.mxu0 0.0
    %1264 = vmatprep.subr.mxu0 0.0
    %1265 = vmatpush1.msra.mxu0 0.0
    %1266 = vmatprep.subr.mxu0 0.0
    %1267 = vmatpush1.msra.mxu0 0.0
    %1268 = vmatprep.subr.mxu0 0.0
    %1269 = vmatpush1.msra.mxu0 0.0
    %1270 = vmatprep.subr.mxu0 0.0
    %1271 = vmatpush1.msra.mxu0 0.0
    %1272 = vmatprep.subr.mxu0 0.0
    %1273 = vmatpush1.msra.mxu0 0.0
    %1274 = vmatprep.subr.mxu0 0.0
    %1275 = vmatpush1.msra.mxu0 0.0
    %1276 = vmatprep.subr.mxu0 0.0
    %1277 = vmatpush1.msra.mxu0 0.0
    %1278 = vmatprep.subr.mxu0 0.0
    %1279 = vmatpush1.msra.mxu0 0.0
    %1280 = vmatprep.subr.mxu0 0.0
    %1281 = vmatpush1.msra.mxu0 0.0
    %1282 = vmatprep.subr.mxu0 0.0
    %1283 = vmatpush1.msra.mxu0 0.0
    %1284 = vmatprep.subr.mxu0 0.0
    %1285 = vmatpush1.msra.mxu0 0.0
    %1286 = vmatprep.subr.mxu0 0.0
    %1287 = vmatpush1.msra.mxu0 0.0
    %1288 = vmatprep.subr.mxu0 0.0
    %1289 = vmatpush1.msra.mxu0 0.0
    %1290 = vmatprep.subr.mxu0 0.0
    %1291 = vmatpush1.msra.mxu0 0.0
    %1292 = vmatprep.mubr.f32.mxu0 0.0
    %1293 = vmatmul.mubr.f32.gmra.mrb[0].mxu0 %v1226
    %v1294 = vpop.f32.mrb[0].mxu0
    %v1295 = vadd.f32 0.0, %v1294
    %v1296 = vpop.f32.mrb[0].mxu0
    %1297 = vdwg.mxu0
    %v1298 = vadd.f32 %v1224, %v1295
    %v1299 = vrot.slane %v560, 2
    %v1300 = vsel %vm315, %v1299, 0
    %1302 = vmatprep.subr.mxu0 0.0
    %1303 = vmatpush1.msra.mxu0 %v453
    %1304 = vmatprep.subr.mxu0 0.0
    %1305 = vmatpush1.msra.mxu0 %v454
    %1306 = vmatprep.subr.mxu0 0.0
    %1307 = vmatpush1.msra.mxu0 %v455
    %1308 = vmatprep.subr.mxu0 0.0
    %1309 = vmatpush1.msra.mxu0 %v456
    %1310 = vmatprep.subr.mxu0 0.0
    %1311 = vmatpush1.msra.mxu0 0.0
    %1312 = vmatprep.subr.mxu0 0.0
    %1313 = vmatpush1.msra.mxu0 0.0
    %1314 = vmatprep.subr.mxu0 0.0
    %1315 = vmatpush1.msra.mxu0 0.0
    %1316 = vmatprep.subr.mxu0 0.0
    %1317 = vmatpush1.msra.mxu0 0.0
    %1318 = vmatprep.subr.mxu0 0.0
    %1319 = vmatpush1.msra.mxu0 0.0
    %1320 = vmatprep.subr.mxu0 0.0
    %1321 = vmatpush1.msra.mxu0 0.0
    %1322 = vmatprep.subr.mxu0 0.0
    %1323 = vmatpush1.msra.mxu0 0.0
    %1324 = vmatprep.subr.mxu0 0.0
    %1325 = vmatpush1.msra.mxu0 0.0
    %1326 = vmatprep.subr.mxu0 0.0
    %1327 = vmatpush1.msra.mxu0 0.0
    %1328 = vmatprep.subr.mxu0 0.0
    %1329 = vmatpush1.msra.mxu0 0.0
    %1330 = vmatprep.subr.mxu0 0.0
    %1331 = vmatpush1.msra.mxu0 0.0
    %1332 = vmatprep.subr.mxu0 0.0
    %1333 = vmatpush1.msra.mxu0 0.0
    %1334 = vmatprep.subr.mxu0 0.0
    %1335 = vmatpush1.msra.mxu0 0.0
    %1336 = vmatprep.subr.mxu0 0.0
    %1337 = vmatpush1.msra.mxu0 0.0
    %1338 = vmatprep.subr.mxu0 0.0
    %1339 = vmatpush1.msra.mxu0 0.0
    %1340 = vmatprep.subr.mxu0 0.0
    %1341 = vmatpush1.msra.mxu0 0.0
    %1342 = vmatprep.subr.mxu0 0.0
    %1343 = vmatpush1.msra.mxu0 0.0
    %1344 = vmatprep.subr.mxu0 0.0
    %1345 = vmatpush1.msra.mxu0 0.0
    %1346 = vmatprep.subr.mxu0 0.0
    %1347 = vmatpush1.msra.mxu0 0.0
    %1348 = vmatprep.subr.mxu0 0.0
    %1349 = vmatpush1.msra.mxu0 0.0
    %1350 = vmatprep.subr.mxu0 0.0
    %1351 = vmatpush1.msra.mxu0 0.0
    %1352 = vmatprep.subr.mxu0 0.0
    %1353 = vmatpush1.msra.mxu0 0.0
    %1354 = vmatprep.subr.mxu0 0.0
    %1355 = vmatpush1.msra.mxu0 0.0
    %1356 = vmatprep.subr.mxu0 0.0
    %1357 = vmatpush1.msra.mxu0 0.0
    %1358 = vmatprep.subr.mxu0 0.0
    %1359 = vmatpush1.msra.mxu0 0.0
    %1360 = vmatprep.subr.mxu0 0.0
    %1361 = vmatpush1.msra.mxu0 0.0
    %1362 = vmatprep.subr.mxu0 0.0
    %1363 = vmatpush1.msra.mxu0 0.0
    %1364 = vmatprep.subr.mxu0 0.0
    %1365 = vmatpush1.msra.mxu0 0.0
    %1366 = vmatprep.mubr.f32.mxu0 0.0
    %1367 = vmatmul.mubr.f32.gmra.mrb[0].mxu0 %v1300
    %v1368 = vpop.f32.mrb[0].mxu0
    %v1369 = vadd.f32 0.0, %v1368
    %v1370 = vpop.f32.mrb[0].mxu0
    %1371 = vdwg.mxu0
    %v1372 = vadd.f32 %v1298, %v1369
    %v1373 = vrot.slane %v560, 3
    %v1374 = vsel %vm315, %v1373, 0
    %1376 = vmatprep.subr.mxu0 0.0
    %1377 = vmatpush1.msra.mxu0 %v457
    %1378 = vmatprep.subr.mxu0 0.0
    %1379 = vmatpush1.msra.mxu0 %v458
    %1380 = vmatprep.subr.mxu0 0.0
    %1381 = vmatpush1.msra.mxu0 %v459
    %1382 = vmatprep.subr.mxu0 0.0
    %1383 = vmatpush1.msra.mxu0 %v460
    %1384 = vmatprep.subr.mxu0 0.0
    %1385 = vmatpush1.msra.mxu0 0.0
    %1386 = vmatprep.subr.mxu0 0.0
    %1387 = vmatpush1.msra.mxu0 0.0
    %1388 = vmatprep.subr.mxu0 0.0
    %1389 = vmatpush1.msra.mxu0 0.0
    %1390 = vmatprep.subr.mxu0 0.0
    %1391 = vmatpush1.msra.mxu0 0.0
    %1392 = vmatprep.subr.mxu0 0.0
    %1393 = vmatpush1.msra.mxu0 0.0
    %1394 = vmatprep.subr.mxu0 0.0
    %1395 = vmatpush1.msra.mxu0 0.0
    %1396 = vmatprep.subr.mxu0 0.0
    %1397 = vmatpush1.msra.mxu0 0.0
    %1398 = vmatprep.subr.mxu0 0.0
    %1399 = vmatpush1.msra.mxu0 0.0
    %1400 = vmatprep.subr.mxu0 0.0
    %1401 = vmatpush1.msra.mxu0 0.0
    %1402 = vmatprep.subr.mxu0 0.0
    %1403 = vmatpush1.msra.mxu0 0.0
    %1404 = vmatprep.subr.mxu0 0.0
    %1405 = vmatpush1.msra.mxu0 0.0
    %1406 = vmatprep.subr.mxu0 0.0
    %1407 = vmatpush1.msra.mxu0 0.0
    %1408 = vmatprep.subr.mxu0 0.0
    %1409 = vmatpush1.msra.mxu0 0.0
    %1410 = vmatprep.subr.mxu0 0.0
    %1411 = vmatpush1.msra.mxu0 0.0
    %1412 = vmatprep.subr.mxu0 0.0
    %1413 = vmatpush1.msra.mxu0 0.0
    %1414 = vmatprep.subr.mxu0 0.0
    %1415 = vmatpush1.msra.mxu0 0.0
    %1416 = vmatprep.subr.mxu0 0.0
    %1417 = vmatpush1.msra.mxu0 0.0
    %1418 = vmatprep.subr.mxu0 0.0
    %1419 = vmatpush1.msra.mxu0 0.0
    %1420 = vmatprep.subr.mxu0 0.0
    %1421 = vmatpush1.msra.mxu0 0.0
    %1422 = vmatprep.subr.mxu0 0.0
    %1423 = vmatpush1.msra.mxu0 0.0
    %1424 = vmatprep.subr.mxu0 0.0
    %1425 = vmatpush1.msra.mxu0 0.0
    %1426 = vmatprep.subr.mxu0 0.0
    %1427 = vmatpush1.msra.mxu0 0.0
    %1428 = vmatprep.subr.mxu0 0.0
    %1429 = vmatpush1.msra.mxu0 0.0
    %1430 = vmatprep.subr.mxu0 0.0
    %1431 = vmatpush1.msra.mxu0 0.0
    %1432 = vmatprep.subr.mxu0 0.0
    %1433 = vmatpush1.msra.mxu0 0.0
    %1434 = vmatprep.subr.mxu0 0.0
    %1435 = vmatpush1.msra.mxu0 0.0
    %1436 = vmatprep.subr.mxu0 0.0
    %1437 = vmatpush1.msra.mxu0 0.0
    %1438 = vmatprep.subr.mxu0 0.0
    %1439 = vmatpush1.msra.mxu0 0.0
    %1440 = vmatprep.mubr.f32.mxu0 0.0
    %1441 = vmatmul.mubr.f32.gmra.mrb[0].mxu0 %v1374
    %v1442 = vpop.f32.mrb[0].mxu0
    %v1443 = vadd.f32 0.0, %v1442
    %v1444 = vpop.f32.mrb[0].mxu0
    %1445 = vdwg.mxu0
    %v1446 = vadd.f32 %v1372, %v1443
    %v1447 = vrot.slane %v560, 4
    %v1448 = vsel %vm315, %v1447, 0
    %1450 = vmatprep.subr.mxu0 0.0
    %1451 = vmatpush1.msra.mxu0 %v461
    %1452 = vmatprep.subr.mxu0 0.0
    %1453 = vmatpush1.msra.mxu0 %v462
    %1454 = vmatprep.subr.mxu0 0.0
    %1455 = vmatpush1.msra.mxu0 %v463
    %1456 = vmatprep.subr.mxu0 0.0
    %1457 = vmatpush1.msra.mxu0 %v464
    %1458 = vmatprep.subr.mxu0 0.0
    %1459 = vmatpush1.msra.mxu0 0.0
    %1460 = vmatprep.subr.mxu0 0.0
    %1461 = vmatpush1.msra.mxu0 0.0
    %1462 = vmatprep.subr.mxu0 0.0
    %1463 = vmatpush1.msra.mxu0 0.0
    %1464 = vmatprep.subr.mxu0 0.0
    %1465 = vmatpush1.msra.mxu0 0.0
    %1466 = vmatprep.subr.mxu0 0.0
    %1467 = vmatpush1.msra.mxu0 0.0
    %1468 = vmatprep.subr.mxu0 0.0
    %1469 = vmatpush1.msra.mxu0 0.0
    %1470 = vmatprep.subr.mxu0 0.0
    %1471 = vmatpush1.msra.mxu0 0.0
    %1472 = vmatprep.subr.mxu0 0.0
    %1473 = vmatpush1.msra.mxu0 0.0
    %1474 = vmatprep.subr.mxu0 0.0
    %1475 = vmatpush1.msra.mxu0 0.0
    %1476 = vmatprep.subr.mxu0 0.0
    %1477 = vmatpush1.msra.mxu0 0.0
    %1478 = vmatprep.subr.mxu0 0.0
    %1479 = vmatpush1.msra.mxu0 0.0
    %1480 = vmatprep.subr.mxu0 0.0
    %1481 = vmatpush1.msra.mxu0 0.0
    %1482 = vmatprep.subr.mxu0 0.0
    %1483 = vmatpush1.msra.mxu0 0.0
    %1484 = vmatprep.subr.mxu0 0.0
    %1485 = vmatpush1.msra.mxu0 0.0
    %1486 = vmatprep.subr.mxu0 0.0
    %1487 = vmatpush1.msra.mxu0 0.0
    %1488 = vmatprep.subr.mxu0 0.0
    %1489 = vmatpush1.msra.mxu0 0.0
    %1490 = vmatprep.subr.mxu0 0.0
    %1491 = vmatpush1.msra.mxu0 0.0
    %1492 = vmatprep.subr.mxu0 0.0
    %1493 = vmatpush1.msra.mxu0 0.0
    %1494 = vmatprep.subr.mxu0 0.0
    %1495 = vmatpush1.msra.mxu0 0.0
    %1496 = vmatprep.subr.mxu0 0.0
    %1497 = vmatpush1.msra.mxu0 0.0
    %1498 = vmatprep.subr.mxu0 0.0
    %1499 = vmatpush1.msra.mxu0 0.0
    %1500 = vmatprep.subr.mxu0 0.0
    %1501 = vmatpush1.msra.mxu0 0.0
    %1502 = vmatprep.subr.mxu0 0.0
    %1503 = vmatpush1.msra.mxu0 0.0
    %1504 = vmatprep.subr.mxu0 0.0
    %1505 = vmatpush1.msra.mxu0 0.0
    %1506 = vmatprep.subr.mxu0 0.0
    %1507 = vmatpush1.msra.mxu0 0.0
    %1508 = vmatprep.subr.mxu0 0.0
    %1509 = vmatpush1.msra.mxu0 0.0
    %1510 = vmatprep.subr.mxu0 0.0
    %1511 = vmatpush1.msra.mxu0 0.0
    %1512 = vmatprep.subr.mxu0 0.0
    %1513 = vmatpush1.msra.mxu0 0.0
    %1514 = vmatprep.mubr.f32.mxu0 0.0
    %1515 = vmatmul.mubr.f32.gmra.mrb[0].mxu0 %v1448
    %v1516 = vpop.f32.mrb[0].mxu0
    %v1517 = vadd.f32 0.0, %v1516
    %v1518 = vpop.f32.mrb[0].mxu0
    %1519 = vdwg.mxu0
    %v1520 = vadd.f32 %v1446, %v1517
    %v1521 = vrot.slane %v560, 5
    %v1522 = vsel %vm315, %v1521, 0
    %1524 = vmatprep.subr.mxu0 0.0
    %1525 = vmatpush1.msra.mxu0 %v465
    %1526 = vmatprep.subr.mxu0 0.0
    %1527 = vmatpush1.msra.mxu0 %v466
    %1528 = vmatprep.subr.mxu0 0.0
    %1529 = vmatpush1.msra.mxu0 %v467
    %1530 = vmatprep.subr.mxu0 0.0
    %1531 = vmatpush1.msra.mxu0 %v468
    %1532 = vmatprep.subr.mxu0 0.0
    %1533 = vmatpush1.msra.mxu0 0.0
    %1534 = vmatprep.subr.mxu0 0.0
    %1535 = vmatpush1.msra.mxu0 0.0
    %1536 = vmatprep.subr.mxu0 0.0
    %1537 = vmatpush1.msra.mxu0 0.0
    %1538 = vmatprep.subr.mxu0 0.0
    %1539 = vmatpush1.msra.mxu0 0.0
    %1540 = vmatprep.subr.mxu0 0.0
    %1541 = vmatpush1.msra.mxu0 0.0
    %1542 = vmatprep.subr.mxu0 0.0
    %1543 = vmatpush1.msra.mxu0 0.0
    %1544 = vmatprep.subr.mxu0 0.0
    %1545 = vmatpush1.msra.mxu0 0.0
    %1546 = vmatprep.subr.mxu0 0.0
    %1547 = vmatpush1.msra.mxu0 0.0
    %1548 = vmatprep.subr.mxu0 0.0
    %1549 = vmatpush1.msra.mxu0 0.0
    %1550 = vmatprep.subr.mxu0 0.0
    %1551 = vmatpush1.msra.mxu0 0.0
    %1552 = vmatprep.subr.mxu0 0.0
    %1553 = vmatpush1.msra.mxu0 0.0
    %1554 = vmatprep.subr.mxu0 0.0
    %1555 = vmatpush1.msra.mxu0 0.0
    %1556 = vmatprep.subr.mxu0 0.0
    %1557 = vmatpush1.msra.mxu0 0.0
    %1558 = vmatprep.subr.mxu0 0.0
    %1559 = vmatpush1.msra.mxu0 0.0
    %1560 = vmatprep.subr.mxu0 0.0
    %1561 = vmatpush1.msra.mxu0 0.0
    %1562 = vmatprep.subr.mxu0 0.0
    %1563 = vmatpush1.msra.mxu0 0.0
    %1564 = vmatprep.subr.mxu0 0.0
    %1565 = vmatpush1.msra.mxu0 0.0
    %1566 = vmatprep.subr.mxu0 0.0
    %1567 = vmatpush1.msra.mxu0 0.0
    %1568 = vmatprep.subr.mxu0 0.0
    %1569 = vmatpush1.msra.mxu0 0.0
    %1570 = vmatprep.subr.mxu0 0.0
    %1571 = vmatpush1.msra.mxu0 0.0
    %1572 = vmatprep.subr.mxu0 0.0
    %1573 = vmatpush1.msra.mxu0 0.0
    %1574 = vmatprep.subr.mxu0 0.0
    %1575 = vmatpush1.msra.mxu0 0.0
    %1576 = vmatprep.subr.mxu0 0.0
    %1577 = vmatpush1.msra.mxu0 0.0
    %1578 = vmatprep.subr.mxu0 0.0
    %1579 = vmatpush1.msra.mxu0 0.0
    %1580 = vmatprep.subr.mxu0 0.0
    %1581 = vmatpush1.msra.mxu0 0.0
    %1582 = vmatprep.subr.mxu0 0.0
    %1583 = vmatpush1.msra.mxu0 0.0
    %1584 = vmatprep.subr.mxu0 0.0
    %1585 = vmatpush1.msra.mxu0 0.0
    %1586 = vmatprep.subr.mxu0 0.0
    %1587 = vmatpush1.msra.mxu0 0.0
    %1588 = vmatprep.mubr.f32.mxu0 0.0
    %1589 = vmatmul.mubr.f32.gmra.mrb[0].mxu0 %v1522
    %v1590 = vpop.f32.mrb[0].mxu0
    %v1591 = vadd.f32 0.0, %v1590
    %v1592 = vpop.f32.mrb[0].mxu0
    %1593 = vdwg.mxu0
    %v1594 = vadd.f32 %v1520, %v1591
    %v1595 = vrot.slane %v560, 6
    %v1596 = vsel %vm315, %v1595, 0
    %1598 = vmatprep.subr.mxu0 0.0
    %1599 = vmatpush1.msra.mxu0 %v469
    %1600 = vmatprep.subr.mxu0 0.0
    %1601 = vmatpush1.msra.mxu0 %v470
    %1602 = vmatprep.subr.mxu0 0.0
    %1603 = vmatpush1.msra.mxu0 %v471
    %1604 = vmatprep.subr.mxu0 0.0
    %1605 = vmatpush1.msra.mxu0 %v472
    %1606 = vmatprep.subr.mxu0 0.0
    %1607 = vmatpush1.msra.mxu0 0.0
    %1608 = vmatprep.subr.mxu0 0.0
    %1609 = vmatpush1.msra.mxu0 0.0
    %1610 = vmatprep.subr.mxu0 0.0
    %1611 = vmatpush1.msra.mxu0 0.0
    %1612 = vmatprep.subr.mxu0 0.0
    %1613 = vmatpush1.msra.mxu0 0.0
    %1614 = vmatprep.subr.mxu0 0.0
    %1615 = vmatpush1.msra.mxu0 0.0
    %1616 = vmatprep.subr.mxu0 0.0
    %1617 = vmatpush1.msra.mxu0 0.0
    %1618 = vmatprep.subr.mxu0 0.0
    %1619 = vmatpush1.msra.mxu0 0.0
    %1620 = vmatprep.subr.mxu0 0.0
    %1621 = vmatpush1.msra.mxu0 0.0
    %1622 = vmatprep.subr.mxu0 0.0
    %1623 = vmatpush1.msra.mxu0 0.0
    %1624 = vmatprep.subr.mxu0 0.0
    %1625 = vmatpush1.msra.mxu0 0.0
    %1626 = vmatprep.subr.mxu0 0.0
    %1627 = vmatpush1.msra.mxu0 0.0
    %1628 = vmatprep.subr.mxu0 0.0
    %1629 = vmatpush1.msra.mxu0 0.0
    %1630 = vmatprep.subr.mxu0 0.0
    %1631 = vmatpush1.msra.mxu0 0.0
    %1632 = vmatprep.subr.mxu0 0.0
    %1633 = vmatpush1.msra.mxu0 0.0
    %1634 = vmatprep.subr.mxu0 0.0
    %1635 = vmatpush1.msra.mxu0 0.0
    %1636 = vmatprep.subr.mxu0 0.0
    %1637 = vmatpush1.msra.mxu0 0.0
    %1638 = vmatprep.subr.mxu0 0.0
    %1639 = vmatpush1.msra.mxu0 0.0
    %1640 = vmatprep.subr.mxu0 0.0
    %1641 = vmatpush1.msra.mxu0 0.0
    %1642 = vmatprep.subr.mxu0 0.0
    %1643 = vmatpush1.msra.mxu0 0.0
    %1644 = vmatprep.subr.mxu0 0.0
    %1645 = vmatpush1.msra.mxu0 0.0
    %1646 = vmatprep.subr.mxu0 0.0
    %1647 = vmatpush1.msra.mxu0 0.0
    %1648 = vmatprep.subr.mxu0 0.0
    %1649 = vmatpush1.msra.mxu0 0.0
    %1650 = vmatprep.subr.mxu0 0.0
    %1651 = vmatpush1.msra.mxu0 0.0
    %1652 = vmatprep.subr.mxu0 0.0
    %1653 = vmatpush1.msra.mxu0 0.0
    %1654 = vmatprep.subr.mxu0 0.0
    %1655 = vmatpush1.msra.mxu0 0.0
    %1656 = vmatprep.subr.mxu0 0.0
    %1657 = vmatpush1.msra.mxu0 0.0
    %1658 = vmatprep.subr.mxu0 0.0
    %1659 = vmatpush1.msra.mxu0 0.0
    %1660 = vmatprep.subr.mxu0 0.0
    %1661 = vmatpush1.msra.mxu0 0.0
    %1662 = vmatprep.mubr.f32.mxu0 0.0
    %1663 = vmatmul.mubr.f32.gmra.mrb[0].mxu0 %v1596
    %v1664 = vpop.f32.mrb[0].mxu0
    %v1665 = vadd.f32 0.0, %v1664
    %v1666 = vpop.f32.mrb[0].mxu0
    %1667 = vdwg.mxu0
    %v1668 = vadd.f32 %v1594, %v1665
    %v1669 = vrot.slane %v560, 7
    %v1670 = vsel %vm315, %v1669, 0
    %1672 = vmatprep.subr.mxu0 0.0
    %1673 = vmatpush1.msra.mxu0 %v473
    %1674 = vmatprep.subr.mxu0 0.0
    %1675 = vmatpush1.msra.mxu0 %v474
    %1676 = vmatprep.subr.mxu0 0.0
    %1677 = vmatpush1.msra.mxu0 %v475
    %1678 = vmatprep.subr.mxu0 0.0
    %1679 = vmatpush1.msra.mxu0 %v476
    %1680 = vmatprep.subr.mxu0 0.0
    %1681 = vmatpush1.msra.mxu0 0.0
    %1682 = vmatprep.subr.mxu0 0.0
    %1683 = vmatpush1.msra.mxu0 0.0
    %1684 = vmatprep.subr.mxu0 0.0
    %1685 = vmatpush1.msra.mxu0 0.0
    %1686 = vmatprep.subr.mxu0 0.0
    %1687 = vmatpush1.msra.mxu0 0.0
    %1688 = vmatprep.subr.mxu0 0.0
    %1689 = vmatpush1.msra.mxu0 0.0
    %1690 = vmatprep.subr.mxu0 0.0
    %1691 = vmatpush1.msra.mxu0 0.0
    %1692 = vmatprep.subr.mxu0 0.0
    %1693 = vmatpush1.msra.mxu0 0.0
    %1694 = vmatprep.subr.mxu0 0.0
    %1695 = vmatpush1.msra.mxu0 0.0
    %1696 = vmatprep.subr.mxu0 0.0
    %1697 = vmatpush1.msra.mxu0 0.0
    %1698 = vmatprep.subr.mxu0 0.0
    %1699 = vmatpush1.msra.mxu0 0.0
    %1700 = vmatprep.subr.mxu0 0.0
    %1701 = vmatpush1.msra.mxu0 0.0
    %1702 = vmatprep.subr.mxu0 0.0
    %1703 = vmatpush1.msra.mxu0 0.0
    %1704 = vmatprep.subr.mxu0 0.0
    %1705 = vmatpush1.msra.mxu0 0.0
    %1706 = vmatprep.subr.mxu0 0.0
    %1707 = vmatpush1.msra.mxu0 0.0
    %1708 = vmatprep.subr.mxu0 0.0
    %1709 = vmatpush1.msra.mxu0 0.0
    %1710 = vmatprep.subr.mxu0 0.0
    %1711 = vmatpush1.msra.mxu0 0.0
    %1712 = vmatprep.subr.mxu0 0.0
    %1713 = vmatpush1.msra.mxu0 0.0
    %1714 = vmatprep.subr.mxu0 0.0
    %1715 = vmatpush1.msra.mxu0 0.0
    %1716 = vmatprep.subr.mxu0 0.0
    %1717 = vmatpush1.msra.mxu0 0.0
    %1718 = vmatprep.subr.mxu0 0.0
    %1719 = vmatpush1.msra.mxu0 0.0
    %1720 = vmatprep.subr.mxu0 0.0
    %1721 = vmatpush1.msra.mxu0 0.0
    %1722 = vmatprep.subr.mxu0 0.0
    %1723 = vmatpush1.msra.mxu0 0.0
    %1724 = vmatprep.subr.mxu0 0.0
    %1725 = vmatpush1.msra.mxu0 0.0
    %1726 = vmatprep.subr.mxu0 0.0
    %1727 = vmatpush1.msra.mxu0 0.0
    %1728 = vmatprep.subr.mxu0 0.0
    %1729 = vmatpush1.msra.mxu0 0.0
    %1730 = vmatprep.subr.mxu0 0.0
    %1731 = vmatpush1.msra.mxu0 0.0
    %1732 = vmatprep.subr.mxu0 0.0
    %1733 = vmatpush1.msra.mxu0 0.0
    %1734 = vmatprep.subr.mxu0 0.0
    %1735 = vmatpush1.msra.mxu0 0.0
    %1736 = vmatprep.mubr.f32.mxu0 0.0
    %1737 = vmatmul.mubr.f32.gmra.mrb[0].mxu0 %v1670
    %v1738 = vpop.f32.mrb[0].mxu0
    %v1739 = vadd.f32 0.0, %v1738
    %v1740 = vpop.f32.mrb[0].mxu0
    %1741 = vdwg.mxu0
    %v1742 = vadd.f32 %v1668, %v1739
    %1743 = vmatprep.subr.mxu0 0.0
    %1744 = vmatpush1.msra.mxu0 %v405
    %1745 = vmatprep.subr.mxu0 0.0
    %1746 = vmatpush1.msra.mxu0 %v410
    %1747 = vmatprep.subr.mxu0 0.0
    %1748 = vmatpush1.msra.mxu0 0.0
    %1749 = vmatprep.subr.mxu0 0.0
    %1750 = vmatpush1.msra.mxu0 0.0
    %1751 = vmatprep.subr.mxu0 0.0
    %1752 = vmatpush1.msra.mxu0 0.0
    %1753 = vmatprep.subr.mxu0 0.0
    %1754 = vmatpush1.msra.mxu0 0.0
    %1755 = vmatprep.subr.mxu0 0.0
    %1756 = vmatpush1.msra.mxu0 0.0
    %1757 = vmatprep.subr.mxu0 0.0
    %1758 = vmatpush1.msra.mxu0 0.0
    %1759 = vmatprep.subr.mxu0 0.0
    %1760 = vmatpush1.msra.mxu0 0.0
    %1761 = vmatprep.subr.mxu0 0.0
    %1762 = vmatpush1.msra.mxu0 0.0
    %1763 = vmatprep.subr.mxu0 0.0
    %1764 = vmatpush1.msra.mxu0 0.0
    %1765 = vmatprep.subr.mxu0 0.0
    %1766 = vmatpush1.msra.mxu0 0.0
    %1767 = vmatprep.subr.mxu0 0.0
    %1768 = vmatpush1.msra.mxu0 0.0
    %1769 = vmatprep.subr.mxu0 0.0
    %1770 = vmatpush1.msra.mxu0 0.0
    %1771 = vmatprep.subr.mxu0 0.0
    %1772 = vmatpush1.msra.mxu0 0.0
    %1773 = vmatprep.subr.mxu0 0.0
    %1774 = vmatpush1.msra.mxu0 0.0
    %1775 = vmatprep.subr.mxu0 0.0
    %1776 = vmatpush1.msra.mxu0 0.0
    %1777 = vmatprep.subr.mxu0 0.0
    %1778 = vmatpush1.msra.mxu0 0.0
    %1779 = vmatprep.subr.mxu0 0.0
    %1780 = vmatpush1.msra.mxu0 0.0
    %1781 = vmatprep.subr.mxu0 0.0
    %1782 = vmatpush1.msra.mxu0 0.0
    %1783 = vmatprep.subr.mxu0 0.0
    %1784 = vmatpush1.msra.mxu0 0.0
    %1785 = vmatprep.subr.mxu0 0.0
    %1786 = vmatpush1.msra.mxu0 0.0
    %1787 = vmatprep.subr.mxu0 0.0
    %1788 = vmatpush1.msra.mxu0 0.0
    %1789 = vmatprep.subr.mxu0 0.0
    %1790 = vmatpush1.msra.mxu0 0.0
    %1791 = vmatprep.subr.mxu0 0.0
    %1792 = vmatpush1.msra.mxu0 0.0
    %1793 = vmatprep.subr.mxu0 0.0
    %1794 = vmatpush1.msra.mxu0 0.0
    %1795 = vmatprep.subr.mxu0 0.0
    %1796 = vmatpush1.msra.mxu0 0.0
    %1797 = vmatprep.subr.mxu0 0.0
    %1798 = vmatpush1.msra.mxu0 0.0
    %1799 = vmatprep.subr.mxu0 0.0
    %1800 = vmatpush1.msra.mxu0 0.0
    %1801 = vmatprep.subr.mxu0 0.0
    %1802 = vmatpush1.msra.mxu0 0.0
    %1803 = vmatprep.subr.mxu0 0.0
    %1804 = vmatpush1.msra.mxu0 0.0
    %1805 = vmatprep.subr.mxu0 0.0
    %1806 = vmatpush1.msra.mxu0 0.0
    %1807 = vmatprep.mubr.f32.mxu0 0.0
    %1808 = vmatmul.mubr.f32.gmra.mrb[0].mxu0 %v141
    %v1809 = vpop.f32.mrb[0].mxu0
    %v1810 = vadd.f32 %v482, %v1809
    %v1811 = vpop.f32.mrb[0].mxu0
    %1812 = vmatprep.mubr.f32.mxu0 0.0
    %1813 = vmatmul.mubr.f32.gmra.mrb[0].mxu0 %v144
    %v1814 = vpop.f32.mrb[0].mxu0
    %v1815 = vadd.f32 %v482, %v1814
    %v1816 = vpop.f32.mrb[0].mxu0
    %1817 = vdwg.mxu0
    %v1818 = vmax.f32 %v1810, 0.0
    %v1819 = vmax.f32 %v1815, 0.0
    %v1821 = vrot.slane %v1818, 1
    %v1822 = vsel %vm315, %v1821, 0
    %1824 = vmatprep.subr.mxu0 0.0
    %1825 = vmatpush1.msra.mxu0 %v417
    %1826 = vmatprep.subr.mxu0 0.0
    %1827 = vmatpush1.msra.mxu0 %v418
    %1828 = vmatprep.subr.mxu0 0.0
    %1829 = vmatpush1.msra.mxu0 %v419
    %1830 = vmatprep.subr.mxu0 0.0
    %1831 = vmatpush1.msra.mxu0 %v420
    %1832 = vmatprep.subr.mxu0 0.0
    %1833 = vmatpush1.msra.mxu0 0.0
    %1834 = vmatprep.subr.mxu0 0.0
    %1835 = vmatpush1.msra.mxu0 0.0
    %1836 = vmatprep.subr.mxu0 0.0
    %1837 = vmatpush1.msra.mxu0 0.0
    %1838 = vmatprep.subr.mxu0 0.0
    %1839 = vmatpush1.msra.mxu0 0.0
    %1840 = vmatprep.subr.mxu0 0.0
    %1841 = vmatpush1.msra.mxu0 0.0
    %1842 = vmatprep.subr.mxu0 0.0
    %1843 = vmatpush1.msra.mxu0 0.0
    %1844 = vmatprep.subr.mxu0 0.0
    %1845 = vmatpush1.msra.mxu0 0.0
    %1846 = vmatprep.subr.mxu0 0.0
    %1847 = vmatpush1.msra.mxu0 0.0
    %1848 = vmatprep.subr.mxu0 0.0
    %1849 = vmatpush1.msra.mxu0 0.0
    %1850 = vmatprep.subr.mxu0 0.0
    %1851 = vmatpush1.msra.mxu0 0.0
    %1852 = vmatprep.subr.mxu0 0.0
    %1853 = vmatpush1.msra.mxu0 0.0
    %1854 = vmatprep.subr.mxu0 0.0
    %1855 = vmatpush1.msra.mxu0 0.0
    %1856 = vmatprep.subr.mxu0 0.0
    %1857 = vmatpush1.msra.mxu0 0.0
    %1858 = vmatprep.subr.mxu0 0.0
    %1859 = vmatpush1.msra.mxu0 0.0
    %1860 = vmatprep.subr.mxu0 0.0
    %1861 = vmatpush1.msra.mxu0 0.0
    %1862 = vmatprep.subr.mxu0 0.0
    %1863 = vmatpush1.msra.mxu0 0.0
    %1864 = vmatprep.subr.mxu0 0.0
    %1865 = vmatpush1.msra.mxu0 0.0
    %1866 = vmatprep.subr.mxu0 0.0
    %1867 = vmatpush1.msra.mxu0 0.0
    %1868 = vmatprep.subr.mxu0 0.0
    %1869 = vmatpush1.msra.mxu0 0.0
    %1870 = vmatprep.subr.mxu0 0.0
    %1871 = vmatpush1.msra.mxu0 0.0
    %1872 = vmatprep.subr.mxu0 0.0
    %1873 = vmatpush1.msra.mxu0 0.0
    %1874 = vmatprep.subr.mxu0 0.0
    %1875 = vmatpush1.msra.mxu0 0.0
    %1876 = vmatprep.subr.mxu0 0.0
    %1877 = vmatpush1.msra.mxu0 0.0
    %1878 = vmatprep.subr.mxu0 0.0
    %1879 = vmatpush1.msra.mxu0 0.0
    %1880 = vmatprep.subr.mxu0 0.0
    %1881 = vmatpush1.msra.mxu0 0.0
    %1882 = vmatprep.subr.mxu0 0.0
    %1883 = vmatpush1.msra.mxu0 0.0
    %1884 = vmatprep.subr.mxu0 0.0
    %1885 = vmatpush1.msra.mxu0 0.0
    %1886 = vmatprep.subr.mxu0 0.0
    %1887 = vmatpush1.msra.mxu0 0.0
    %1888 = vmatprep.mubr.f32.mxu0 0.0
    %1889 = vmatmul.mubr.f32.gmra.mrb[0].mxu0 %v1822
    %v1890 = vpop.f32.mrb[0].mxu0
    %v1891 = vadd.f32 0.0, %v1890
    %v1892 = vpop.f32.mrb[0].mxu0
    %1893 = vdwg.mxu0
    %v1894 = vsel %vm315, %v1818, 0
    %1896 = vmatprep.subr.mxu0 0.0
    %1897 = vmatpush1.msra.mxu0 %v413
    %1898 = vmatprep.subr.mxu0 0.0
    %1899 = vmatpush1.msra.mxu0 %v414
    %1900 = vmatprep.subr.mxu0 0.0
    %1901 = vmatpush1.msra.mxu0 %v415
    %1902 = vmatprep.subr.mxu0 0.0
    %1903 = vmatpush1.msra.mxu0 %v416
    %1904 = vmatprep.subr.mxu0 0.0
    %1905 = vmatpush1.msra.mxu0 0.0
    %1906 = vmatprep.subr.mxu0 0.0
    %1907 = vmatpush1.msra.mxu0 0.0
    %1908 = vmatprep.subr.mxu0 0.0
    %1909 = vmatpush1.msra.mxu0 0.0
    %1910 = vmatprep.subr.mxu0 0.0
    %1911 = vmatpush1.msra.mxu0 0.0
    %1912 = vmatprep.subr.mxu0 0.0
    %1913 = vmatpush1.msra.mxu0 0.0
    %1914 = vmatprep.subr.mxu0 0.0
    %1915 = vmatpush1.msra.mxu0 0.0
    %1916 = vmatprep.subr.mxu0 0.0
    %1917 = vmatpush1.msra.mxu0 0.0
    %1918 = vmatprep.subr.mxu0 0.0
    %1919 = vmatpush1.msra.mxu0 0.0
    %1920 = vmatprep.subr.mxu0 0.0
    %1921 = vmatpush1.msra.mxu0 0.0
    %1922 = vmatprep.subr.mxu0 0.0
    %1923 = vmatpush1.msra.mxu0 0.0
    %1924 = vmatprep.subr.mxu0 0.0
    %1925 = vmatpush1.msra.mxu0 0.0
    %1926 = vmatprep.subr.mxu0 0.0
    %1927 = vmatpush1.msra.mxu0 0.0
    %1928 = vmatprep.subr.mxu0 0.0
    %1929 = vmatpush1.msra.mxu0 0.0
    %1930 = vmatprep.subr.mxu0 0.0
    %1931 = vmatpush1.msra.mxu0 0.0
    %1932 = vmatprep.subr.mxu0 0.0
    %1933 = vmatpush1.msra.mxu0 0.0
    %1934 = vmatprep.subr.mxu0 0.0
    %1935 = vmatpush1.msra.mxu0 0.0
    %1936 = vmatprep.subr.mxu0 0.0
    %1937 = vmatpush1.msra.mxu0 0.0
    %1938 = vmatprep.subr.mxu0 0.0
    %1939 = vmatpush1.msra.mxu0 0.0
    %1940 = vmatprep.subr.mxu0 0.0
    %1941 = vmatpush1.msra.mxu0 0.0
    %1942 = vmatprep.subr.mxu0 0.0
    %1943 = vmatpush1.msra.mxu0 0.0
    %1944 = vmatprep.subr.mxu0 0.0
    %1945 = vmatpush1.msra.mxu0 0.0
    %1946 = vmatprep.subr.mxu0 0.0
    %1947 = vmatpush1.msra.mxu0 0.0
    %1948 = vmatprep.subr.mxu0 0.0
    %1949 = vmatpush1.msra.mxu0 0.0
    %1950 = vmatprep.subr.mxu0 0.0
    %1951 = vmatpush1.msra.mxu0 0.0
    %1952 = vmatprep.subr.mxu0 0.0
    %1953 = vmatpush1.msra.mxu0 0.0
    %1954 = vmatprep.subr.mxu0 0.0
    %1955 = vmatpush1.msra.mxu0 0.0
    %1956 = vmatprep.subr.mxu0 0.0
    %1957 = vmatpush1.msra.mxu0 0.0
    %1958 = vmatprep.subr.mxu0 0.0
    %1959 = vmatpush1.msra.mxu0 0.0
    %1960 = vmatprep.mubr.f32.mxu0 0.0
    %1961 = vmatmul.mubr.f32.gmra.mrb[0].mxu0 %v1894
    %v1962 = vpop.f32.mrb[0].mxu0
    %v1963 = vadd.f32 %v1891, %v1962
    %v1964 = vpop.f32.mrb[0].mxu0
    %1965 = vdwg.mxu0
    %v1966 = vrot.slane %v1818, 2
    %v1967 = vsel %vm315, %v1966, 0
    %1969 = vmatprep.subr.mxu0 0.0
    %1970 = vmatpush1.msra.mxu0 %v421
    %1971 = vmatprep.subr.mxu0 0.0
    %1972 = vmatpush1.msra.mxu0 %v422
    %1973 = vmatprep.subr.mxu0 0.0
    %1974 = vmatpush1.msra.mxu0 %v423
    %1975 = vmatprep.subr.mxu0 0.0
    %1976 = vmatpush1.msra.mxu0 %v424
    %1977 = vmatprep.subr.mxu0 0.0
    %1978 = vmatpush1.msra.mxu0 0.0
    %1979 = vmatprep.subr.mxu0 0.0
    %1980 = vmatpush1.msra.mxu0 0.0
    %1981 = vmatprep.subr.mxu0 0.0
    %1982 = vmatpush1.msra.mxu0 0.0
    %1983 = vmatprep.subr.mxu0 0.0
    %1984 = vmatpush1.msra.mxu0 0.0
    %1985 = vmatprep.subr.mxu0 0.0
    %1986 = vmatpush1.msra.mxu0 0.0
    %1987 = vmatprep.subr.mxu0 0.0
    %1988 = vmatpush1.msra.mxu0 0.0
    %1989 = vmatprep.subr.mxu0 0.0
    %1990 = vmatpush1.msra.mxu0 0.0
    %1991 = vmatprep.subr.mxu0 0.0
    %1992 = vmatpush1.msra.mxu0 0.0
    %1993 = vmatprep.subr.mxu0 0.0
    %1994 = vmatpush1.msra.mxu0 0.0
    %1995 = vmatprep.subr.mxu0 0.0
    %1996 = vmatpush1.msra.mxu0 0.0
    %1997 = vmatprep.subr.mxu0 0.0
    %1998 = vmatpush1.msra.mxu0 0.0
    %1999 = vmatprep.subr.mxu0 0.0
    %2000 = vmatpush1.msra.mxu0 0.0
    %2001 = vmatprep.subr.mxu0 0.0
    %2002 = vmatpush1.msra.mxu0 0.0
    %2003 = vmatprep.subr.mxu0 0.0
    %2004 = vmatpush1.msra.mxu0 0.0
    %2005 = vmatprep.subr.mxu0 0.0
    %2006 = vmatpush1.msra.mxu0 0.0
    %2007 = vmatprep.subr.mxu0 0.0
    %2008 = vmatpush1.msra.mxu0 0.0
    %2009 = vmatprep.subr.mxu0 0.0
    %2010 = vmatpush1.msra.mxu0 0.0
    %2011 = vmatprep.subr.mxu0 0.0
    %2012 = vmatpush1.msra.mxu0 0.0
    %2013 = vmatprep.subr.mxu0 0.0
    %2014 = vmatpush1.msra.mxu0 0.0
    %2015 = vmatprep.subr.mxu0 0.0
    %2016 = vmatpush1.msra.mxu0 0.0
    %2017 = vmatprep.subr.mxu0 0.0
    %2018 = vmatpush1.msra.mxu0 0.0
    %2019 = vmatprep.subr.mxu0 0.0
    %2020 = vmatpush1.msra.mxu0 0.0
    %2021 = vmatprep.subr.mxu0 0.0
    %2022 = vmatpush1.msra.mxu0 0.0
    %2023 = vmatprep.subr.mxu0 0.0
    %2024 = vmatpush1.msra.mxu0 0.0
    %2025 = vmatprep.subr.mxu0 0.0
    %2026 = vmatpush1.msra.mxu0 0.0
    %2027 = vmatprep.subr.mxu0 0.0
    %2028 = vmatpush1.msra.mxu0 0.0
    %2029 = vmatprep.subr.mxu0 0.0
    %2030 = vmatpush1.msra.mxu0 0.0
    %2031 = vmatprep.subr.mxu0 0.0
    %2032 = vmatpush1.msra.mxu0 0.0
    %2033 = vmatprep.mubr.f32.mxu0 0.0
    %2034 = vmatmul.mubr.f32.gmra.mrb[0].mxu0 %v1967
    %v2035 = vpop.f32.mrb[0].mxu0
    %v2036 = vadd.f32 0.0, %v2035
    %v2037 = vpop.f32.mrb[0].mxu0
    %2038 = vdwg.mxu0
    %v2039 = vadd.f32 %v1963, %v2036
    %v2040 = vrot.slane %v1818, 3
    %v2041 = vsel %vm315, %v2040, 0
    %2043 = vmatprep.subr.mxu0 0.0
    %2044 = vmatpush1.msra.mxu0 %v425
    %2045 = vmatprep.subr.mxu0 0.0
    %2046 = vmatpush1.msra.mxu0 %v426
    %2047 = vmatprep.subr.mxu0 0.0
    %2048 = vmatpush1.msra.mxu0 %v427
    %2049 = vmatprep.subr.mxu0 0.0
    %2050 = vmatpush1.msra.mxu0 %v428
    %2051 = vmatprep.subr.mxu0 0.0
    %2052 = vmatpush1.msra.mxu0 0.0
    %2053 = vmatprep.subr.mxu0 0.0
    %2054 = vmatpush1.msra.mxu0 0.0
    %2055 = vmatprep.subr.mxu0 0.0
    %2056 = vmatpush1.msra.mxu0 0.0
    %2057 = vmatprep.subr.mxu0 0.0
    %2058 = vmatpush1.msra.mxu0 0.0
    %2059 = vmatprep.subr.mxu0 0.0
    %2060 = vmatpush1.msra.mxu0 0.0
    %2061 = vmatprep.subr.mxu0 0.0
    %2062 = vmatpush1.msra.mxu0 0.0
    %2063 = vmatprep.subr.mxu0 0.0
    %2064 = vmatpush1.msra.mxu0 0.0
    %2065 = vmatprep.subr.mxu0 0.0
    %2066 = vmatpush1.msra.mxu0 0.0
    %2067 = vmatprep.subr.mxu0 0.0
    %2068 = vmatpush1.msra.mxu0 0.0
    %2069 = vmatprep.subr.mxu0 0.0
    %2070 = vmatpush1.msra.mxu0 0.0
    %2071 = vmatprep.subr.mxu0 0.0
    %2072 = vmatpush1.msra.mxu0 0.0
    %2073 = vmatprep.subr.mxu0 0.0
    %2074 = vmatpush1.msra.mxu0 0.0
    %2075 = vmatprep.subr.mxu0 0.0
    %2076 = vmatpush1.msra.mxu0 0.0
    %2077 = vmatprep.subr.mxu0 0.0
    %2078 = vmatpush1.msra.mxu0 0.0
    %2079 = vmatprep.subr.mxu0 0.0
    %2080 = vmatpush1.msra.mxu0 0.0
    %2081 = vmatprep.subr.mxu0 0.0
    %2082 = vmatpush1.msra.mxu0 0.0
    %2083 = vmatprep.subr.mxu0 0.0
    %2084 = vmatpush1.msra.mxu0 0.0
    %2085 = vmatprep.subr.mxu0 0.0
    %2086 = vmatpush1.msra.mxu0 0.0
    %2087 = vmatprep.subr.mxu0 0.0
    %2088 = vmatpush1.msra.mxu0 0.0
    %2089 = vmatprep.subr.mxu0 0.0
    %2090 = vmatpush1.msra.mxu0 0.0
    %2091 = vmatprep.subr.mxu0 0.0
    %2092 = vmatpush1.msra.mxu0 0.0
    %2093 = vmatprep.subr.mxu0 0.0
    %2094 = vmatpush1.msra.mxu0 0.0
    %2095 = vmatprep.subr.mxu0 0.0
    %2096 = vmatpush1.msra.mxu0 0.0
    %2097 = vmatprep.subr.mxu0 0.0
    %2098 = vmatpush1.msra.mxu0 0.0
    %2099 = vmatprep.subr.mxu0 0.0
    %2100 = vmatpush1.msra.mxu0 0.0
    %2101 = vmatprep.subr.mxu0 0.0
    %2102 = vmatpush1.msra.mxu0 0.0
    %2103 = vmatprep.subr.mxu0 0.0
    %2104 = vmatpush1.msra.mxu0 0.0
    %2105 = vmatprep.subr.mxu0 0.0
    %2106 = vmatpush1.msra.mxu0 0.0
    %2107 = vmatprep.mubr.f32.mxu0 0.0
    %2108 = vmatmul.mubr.f32.gmra.mrb[0].mxu0 %v2041
    %v2109 = vpop.f32.mrb[0].mxu0
    %v2110 = vadd.f32 0.0, %v2109
    %v2111 = vpop.f32.mrb[0].mxu0
    %2112 = vdwg.mxu0
    %v2113 = vadd.f32 %v2039, %v2110
    %v2114 = vrot.slane %v1818, 4
    %v2115 = vsel %vm315, %v2114, 0
    %2117 = vmatprep.subr.mxu0 0.0
    %2118 = vmatpush1.msra.mxu0 %v429
    %2119 = vmatprep.subr.mxu0 0.0
    %2120 = vmatpush1.msra.mxu0 %v430
    %2121 = vmatprep.subr.mxu0 0.0
    %2122 = vmatpush1.msra.mxu0 %v431
    %2123 = vmatprep.subr.mxu0 0.0
    %2124 = vmatpush1.msra.mxu0 %v432
    %2125 = vmatprep.subr.mxu0 0.0
    %2126 = vmatpush1.msra.mxu0 0.0
    %2127 = vmatprep.subr.mxu0 0.0
    %2128 = vmatpush1.msra.mxu0 0.0
    %2129 = vmatprep.subr.mxu0 0.0
    %2130 = vmatpush1.msra.mxu0 0.0
    %2131 = vmatprep.subr.mxu0 0.0
    %2132 = vmatpush1.msra.mxu0 0.0
    %2133 = vmatprep.subr.mxu0 0.0
    %2134 = vmatpush1.msra.mxu0 0.0
    %2135 = vmatprep.subr.mxu0 0.0
    %2136 = vmatpush1.msra.mxu0 0.0
    %2137 = vmatprep.subr.mxu0 0.0
    %2138 = vmatpush1.msra.mxu0 0.0
    %2139 = vmatprep.subr.mxu0 0.0
    %2140 = vmatpush1.msra.mxu0 0.0
    %2141 = vmatprep.subr.mxu0 0.0
    %2142 = vmatpush1.msra.mxu0 0.0
    %2143 = vmatprep.subr.mxu0 0.0
    %2144 = vmatpush1.msra.mxu0 0.0
    %2145 = vmatprep.subr.mxu0 0.0
    %2146 = vmatpush1.msra.mxu0 0.0
    %2147 = vmatprep.subr.mxu0 0.0
    %2148 = vmatpush1.msra.mxu0 0.0
    %2149 = vmatprep.subr.mxu0 0.0
    %2150 = vmatpush1.msra.mxu0 0.0
    %2151 = vmatprep.subr.mxu0 0.0
    %2152 = vmatpush1.msra.mxu0 0.0
    %2153 = vmatprep.subr.mxu0 0.0
    %2154 = vmatpush1.msra.mxu0 0.0
    %2155 = vmatprep.subr.mxu0 0.0
    %2156 = vmatpush1.msra.mxu0 0.0
    %2157 = vmatprep.subr.mxu0 0.0
    %2158 = vmatpush1.msra.mxu0 0.0
    %2159 = vmatprep.subr.mxu0 0.0
    %2160 = vmatpush1.msra.mxu0 0.0
    %2161 = vmatprep.subr.mxu0 0.0
    %2162 = vmatpush1.msra.mxu0 0.0
    %2163 = vmatprep.subr.mxu0 0.0
    %2164 = vmatpush1.msra.mxu0 0.0
    %2165 = vmatprep.subr.mxu0 0.0
    %2166 = vmatpush1.msra.mxu0 0.0
    %2167 = vmatprep.subr.mxu0 0.0
    %2168 = vmatpush1.msra.mxu0 0.0
    %2169 = vmatprep.subr.mxu0 0.0
    %2170 = vmatpush1.msra.mxu0 0.0
    %2171 = vmatprep.subr.mxu0 0.0
    %2172 = vmatpush1.msra.mxu0 0.0
    %2173 = vmatprep.subr.mxu0 0.0
    %2174 = vmatpush1.msra.mxu0 0.0
    %2175 = vmatprep.subr.mxu0 0.0
    %2176 = vmatpush1.msra.mxu0 0.0
    %2177 = vmatprep.subr.mxu0 0.0
    %2178 = vmatpush1.msra.mxu0 0.0
    %2179 = vmatprep.subr.mxu0 0.0
    %2180 = vmatpush1.msra.mxu0 0.0
    %2181 = vmatprep.mubr.f32.mxu0 0.0
    %2182 = vmatmul.mubr.f32.gmra.mrb[0].mxu0 %v2115
    %v2183 = vpop.f32.mrb[0].mxu0
    %v2184 = vadd.f32 0.0, %v2183
    %v2185 = vpop.f32.mrb[0].mxu0
    %2186 = vdwg.mxu0
    %v2187 = vadd.f32 %v2113, %v2184
    %v2188 = vrot.slane %v1818, 5
    %v2189 = vsel %vm315, %v2188, 0
    %2191 = vmatprep.subr.mxu0 0.0
    %2192 = vmatpush1.msra.mxu0 %v433
    %2193 = vmatprep.subr.mxu0 0.0
    %2194 = vmatpush1.msra.mxu0 %v434
    %2195 = vmatprep.subr.mxu0 0.0
    %2196 = vmatpush1.msra.mxu0 %v435
    %2197 = vmatprep.subr.mxu0 0.0
    %2198 = vmatpush1.msra.mxu0 %v436
    %2199 = vmatprep.subr.mxu0 0.0
    %2200 = vmatpush1.msra.mxu0 0.0
    %2201 = vmatprep.subr.mxu0 0.0
    %2202 = vmatpush1.msra.mxu0 0.0
    %2203 = vmatprep.subr.mxu0 0.0
    %2204 = vmatpush1.msra.mxu0 0.0
    %2205 = vmatprep.subr.mxu0 0.0
    %2206 = vmatpush1.msra.mxu0 0.0
    %2207 = vmatprep.subr.mxu0 0.0
    %2208 = vmatpush1.msra.mxu0 0.0
    %2209 = vmatprep.subr.mxu0 0.0
    %2210 = vmatpush1.msra.mxu0 0.0
    %2211 = vmatprep.subr.mxu0 0.0
    %2212 = vmatpush1.msra.mxu0 0.0
    %2213 = vmatprep.subr.mxu0 0.0
    %2214 = vmatpush1.msra.mxu0 0.0
    %2215 = vmatprep.subr.mxu0 0.0
    %2216 = vmatpush1.msra.mxu0 0.0
    %2217 = vmatprep.subr.mxu0 0.0
    %2218 = vmatpush1.msra.mxu0 0.0
    %2219 = vmatprep.subr.mxu0 0.0
    %2220 = vmatpush1.msra.mxu0 0.0
    %2221 = vmatprep.subr.mxu0 0.0
    %2222 = vmatpush1.msra.mxu0 0.0
    %2223 = vmatprep.subr.mxu0 0.0
    %2224 = vmatpush1.msra.mxu0 0.0
    %2225 = vmatprep.subr.mxu0 0.0
    %2226 = vmatpush1.msra.mxu0 0.0
    %2227 = vmatprep.subr.mxu0 0.0
    %2228 = vmatpush1.msra.mxu0 0.0
    %2229 = vmatprep.subr.mxu0 0.0
    %2230 = vmatpush1.msra.mxu0 0.0
    %2231 = vmatprep.subr.mxu0 0.0
    %2232 = vmatpush1.msra.mxu0 0.0
    %2233 = vmatprep.subr.mxu0 0.0
    %2234 = vmatpush1.msra.mxu0 0.0
    %2235 = vmatprep.subr.mxu0 0.0
    %2236 = vmatpush1.msra.mxu0 0.0
    %2237 = vmatprep.subr.mxu0 0.0
    %2238 = vmatpush1.msra.mxu0 0.0
    %2239 = vmatprep.subr.mxu0 0.0
    %2240 = vmatpush1.msra.mxu0 0.0
    %2241 = vmatprep.subr.mxu0 0.0
    %2242 = vmatpush1.msra.mxu0 0.0
    %2243 = vmatprep.subr.mxu0 0.0
    %2244 = vmatpush1.msra.mxu0 0.0
    %2245 = vmatprep.subr.mxu0 0.0
    %2246 = vmatpush1.msra.mxu0 0.0
    %2247 = vmatprep.subr.mxu0 0.0
    %2248 = vmatpush1.msra.mxu0 0.0
    %2249 = vmatprep.subr.mxu0 0.0
    %2250 = vmatpush1.msra.mxu0 0.0
    %2251 = vmatprep.subr.mxu0 0.0
    %2252 = vmatpush1.msra.mxu0 0.0
    %2253 = vmatprep.subr.mxu0 0.0
    %2254 = vmatpush1.msra.mxu0 0.0
    %2255 = vmatprep.mubr.f32.mxu0 0.0
    %2256 = vmatmul.mubr.f32.gmra.mrb[0].mxu0 %v2189
    %v2257 = vpop.f32.mrb[0].mxu0
    %v2258 = vadd.f32 0.0, %v2257
    %v2259 = vpop.f32.mrb[0].mxu0
    %2260 = vdwg.mxu0
    %v2261 = vadd.f32 %v2187, %v2258
    %v2262 = vrot.slane %v1818, 6
    %v2263 = vsel %vm315, %v2262, 0
    %2265 = vmatprep.subr.mxu0 0.0
    %2266 = vmatpush1.msra.mxu0 %v437
    %2267 = vmatprep.subr.mxu0 0.0
    %2268 = vmatpush1.msra.mxu0 %v438
    %2269 = vmatprep.subr.mxu0 0.0
    %2270 = vmatpush1.msra.mxu0 %v439
    %2271 = vmatprep.subr.mxu0 0.0
    %2272 = vmatpush1.msra.mxu0 %v440
    %2273 = vmatprep.subr.mxu0 0.0
    %2274 = vmatpush1.msra.mxu0 0.0
    %2275 = vmatprep.subr.mxu0 0.0
    %2276 = vmatpush1.msra.mxu0 0.0
    %2277 = vmatprep.subr.mxu0 0.0
    %2278 = vmatpush1.msra.mxu0 0.0
    %2279 = vmatprep.subr.mxu0 0.0
    %2280 = vmatpush1.msra.mxu0 0.0
    %2281 = vmatprep.subr.mxu0 0.0
    %2282 = vmatpush1.msra.mxu0 0.0
    %2283 = vmatprep.subr.mxu0 0.0
    %2284 = vmatpush1.msra.mxu0 0.0
    %2285 = vmatprep.subr.mxu0 0.0
    %2286 = vmatpush1.msra.mxu0 0.0
    %2287 = vmatprep.subr.mxu0 0.0
    %2288 = vmatpush1.msra.mxu0 0.0
    %2289 = vmatprep.subr.mxu0 0.0
    %2290 = vmatpush1.msra.mxu0 0.0
    %2291 = vmatprep.subr.mxu0 0.0
    %2292 = vmatpush1.msra.mxu0 0.0
    %2293 = vmatprep.subr.mxu0 0.0
    %2294 = vmatpush1.msra.mxu0 0.0
    %2295 = vmatprep.subr.mxu0 0.0
    %2296 = vmatpush1.msra.mxu0 0.0
    %2297 = vmatprep.subr.mxu0 0.0
    %2298 = vmatpush1.msra.mxu0 0.0
    %2299 = vmatprep.subr.mxu0 0.0
    %2300 = vmatpush1.msra.mxu0 0.0
    %2301 = vmatprep.subr.mxu0 0.0
    %2302 = vmatpush1.msra.mxu0 0.0
    %2303 = vmatprep.subr.mxu0 0.0
    %2304 = vmatpush1.msra.mxu0 0.0
    %2305 = vmatprep.subr.mxu0 0.0
    %2306 = vmatpush1.msra.mxu0 0.0
    %2307 = vmatprep.subr.mxu0 0.0
    %2308 = vmatpush1.msra.mxu0 0.0
    %2309 = vmatprep.subr.mxu0 0.0
    %2310 = vmatpush1.msra.mxu0 0.0
    %2311 = vmatprep.subr.mxu0 0.0
    %2312 = vmatpush1.msra.mxu0 0.0
    %2313 = vmatprep.subr.mxu0 0.0
    %2314 = vmatpush1.msra.mxu0 0.0
    %2315 = vmatprep.subr.mxu0 0.0
    %2316 = vmatpush1.msra.mxu0 0.0
    %2317 = vmatprep.subr.mxu0 0.0
    %2318 = vmatpush1.msra.mxu0 0.0
    %2319 = vmatprep.subr.mxu0 0.0
    %2320 = vmatpush1.msra.mxu0 0.0
    %2321 = vmatprep.subr.mxu0 0.0
    %2322 = vmatpush1.msra.mxu0 0.0
    %2323 = vmatprep.subr.mxu0 0.0
    %2324 = vmatpush1.msra.mxu0 0.0
    %2325 = vmatprep.subr.mxu0 0.0
    %2326 = vmatpush1.msra.mxu0 0.0
    %2327 = vmatprep.subr.mxu0 0.0
    %2328 = vmatpush1.msra.mxu0 0.0
    %2329 = vmatprep.mubr.f32.mxu0 0.0
    %2330 = vmatmul.mubr.f32.gmra.mrb[0].mxu0 %v2263
    %v2331 = vpop.f32.mrb[0].mxu0
    %v2332 = vadd.f32 0.0, %v2331
    %v2333 = vpop.f32.mrb[0].mxu0
    %2334 = vdwg.mxu0
    %v2335 = vadd.f32 %v2261, %v2332
    %v2336 = vrot.slane %v1818, 7
    %v2337 = vsel %vm315, %v2336, 0
    %2339 = vmatprep.subr.mxu0 0.0
    %2340 = vmatpush1.msra.mxu0 %v441
    %2341 = vmatprep.subr.mxu0 0.0
    %2342 = vmatpush1.msra.mxu0 %v442
    %2343 = vmatprep.subr.mxu0 0.0
    %2344 = vmatpush1.msra.mxu0 %v443
    %2345 = vmatprep.subr.mxu0 0.0
    %2346 = vmatpush1.msra.mxu0 %v444
    %2347 = vmatprep.subr.mxu0 0.0
    %2348 = vmatpush1.msra.mxu0 0.0
    %2349 = vmatprep.subr.mxu0 0.0
    %2350 = vmatpush1.msra.mxu0 0.0
    %2351 = vmatprep.subr.mxu0 0.0
    %2352 = vmatpush1.msra.mxu0 0.0
    %2353 = vmatprep.subr.mxu0 0.0
    %2354 = vmatpush1.msra.mxu0 0.0
    %2355 = vmatprep.subr.mxu0 0.0
    %2356 = vmatpush1.msra.mxu0 0.0
    %2357 = vmatprep.subr.mxu0 0.0
    %2358 = vmatpush1.msra.mxu0 0.0
    %2359 = vmatprep.subr.mxu0 0.0
    %2360 = vmatpush1.msra.mxu0 0.0
    %2361 = vmatprep.subr.mxu0 0.0
    %2362 = vmatpush1.msra.mxu0 0.0
    %2363 = vmatprep.subr.mxu0 0.0
    %2364 = vmatpush1.msra.mxu0 0.0
    %2365 = vmatprep.subr.mxu0 0.0
    %2366 = vmatpush1.msra.mxu0 0.0
    %2367 = vmatprep.subr.mxu0 0.0
    %2368 = vmatpush1.msra.mxu0 0.0
    %2369 = vmatprep.subr.mxu0 0.0
    %2370 = vmatpush1.msra.mxu0 0.0
    %2371 = vmatprep.subr.mxu0 0.0
    %2372 = vmatpush1.msra.mxu0 0.0
    %2373 = vmatprep.subr.mxu0 0.0
    %2374 = vmatpush1.msra.mxu0 0.0
    %2375 = vmatprep.subr.mxu0 0.0
    %2376 = vmatpush1.msra.mxu0 0.0
    %2377 = vmatprep.subr.mxu0 0.0
    %2378 = vmatpush1.msra.mxu0 0.0
    %2379 = vmatprep.subr.mxu0 0.0
    %2380 = vmatpush1.msra.mxu0 0.0
    %2381 = vmatprep.subr.mxu0 0.0
    %2382 = vmatpush1.msra.mxu0 0.0
    %2383 = vmatprep.subr.mxu0 0.0
    %2384 = vmatpush1.msra.mxu0 0.0
    %2385 = vmatprep.subr.mxu0 0.0
    %2386 = vmatpush1.msra.mxu0 0.0
    %2387 = vmatprep.subr.mxu0 0.0
    %2388 = vmatpush1.msra.mxu0 0.0
    %2389 = vmatprep.subr.mxu0 0.0
    %2390 = vmatpush1.msra.mxu0 0.0
    %2391 = vmatprep.subr.mxu0 0.0
    %2392 = vmatpush1.msra.mxu0 0.0
    %2393 = vmatprep.subr.mxu0 0.0
    %2394 = vmatpush1.msra.mxu0 0.0
    %2395 = vmatprep.subr.mxu0 0.0
    %2396 = vmatpush1.msra.mxu0 0.0
    %2397 = vmatprep.subr.mxu0 0.0
    %2398 = vmatpush1.msra.mxu0 0.0
    %2399 = vmatprep.subr.mxu0 0.0
    %2400 = vmatpush1.msra.mxu0 0.0
    %2401 = vmatprep.subr.mxu0 0.0
    %2402 = vmatpush1.msra.mxu0 0.0
    %2403 = vmatprep.mubr.f32.mxu0 0.0
    %2404 = vmatmul.mubr.f32.gmra.mrb[0].mxu0 %v2337
    %v2405 = vpop.f32.mrb[0].mxu0
    %v2406 = vadd.f32 0.0, %v2405
    %v2407 = vpop.f32.mrb[0].mxu0
    %2408 = vdwg.mxu0
    %v2409 = vadd.f32 %v2335, %v2406
    %v2411 = vsel %vm315, %v1819, 0
    %2413 = vmatprep.subr.mxu0 0.0
    %2414 = vmatpush1.msra.mxu0 %v445
    %2415 = vmatprep.subr.mxu0 0.0
    %2416 = vmatpush1.msra.mxu0 %v446
    %2417 = vmatprep.subr.mxu0 0.0
    %2418 = vmatpush1.msra.mxu0 %v447
    %2419 = vmatprep.subr.mxu0 0.0
    %2420 = vmatpush1.msra.mxu0 %v448
    %2421 = vmatprep.subr.mxu0 0.0
    %2422 = vmatpush1.msra.mxu0 0.0
    %2423 = vmatprep.subr.mxu0 0.0
    %2424 = vmatpush1.msra.mxu0 0.0
    %2425 = vmatprep.subr.mxu0 0.0
    %2426 = vmatpush1.msra.mxu0 0.0
    %2427 = vmatprep.subr.mxu0 0.0
    %2428 = vmatpush1.msra.mxu0 0.0
    %2429 = vmatprep.subr.mxu0 0.0
    %2430 = vmatpush1.msra.mxu0 0.0
    %2431 = vmatprep.subr.mxu0 0.0
    %2432 = vmatpush1.msra.mxu0 0.0
    %2433 = vmatprep.subr.mxu0 0.0
    %2434 = vmatpush1.msra.mxu0 0.0
    %2435 = vmatprep.subr.mxu0 0.0
    %2436 = vmatpush1.msra.mxu0 0.0
    %2437 = vmatprep.subr.mxu0 0.0
    %2438 = vmatpush1.msra.mxu0 0.0
    %2439 = vmatprep.subr.mxu0 0.0
    %2440 = vmatpush1.msra.mxu0 0.0
    %2441 = vmatprep.subr.mxu0 0.0
    %2442 = vmatpush1.msra.mxu0 0.0
    %2443 = vmatprep.subr.mxu0 0.0
    %2444 = vmatpush1.msra.mxu0 0.0
    %2445 = vmatprep.subr.mxu0 0.0
    %2446 = vmatpush1.msra.mxu0 0.0
    %2447 = vmatprep.subr.mxu0 0.0
    %2448 = vmatpush1.msra.mxu0 0.0
    %2449 = vmatprep.subr.mxu0 0.0
    %2450 = vmatpush1.msra.mxu0 0.0
    %2451 = vmatprep.subr.mxu0 0.0
    %2452 = vmatpush1.msra.mxu0 0.0
    %2453 = vmatprep.subr.mxu0 0.0
    %2454 = vmatpush1.msra.mxu0 0.0
    %2455 = vmatprep.subr.mxu0 0.0
    %2456 = vmatpush1.msra.mxu0 0.0
    %2457 = vmatprep.subr.mxu0 0.0
    %2458 = vmatpush1.msra.mxu0 0.0
    %2459 = vmatprep.subr.mxu0 0.0
    %2460 = vmatpush1.msra.mxu0 0.0
    %2461 = vmatprep.subr.mxu0 0.0
    %2462 = vmatpush1.msra.mxu0 0.0
    %2463 = vmatprep.subr.mxu0 0.0
    %2464 = vmatpush1.msra.mxu0 0.0
    %2465 = vmatprep.subr.mxu0 0.0
    %2466 = vmatpush1.msra.mxu0 0.0
    %2467 = vmatprep.subr.mxu0 0.0
    %2468 = vmatpush1.msra.mxu0 0.0
    %2469 = vmatprep.subr.mxu0 0.0
    %2470 = vmatpush1.msra.mxu0 0.0
    %2471 = vmatprep.subr.mxu0 0.0
    %2472 = vmatpush1.msra.mxu0 0.0
    %2473 = vmatprep.subr.mxu0 0.0
    %2474 = vmatpush1.msra.mxu0 0.0
    %2475 = vmatprep.subr.mxu0 0.0
    %2476 = vmatpush1.msra.mxu0 0.0
    %2477 = vmatprep.mubr.f32.mxu0 0.0
    %2478 = vmatmul.mubr.f32.gmra.mrb[0].mxu0 %v2411
    %v2479 = vpop.f32.mrb[0].mxu0
    %v2480 = vadd.f32 0.0, %v2479
    %v2481 = vpop.f32.mrb[0].mxu0
    %2482 = vdwg.mxu0
    %v2483 = vadd.f32 %v2409, %v2480
    %v2484 = vrot.slane %v1819, 1
    %v2485 = vsel %vm315, %v2484, 0
    %2487 = vmatprep.subr.mxu0 0.0
    %2488 = vmatpush1.msra.mxu0 %v449
    %2489 = vmatprep.subr.mxu0 0.0
    %2490 = vmatpush1.msra.mxu0 %v450
    %2491 = vmatprep.subr.mxu0 0.0
    %2492 = vmatpush1.msra.mxu0 %v451
    %2493 = vmatprep.subr.mxu0 0.0
    %2494 = vmatpush1.msra.mxu0 %v452
    %2495 = vmatprep.subr.mxu0 0.0
    %2496 = vmatpush1.msra.mxu0 0.0
    %2497 = vmatprep.subr.mxu0 0.0
    %2498 = vmatpush1.msra.mxu0 0.0
    %2499 = vmatprep.subr.mxu0 0.0
    %2500 = vmatpush1.msra.mxu0 0.0
    %2501 = vmatprep.subr.mxu0 0.0
    %2502 = vmatpush1.msra.mxu0 0.0
    %2503 = vmatprep.subr.mxu0 0.0
    %2504 = vmatpush1.msra.mxu0 0.0
    %2505 = vmatprep.subr.mxu0 0.0
    %2506 = vmatpush1.msra.mxu0 0.0
    %2507 = vmatprep.subr.mxu0 0.0
    %2508 = vmatpush1.msra.mxu0 0.0
    %2509 = vmatprep.subr.mxu0 0.0
    %2510 = vmatpush1.msra.mxu0 0.0
    %2511 = vmatprep.subr.mxu0 0.0
    %2512 = vmatpush1.msra.mxu0 0.0
    %2513 = vmatprep.subr.mxu0 0.0
    %2514 = vmatpush1.msra.mxu0 0.0
    %2515 = vmatprep.subr.mxu0 0.0
    %2516 = vmatpush1.msra.mxu0 0.0
    %2517 = vmatprep.subr.mxu0 0.0
    %2518 = vmatpush1.msra.mxu0 0.0
    %2519 = vmatprep.subr.mxu0 0.0
    %2520 = vmatpush1.msra.mxu0 0.0
    %2521 = vmatprep.subr.mxu0 0.0
    %2522 = vmatpush1.msra.mxu0 0.0
    %2523 = vmatprep.subr.mxu0 0.0
    %2524 = vmatpush1.msra.mxu0 0.0
    %2525 = vmatprep.subr.mxu0 0.0
    %2526 = vmatpush1.msra.mxu0 0.0
    %2527 = vmatprep.subr.mxu0 0.0
    %2528 = vmatpush1.msra.mxu0 0.0
    %2529 = vmatprep.subr.mxu0 0.0
    %2530 = vmatpush1.msra.mxu0 0.0
    %2531 = vmatprep.subr.mxu0 0.0
    %2532 = vmatpush1.msra.mxu0 0.0
    %2533 = vmatprep.subr.mxu0 0.0
    %2534 = vmatpush1.msra.mxu0 0.0
    %2535 = vmatprep.subr.mxu0 0.0
    %2536 = vmatpush1.msra.mxu0 0.0
    %2537 = vmatprep.subr.mxu0 0.0
    %2538 = vmatpush1.msra.mxu0 0.0
    %2539 = vmatprep.subr.mxu0 0.0
    %2540 = vmatpush1.msra.mxu0 0.0
    %2541 = vmatprep.subr.mxu0 0.0
    %2542 = vmatpush1.msra.mxu0 0.0
    %2543 = vmatprep.subr.mxu0 0.0
    %2544 = vmatpush1.msra.mxu0 0.0
    %2545 = vmatprep.subr.mxu0 0.0
    %2546 = vmatpush1.msra.mxu0 0.0
    %2547 = vmatprep.subr.mxu0 0.0
    %2548 = vmatpush1.msra.mxu0 0.0
    %2549 = vmatprep.subr.mxu0 0.0
    %2550 = vmatpush1.msra.mxu0 0.0
    %2551 = vmatprep.mubr.f32.mxu0 0.0
    %2552 = vmatmul.mubr.f32.gmra.mrb[0].mxu0 %v2485
    %v2553 = vpop.f32.mrb[0].mxu0
    %v2554 = vadd.f32 0.0, %v2553
    %v2555 = vpop.f32.mrb[0].mxu0
    %2556 = vdwg.mxu0
    %v2557 = vadd.f32 %v2483, %v2554
    %v2558 = vrot.slane %v1819, 2
    %v2559 = vsel %vm315, %v2558, 0
    %2561 = vmatprep.subr.mxu0 0.0
    %2562 = vmatpush1.msra.mxu0 %v453
    %2563 = vmatprep.subr.mxu0 0.0
    %2564 = vmatpush1.msra.mxu0 %v454
    %2565 = vmatprep.subr.mxu0 0.0
    %2566 = vmatpush1.msra.mxu0 %v455
    %2567 = vmatprep.subr.mxu0 0.0
    %2568 = vmatpush1.msra.mxu0 %v456
    %2569 = vmatprep.subr.mxu0 0.0
    %2570 = vmatpush1.msra.mxu0 0.0
    %2571 = vmatprep.subr.mxu0 0.0
    %2572 = vmatpush1.msra.mxu0 0.0
    %2573 = vmatprep.subr.mxu0 0.0
    %2574 = vmatpush1.msra.mxu0 0.0
    %2575 = vmatprep.subr.mxu0 0.0
    %2576 = vmatpush1.msra.mxu0 0.0
    %2577 = vmatprep.subr.mxu0 0.0
    %2578 = vmatpush1.msra.mxu0 0.0
    %2579 = vmatprep.subr.mxu0 0.0
    %2580 = vmatpush1.msra.mxu0 0.0
    %2581 = vmatprep.subr.mxu0 0.0
    %2582 = vmatpush1.msra.mxu0 0.0
    %2583 = vmatprep.subr.mxu0 0.0
    %2584 = vmatpush1.msra.mxu0 0.0
    %2585 = vmatprep.subr.mxu0 0.0
    %2586 = vmatpush1.msra.mxu0 0.0
    %2587 = vmatprep.subr.mxu0 0.0
    %2588 = vmatpush1.msra.mxu0 0.0
    %2589 = vmatprep.subr.mxu0 0.0
    %2590 = vmatpush1.msra.mxu0 0.0
    %2591 = vmatprep.subr.mxu0 0.0
    %2592 = vmatpush1.msra.mxu0 0.0
    %2593 = vmatprep.subr.mxu0 0.0
    %2594 = vmatpush1.msra.mxu0 0.0
    %2595 = vmatprep.subr.mxu0 0.0
    %2596 = vmatpush1.msra.mxu0 0.0
    %2597 = vmatprep.subr.mxu0 0.0
    %2598 = vmatpush1.msra.mxu0 0.0
    %2599 = vmatprep.subr.mxu0 0.0
    %2600 = vmatpush1.msra.mxu0 0.0
    %2601 = vmatprep.subr.mxu0 0.0
    %2602 = vmatpush1.msra.mxu0 0.0
    %2603 = vmatprep.subr.mxu0 0.0
    %2604 = vmatpush1.msra.mxu0 0.0
    %2605 = vmatprep.subr.mxu0 0.0
    %2606 = vmatpush1.msra.mxu0 0.0
    %2607 = vmatprep.subr.mxu0 0.0
    %2608 = vmatpush1.msra.mxu0 0.0
    %2609 = vmatprep.subr.mxu0 0.0
    %2610 = vmatpush1.msra.mxu0 0.0
    %2611 = vmatprep.subr.mxu0 0.0
    %2612 = vmatpush1.msra.mxu0 0.0
    %2613 = vmatprep.subr.mxu0 0.0
    %2614 = vmatpush1.msra.mxu0 0.0
    %2615 = vmatprep.subr.mxu0 0.0
    %2616 = vmatpush1.msra.mxu0 0.0
    %2617 = vmatprep.subr.mxu0 0.0
    %2618 = vmatpush1.msra.mxu0 0.0
    %2619 = vmatprep.subr.mxu0 0.0
    %2620 = vmatpush1.msra.mxu0 0.0
    %2621 = vmatprep.subr.mxu0 0.0
    %2622 = vmatpush1.msra.mxu0 0.0
    %2623 = vmatprep.subr.mxu0 0.0
    %2624 = vmatpush1.msra.mxu0 0.0
    %2625 = vmatprep.mubr.f32.mxu0 0.0
    %2626 = vmatmul.mubr.f32.gmra.mrb[0].mxu0 %v2559
    %v2627 = vpop.f32.mrb[0].mxu0
    %v2628 = vadd.f32 0.0, %v2627
    %v2629 = vpop.f32.mrb[0].mxu0
    %2630 = vdwg.mxu0
    %v2631 = vadd.f32 %v2557, %v2628
    %v2632 = vrot.slane %v1819, 3
    %v2633 = vsel %vm315, %v2632, 0
    %2635 = vmatprep.subr.mxu0 0.0
    %2636 = vmatpush1.msra.mxu0 %v457
    %2637 = vmatprep.subr.mxu0 0.0
    %2638 = vmatpush1.msra.mxu0 %v458
    %2639 = vmatprep.subr.mxu0 0.0
    %2640 = vmatpush1.msra.mxu0 %v459
    %2641 = vmatprep.subr.mxu0 0.0
    %2642 = vmatpush1.msra.mxu0 %v460
    %2643 = vmatprep.subr.mxu0 0.0
    %2644 = vmatpush1.msra.mxu0 0.0
    %2645 = vmatprep.subr.mxu0 0.0
    %2646 = vmatpush1.msra.mxu0 0.0
    %2647 = vmatprep.subr.mxu0 0.0
    %2648 = vmatpush1.msra.mxu0 0.0
    %2649 = vmatprep.subr.mxu0 0.0
    %2650 = vmatpush1.msra.mxu0 0.0
    %2651 = vmatprep.subr.mxu0 0.0
    %2652 = vmatpush1.msra.mxu0 0.0
    %2653 = vmatprep.subr.mxu0 0.0
    %2654 = vmatpush1.msra.mxu0 0.0
    %2655 = vmatprep.subr.mxu0 0.0
    %2656 = vmatpush1.msra.mxu0 0.0
    %2657 = vmatprep.subr.mxu0 0.0
    %2658 = vmatpush1.msra.mxu0 0.0
    %2659 = vmatprep.subr.mxu0 0.0
    %2660 = vmatpush1.msra.mxu0 0.0
    %2661 = vmatprep.subr.mxu0 0.0
    %2662 = vmatpush1.msra.mxu0 0.0
    %2663 = vmatprep.subr.mxu0 0.0
    %2664 = vmatpush1.msra.mxu0 0.0
    %2665 = vmatprep.subr.mxu0 0.0
    %2666 = vmatpush1.msra.mxu0 0.0
    %2667 = vmatprep.subr.mxu0 0.0
    %2668 = vmatpush1.msra.mxu0 0.0
    %2669 = vmatprep.subr.mxu0 0.0
    %2670 = vmatpush1.msra.mxu0 0.0
    %2671 = vmatprep.subr.mxu0 0.0
    %2672 = vmatpush1.msra.mxu0 0.0
    %2673 = vmatprep.subr.mxu0 0.0
    %2674 = vmatpush1.msra.mxu0 0.0
    %2675 = vmatprep.subr.mxu0 0.0
    %2676 = vmatpush1.msra.mxu0 0.0
    %2677 = vmatprep.subr.mxu0 0.0
    %2678 = vmatpush1.msra.mxu0 0.0
    %2679 = vmatprep.subr.mxu0 0.0
    %2680 = vmatpush1.msra.mxu0 0.0
    %2681 = vmatprep.subr.mxu0 0.0
    %2682 = vmatpush1.msra.mxu0 0.0
    %2683 = vmatprep.subr.mxu0 0.0
    %2684 = vmatpush1.msra.mxu0 0.0
    %2685 = vmatprep.subr.mxu0 0.0
    %2686 = vmatpush1.msra.mxu0 0.0
    %2687 = vmatprep.subr.mxu0 0.0
    %2688 = vmatpush1.msra.mxu0 0.0
    %2689 = vmatprep.subr.mxu0 0.0
    %2690 = vmatpush1.msra.mxu0 0.0
    %2691 = vmatprep.subr.mxu0 0.0
    %2692 = vmatpush1.msra.mxu0 0.0
    %2693 = vmatprep.subr.mxu0 0.0
    %2694 = vmatpush1.msra.mxu0 0.0
    %2695 = vmatprep.subr.mxu0 0.0
    %2696 = vmatpush1.msra.mxu0 0.0
    %2697 = vmatprep.subr.mxu0 0.0
    %2698 = vmatpush1.msra.mxu0 0.0
    %2699 = vmatprep.mubr.f32.mxu0 0.0
    %2700 = vmatmul.mubr.f32.gmra.mrb[0].mxu0 %v2633
    %v2701 = vpop.f32.mrb[0].mxu0
    %v2702 = vadd.f32 0.0, %v2701
    %v2703 = vpop.f32.mrb[0].mxu0
    %2704 = vdwg.mxu0
    %v2705 = vadd.f32 %v2631, %v2702
    %v2706 = vrot.slane %v1819, 4
    %v2707 = vsel %vm315, %v2706, 0
    %2709 = vmatprep.subr.mxu0 0.0
    %2710 = vmatpush1.msra.mxu0 %v461
    %2711 = vmatprep.subr.mxu0 0.0
    %2712 = vmatpush1.msra.mxu0 %v462
    %2713 = vmatprep.subr.mxu0 0.0
    %2714 = vmatpush1.msra.mxu0 %v463
    %2715 = vmatprep.subr.mxu0 0.0
    %2716 = vmatpush1.msra.mxu0 %v464
    %2717 = vmatprep.subr.mxu0 0.0
    %2718 = vmatpush1.msra.mxu0 0.0
    %2719 = vmatprep.subr.mxu0 0.0
    %2720 = vmatpush1.msra.mxu0 0.0
    %2721 = vmatprep.subr.mxu0 0.0
    %2722 = vmatpush1.msra.mxu0 0.0
    %2723 = vmatprep.subr.mxu0 0.0
    %2724 = vmatpush1.msra.mxu0 0.0
    %2725 = vmatprep.subr.mxu0 0.0
    %2726 = vmatpush1.msra.mxu0 0.0
    %2727 = vmatprep.subr.mxu0 0.0
    %2728 = vmatpush1.msra.mxu0 0.0
    %2729 = vmatprep.subr.mxu0 0.0
    %2730 = vmatpush1.msra.mxu0 0.0
    %2731 = vmatprep.subr.mxu0 0.0
    %2732 = vmatpush1.msra.mxu0 0.0
    %2733 = vmatprep.subr.mxu0 0.0
    %2734 = vmatpush1.msra.mxu0 0.0
    %2735 = vmatprep.subr.mxu0 0.0
    %2736 = vmatpush1.msra.mxu0 0.0
    %2737 = vmatprep.subr.mxu0 0.0
    %2738 = vmatpush1.msra.mxu0 0.0
    %2739 = vmatprep.subr.mxu0 0.0
    %2740 = vmatpush1.msra.mxu0 0.0
    %2741 = vmatprep.subr.mxu0 0.0
    %2742 = vmatpush1.msra.mxu0 0.0
    %2743 = vmatprep.subr.mxu0 0.0
    %2744 = vmatpush1.msra.mxu0 0.0
    %2745 = vmatprep.subr.mxu0 0.0
    %2746 = vmatpush1.msra.mxu0 0.0
    %2747 = vmatprep.subr.mxu0 0.0
    %2748 = vmatpush1.msra.mxu0 0.0
    %2749 = vmatprep.subr.mxu0 0.0
    %2750 = vmatpush1.msra.mxu0 0.0
    %2751 = vmatprep.subr.mxu0 0.0
    %2752 = vmatpush1.msra.mxu0 0.0
    %2753 = vmatprep.subr.mxu0 0.0
    %2754 = vmatpush1.msra.mxu0 0.0
    %2755 = vmatprep.subr.mxu0 0.0
    %2756 = vmatpush1.msra.mxu0 0.0
    %2757 = vmatprep.subr.mxu0 0.0
    %2758 = vmatpush1.msra.mxu0 0.0
    %2759 = vmatprep.subr.mxu0 0.0
    %2760 = vmatpush1.msra.mxu0 0.0
    %2761 = vmatprep.subr.mxu0 0.0
    %2762 = vmatpush1.msra.mxu0 0.0
    %2763 = vmatprep.subr.mxu0 0.0
    %2764 = vmatpush1.msra.mxu0 0.0
    %2765 = vmatprep.subr.mxu0 0.0
    %2766 = vmatpush1.msra.mxu0 0.0
    %2767 = vmatprep.subr.mxu0 0.0
    %2768 = vmatpush1.msra.mxu0 0.0
    %2769 = vmatprep.subr.mxu0 0.0
    %2770 = vmatpush1.msra.mxu0 0.0
    %2771 = vmatprep.subr.mxu0 0.0
    %2772 = vmatpush1.msra.mxu0 0.0
    %2773 = vmatprep.mubr.f32.mxu0 0.0
    %2774 = vmatmul.mubr.f32.gmra.mrb[0].mxu0 %v2707
    %v2775 = vpop.f32.mrb[0].mxu0
    %v2776 = vadd.f32 0.0, %v2775
    %v2777 = vpop.f32.mrb[0].mxu0
    %2778 = vdwg.mxu0
    %v2779 = vadd.f32 %v2705, %v2776
    %v2780 = vrot.slane %v1819, 5
    %v2781 = vsel %vm315, %v2780, 0
    %2783 = vmatprep.subr.mxu0 0.0
    %2784 = vmatpush1.msra.mxu0 %v465
    %2785 = vmatprep.subr.mxu0 0.0
    %2786 = vmatpush1.msra.mxu0 %v466
    %2787 = vmatprep.subr.mxu0 0.0
    %2788 = vmatpush1.msra.mxu0 %v467
    %2789 = vmatprep.subr.mxu0 0.0
    %2790 = vmatpush1.msra.mxu0 %v468
    %2791 = vmatprep.subr.mxu0 0.0
    %2792 = vmatpush1.msra.mxu0 0.0
    %2793 = vmatprep.subr.mxu0 0.0
    %2794 = vmatpush1.msra.mxu0 0.0
    %2795 = vmatprep.subr.mxu0 0.0
    %2796 = vmatpush1.msra.mxu0 0.0
    %2797 = vmatprep.subr.mxu0 0.0
    %2798 = vmatpush1.msra.mxu0 0.0
    %2799 = vmatprep.subr.mxu0 0.0
    %2800 = vmatpush1.msra.mxu0 0.0
    %2801 = vmatprep.subr.mxu0 0.0
    %2802 = vmatpush1.msra.mxu0 0.0
    %2803 = vmatprep.subr.mxu0 0.0
    %2804 = vmatpush1.msra.mxu0 0.0
    %2805 = vmatprep.subr.mxu0 0.0
    %2806 = vmatpush1.msra.mxu0 0.0
    %2807 = vmatprep.subr.mxu0 0.0
    %2808 = vmatpush1.msra.mxu0 0.0
    %2809 = vmatprep.subr.mxu0 0.0
    %2810 = vmatpush1.msra.mxu0 0.0
    %2811 = vmatprep.subr.mxu0 0.0
    %2812 = vmatpush1.msra.mxu0 0.0
    %2813 = vmatprep.subr.mxu0 0.0
    %2814 = vmatpush1.msra.mxu0 0.0
    %2815 = vmatprep.subr.mxu0 0.0
    %2816 = vmatpush1.msra.mxu0 0.0
    %2817 = vmatprep.subr.mxu0 0.0
    %2818 = vmatpush1.msra.mxu0 0.0
    %2819 = vmatprep.subr.mxu0 0.0
    %2820 = vmatpush1.msra.mxu0 0.0
    %2821 = vmatprep.subr.mxu0 0.0
    %2822 = vmatpush1.msra.mxu0 0.0
    %2823 = vmatprep.subr.mxu0 0.0
    %2824 = vmatpush1.msra.mxu0 0.0
    %2825 = vmatprep.subr.mxu0 0.0
    %2826 = vmatpush1.msra.mxu0 0.0
    %2827 = vmatprep.subr.mxu0 0.0
    %2828 = vmatpush1.msra.mxu0 0.0
    %2829 = vmatprep.subr.mxu0 0.0
    %2830 = vmatpush1.msra.mxu0 0.0
    %2831 = vmatprep.subr.mxu0 0.0
    %2832 = vmatpush1.msra.mxu0 0.0
    %2833 = vmatprep.subr.mxu0 0.0
    %2834 = vmatpush1.msra.mxu0 0.0
    %2835 = vmatprep.subr.mxu0 0.0
    %2836 = vmatpush1.msra.mxu0 0.0
    %2837 = vmatprep.subr.mxu0 0.0
    %2838 = vmatpush1.msra.mxu0 0.0
    %2839 = vmatprep.subr.mxu0 0.0
    %2840 = vmatpush1.msra.mxu0 0.0
    %2841 = vmatprep.subr.mxu0 0.0
    %2842 = vmatpush1.msra.mxu0 0.0
    %2843 = vmatprep.subr.mxu0 0.0
    %2844 = vmatpush1.msra.mxu0 0.0
    %2845 = vmatprep.subr.mxu0 0.0
    %2846 = vmatpush1.msra.mxu0 0.0
    %2847 = vmatprep.mubr.f32.mxu0 0.0
    %2848 = vmatmul.mubr.f32.gmra.mrb[0].mxu0 %v2781
    %v2849 = vpop.f32.mrb[0].mxu0
    %v2850 = vadd.f32 0.0, %v2849
    %v2851 = vpop.f32.mrb[0].mxu0
    %2852 = vdwg.mxu0
    %v2853 = vadd.f32 %v2779, %v2850
    %v2854 = vrot.slane %v1819, 6
    %v2855 = vsel %vm315, %v2854, 0
    %2857 = vmatprep.subr.mxu0 0.0
    %2858 = vmatpush1.msra.mxu0 %v469
    %2859 = vmatprep.subr.mxu0 0.0
    %2860 = vmatpush1.msra.mxu0 %v470
    %2861 = vmatprep.subr.mxu0 0.0
    %2862 = vmatpush1.msra.mxu0 %v471
    %2863 = vmatprep.subr.mxu0 0.0
    %2864 = vmatpush1.msra.mxu0 %v472
    %2865 = vmatprep.subr.mxu0 0.0
    %2866 = vmatpush1.msra.mxu0 0.0
    %2867 = vmatprep.subr.mxu0 0.0
    %2868 = vmatpush1.msra.mxu0 0.0
    %2869 = vmatprep.subr.mxu0 0.0
    %2870 = vmatpush1.msra.mxu0 0.0
    %2871 = vmatprep.subr.mxu0 0.0
    %2872 = vmatpush1.msra.mxu0 0.0
    %2873 = vmatprep.subr.mxu0 0.0
    %2874 = vmatpush1.msra.mxu0 0.0
    %2875 = vmatprep.subr.mxu0 0.0
    %2876 = vmatpush1.msra.mxu0 0.0
    %2877 = vmatprep.subr.mxu0 0.0
    %2878 = vmatpush1.msra.mxu0 0.0
    %2879 = vmatprep.subr.mxu0 0.0
    %2880 = vmatpush1.msra.mxu0 0.0
    %2881 = vmatprep.subr.mxu0 0.0
    %2882 = vmatpush1.msra.mxu0 0.0
    %2883 = vmatprep.subr.mxu0 0.0
    %2884 = vmatpush1.msra.mxu0 0.0
    %2885 = vmatprep.subr.mxu0 0.0
    %2886 = vmatpush1.msra.mxu0 0.0
    %2887 = vmatprep.subr.mxu0 0.0
    %2888 = vmatpush1.msra.mxu0 0.0
    %2889 = vmatprep.subr.mxu0 0.0
    %2890 = vmatpush1.msra.mxu0 0.0
    %2891 = vmatprep.subr.mxu0 0.0
    %2892 = vmatpush1.msra.mxu0 0.0
    %2893 = vmatprep.subr.mxu0 0.0
    %2894 = vmatpush1.msra.mxu0 0.0
    %2895 = vmatprep.subr.mxu0 0.0
    %2896 = vmatpush1.msra.mxu0 0.0
    %2897 = vmatprep.subr.mxu0 0.0
    %2898 = vmatpush1.msra.mxu0 0.0
    %2899 = vmatprep.subr.mxu0 0.0
    %2900 = vmatpush1.msra.mxu0 0.0
    %2901 = vmatprep.subr.mxu0 0.0
    %2902 = vmatpush1.msra.mxu0 0.0
    %2903 = vmatprep.subr.mxu0 0.0
    %2904 = vmatpush1.msra.mxu0 0.0
    %2905 = vmatprep.subr.mxu0 0.0
    %2906 = vmatpush1.msra.mxu0 0.0
    %2907 = vmatprep.subr.mxu0 0.0
    %2908 = vmatpush1.msra.mxu0 0.0
    %2909 = vmatprep.subr.mxu0 0.0
    %2910 = vmatpush1.msra.mxu0 0.0
    %2911 = vmatprep.subr.mxu0 0.0
    %2912 = vmatpush1.msra.mxu0 0.0
    %2913 = vmatprep.subr.mxu0 0.0
    %2914 = vmatpush1.msra.mxu0 0.0
    %2915 = vmatprep.subr.mxu0 0.0
    %2916 = vmatpush1.msra.mxu0 0.0
    %2917 = vmatprep.subr.mxu0 0.0
    %2918 = vmatpush1.msra.mxu0 0.0
    %2919 = vmatprep.subr.mxu0 0.0
    %2920 = vmatpush1.msra.mxu0 0.0
    %2921 = vmatprep.mubr.f32.mxu0 0.0
    %2922 = vmatmul.mubr.f32.gmra.mrb[0].mxu0 %v2855
    %v2923 = vpop.f32.mrb[0].mxu0
    %v2924 = vadd.f32 0.0, %v2923
    %v2925 = vpop.f32.mrb[0].mxu0
    %2926 = vdwg.mxu0
    %v2927 = vadd.f32 %v2853, %v2924
    %v2928 = vrot.slane %v1819, 7
    %v2929 = vsel %vm315, %v2928, 0
    %2931 = vmatprep.subr.mxu0 0.0
    %2932 = vmatpush1.msra.mxu0 %v473
    %2933 = vmatprep.subr.mxu0 0.0
    %2934 = vmatpush1.msra.mxu0 %v474
    %2935 = vmatprep.subr.mxu0 0.0
    %2936 = vmatpush1.msra.mxu0 %v475
    %2937 = vmatprep.subr.mxu0 0.0
    %2938 = vmatpush1.msra.mxu0 %v476
    %2939 = vmatprep.subr.mxu0 0.0
    %2940 = vmatpush1.msra.mxu0 0.0
    %2941 = vmatprep.subr.mxu0 0.0
    %2942 = vmatpush1.msra.mxu0 0.0
    %2943 = vmatprep.subr.mxu0 0.0
    %2944 = vmatpush1.msra.mxu0 0.0
    %2945 = vmatprep.subr.mxu0 0.0
    %2946 = vmatpush1.msra.mxu0 0.0
    %2947 = vmatprep.subr.mxu0 0.0
    %2948 = vmatpush1.msra.mxu0 0.0
    %2949 = vmatprep.subr.mxu0 0.0
    %2950 = vmatpush1.msra.mxu0 0.0
    %2951 = vmatprep.subr.mxu0 0.0
    %2952 = vmatpush1.msra.mxu0 0.0
    %2953 = vmatprep.subr.mxu0 0.0
    %2954 = vmatpush1.msra.mxu0 0.0
    %2955 = vmatprep.subr.mxu0 0.0
    %2956 = vmatpush1.msra.mxu0 0.0
    %2957 = vmatprep.subr.mxu0 0.0
    %2958 = vmatpush1.msra.mxu0 0.0
    %2959 = vmatprep.subr.mxu0 0.0
    %2960 = vmatpush1.msra.mxu0 0.0
    %2961 = vmatprep.subr.mxu0 0.0
    %2962 = vmatpush1.msra.mxu0 0.0
    %2963 = vmatprep.subr.mxu0 0.0
    %2964 = vmatpush1.msra.mxu0 0.0
    %2965 = vmatprep.subr.mxu0 0.0
    %2966 = vmatpush1.msra.mxu0 0.0
    %2967 = vmatprep.subr.mxu0 0.0
    %2968 = vmatpush1.msra.mxu0 0.0
    %2969 = vmatprep.subr.mxu0 0.0
    %2970 = vmatpush1.msra.mxu0 0.0
    %2971 = vmatprep.subr.mxu0 0.0
    %2972 = vmatpush1.msra.mxu0 0.0
    %2973 = vmatprep.subr.mxu0 0.0
    %2974 = vmatpush1.msra.mxu0 0.0
    %2975 = vmatprep.subr.mxu0 0.0
    %2976 = vmatpush1.msra.mxu0 0.0
    %2977 = vmatprep.subr.mxu0 0.0
    %2978 = vmatpush1.msra.mxu0 0.0
    %2979 = vmatprep.subr.mxu0 0.0
    %2980 = vmatpush1.msra.mxu0 0.0
    %2981 = vmatprep.subr.mxu0 0.0
    %2982 = vmatpush1.msra.mxu0 0.0
    %2983 = vmatprep.subr.mxu0 0.0
    %2984 = vmatpush1.msra.mxu0 0.0
    %2985 = vmatprep.subr.mxu0 0.0
    %2986 = vmatpush1.msra.mxu0 0.0
    %2987 = vmatprep.subr.mxu0 0.0
    %2988 = vmatpush1.msra.mxu0 0.0
    %2989 = vmatprep.subr.mxu0 0.0
    %2990 = vmatpush1.msra.mxu0 0.0
    %2991 = vmatprep.subr.mxu0 0.0
    %2992 = vmatpush1.msra.mxu0 0.0
    %2993 = vmatprep.subr.mxu0 0.0
    %2994 = vmatpush1.msra.mxu0 0.0
    %2995 = vmatprep.mubr.f32.mxu0 0.0
    %2996 = vmatmul.mubr.f32.gmra.mrb[0].mxu0 %v2929
    %v2997 = vpop.f32.mrb[0].mxu0
    %v2998 = vadd.f32 0.0, %v2997
    %v2999 = vpop.f32.mrb[0].mxu0
    %3000 = vdwg.mxu0
    %v3001 = vadd.f32 %v2927, %v2998
    %v3003 = vrot.slane %v3001, 7
    %vm3005 = vcmask 1040384
    %v3006 = vsel %vm3005, %v1742, %v3003
    %v3007 = vld [vmem:[%s7] sm:$0x1]
    %v3009 = vlaneseq
    %v3010 = vshrl.u32 %v3009, 7
    %v3011 = vsub.s32 0, %v3010
    %v3012 = vrot.slane %v3007, %v3011
    %v3014 = vadd.f32 %v3006, %v3012
    %vm3015 = vcmask 58368
    %3016 = vst.msk [vmem:[#allocation2] sm:$0x3] %vm3015, %v3014
    // Predicated region
    $region34: #{stgcn_forward.1} parent=1 // pred_check
      _
    $region35: #{stgcn_forward.1} parent=1 // pred_check_branch
      %3018 = sbr.rel (0) target = $region37
    $region36: #{stgcn_forward.1} parent=1 // pred_region
      %s3020 = ssub.s32 32, 32
      %3021 = vsyncadd [#allocation3], %s3020
      %s3023 = sshll.u32 [#allocation2], 4
      %s3024 = int_to_ptr.vmem [resolvable:$true] %s3023
      %3026 = dma.vmem_to_hbm [thread:$0]  %s3024, 32, %s8, [#allocation3]
    $region37: #{stgcn_forward.1} parent=1 // pred_fallthru
      _
    // Predicated region
    $region38: #{stgcn_forward.1} parent=1 // pred_check
      _
    $region39: #{stgcn_forward.1} parent=1 // pred_check_branch
      %3028 = sbr.rel (0) target = $region41
    $region40: #{stgcn_forward.1} parent=1 // pred_region
      %3029 = dma.done [#allocation3], 32
    $region41: #{stgcn_forward.1} parent=1 // pred_fallthru
      _
    %3030 = vsyncpa [#allocation3], 1

</llo_original>
